<compile_context>
chip_gen: v7x
topology: tpu7x:2x2x1
jax: 0.10.0
libtpu: 0.0.40
codegen_flags: <defaults>
</compile_context>

<pallas_src>
import functools

import jax
import jax.numpy as jnp
from jax.experimental import pallas as pl
from jax.experimental.pallas import tpu as pltpu


def _round_up(x, m):
    return (x + m - 1) // m * m


# --------------------------------------------------------------------------- kernel
def bayescap_mlp_kernel(
    x_ref,                                              # (TB, D)   f32
    w1_ref, b1_ref, w2_ref, b2_ref, w3_ref, b3_ref,     # self.mod  (weights bf16, biases f32)
    wh1_ref, bh1_ref,                                   # fused head layer-1: (D, 3*Dp), (1, 3*Dp)
    wh2_ref, bh2_ref,                                   # per-head layer-2:   (3, Dp, Dp), (1, 3*Dp)
    out_ref,                                            # (TB, 3*Dp) slab: [mu | alpha | beta]
):
    cd = w1_ref.dtype                                   # MXU compute dtype (bfloat16)
    f32 = jnp.float32
    x = x_ref[...]                                      # f32 copy kept for the residual

    # ---- self.mod: Linear -> ReLU -> Linear -> ReLU -> Dropout(0)==id -> Linear ----
    h = jnp.dot(x.astype(cd), w1_ref[...], preferred_element_type=f32) + b1_ref[...]
    h = jnp.maximum(h, 0.0)
    h = jnp.dot(h.astype(cd), w2_ref[...], preferred_element_type=f32) + b2_ref[...]
    h = jnp.maximum(h, 0.0)
    x_intr = jnp.dot(h.astype(cd), w3_ref[...], preferred_element_type=f32) + b3_ref[...]

    # ---- residual ----
    x_intr = x_intr + x

    # ---- head layer 1 (shared LHS): one (D, 3*Dp) matmul + ReLU for all heads ----
    h1 = jnp.dot(x_intr.astype(cd), wh1_ref[...], preferred_element_type=f32) + bh1_ref[...]
    h1 = jnp.maximum(h1, 0.0).astype(cd)

    # ---- head layer 2: three real (Dp, Dp) matmuls (no block-diag zeros), each
    # writing a 128-aligned, 128-multiple-wide stripe of the output slab (unmasked
    # stores). ReLU applied statically per head (mu: no, alpha/beta: yes).
    dp = wh2_ref.shape[-1]                              # multiple of 128 by construction
    for head, has_relu in ((0, False), (1, True), (2, True)):
        lo = head * dp
        yh = jnp.dot(h1[:, lo:lo + dp], wh2_ref[head], preferred_element_type=f32)
        yh = yh + bh2_ref[:, lo:lo + dp]
        if has_relu:
            yh = jnp.maximum(yh, 0.0)
        out_ref[:, lo:lo + dp] = yh.astype(out_ref.dtype)


# --------------------------------------------------------------------- host helpers
def _pack_params(params, compute_dtype):
    """Fuse/pad the head weights ONCE and cast matmul weights to the MXU dtype.

    Each head's output dim is zero-padded to Dp = round_up(D, 128) so the output slab
    (width 3*Dp) is lane-dense and every per-head stripe starts on a 128 boundary.
    Returns (packed_tuple, (D, H, Dp)).
    """
    D = params["wmu1"].shape[0]
    H = params["w1"].shape[1]
    Dp = _round_up(D, 128)

    def pad_last(a, width):
        pad = width - a.shape[-1]
        if pad == 0:
            return a
        return jnp.pad(a, [(0, 0)] * (a.ndim - 1) + [(0, pad)])

    def pad_square(w):                                   # (D, D) -> (Dp, Dp), top-left block
        return jnp.pad(w, ((0, Dp - D), (0, Dp - D)))

    # Head layer 1: shared LHS -> fuse along the output dim (zero-padded per head).
    wh1 = jnp.concatenate([pad_last(params[k], Dp) for k in ("wmu1", "wa1", "wb1")], axis=1)
    bh1 = jnp.concatenate([pad_last(params[k], Dp) for k in ("bmu1", "ba1", "bb1")], axis=1)
    # Head layer 2: three independent (Dp, Dp) weights (no 2/3-zero block-diag matrix).
    wh2 = jnp.stack([pad_square(params[k]) for k in ("wmu2", "wa2", "wb2")])
    bh2 = jnp.concatenate([pad_last(params[k], Dp) for k in ("bmu2", "ba2", "bb2")], axis=1)

    cd, f32 = compute_dtype, jnp.float32
    packed = (
        params["w1"].astype(cd), params["b1"].astype(f32),
        params["w2"].astype(cd), params["b2"].astype(f32),
        params["w3"].astype(cd), params["b3"].astype(f32),
        wh1.astype(cd), bh1.astype(f32),
        wh2.astype(cd), bh2.astype(f32),
    )
    return packed, (D, H, Dp)


def _num_tensorcores_per_device():
    """Megacore chips (TPU v4 / v5p / v7x) expose 2 TensorCores behind one device."""
    try:
        kind = jax.devices()[0].device_kind.lower()
    except Exception:
        return 1
    return 2 if any(tag in kind for tag in ("v4", "v5p", "v7", "7x")) else 1


def _choose_batch_tile(B, max_tile, num_cores):
    """One fat tile per TensorCore: a single grid step on 1-TC chips (v5e/v6e) to
    avoid per-step overhead; >= 2 steps on megacore chips so both cores get work."""
    if num_cores > 1 and B >= 16:
        target = (B + num_cores - 1) // num_cores
    else:
        target = B
    tb = min(B, max_tile, target)
    if tb != B:
        tb = _round_up(tb, 8)            # blocks smaller than the array need sublane alignment
    return min(tb, B)


def make_bayescap_mlp(params, *, compute_dtype=jnp.bfloat16, max_batch_tile=1024,
                      single_buffer_weights=True, vmem_limit_bytes=None):
    """Pack/pad/cast the weights once and return a jitted forward fn:
    x[B, D] f32 -> (mu, alpha, beta), each [B, D] f32."""
    packed, (D, H, Dp) = _pack_params(params, compute_dtype)
    num_cores = _num_tensorcores_per_device()
    W = 3 * Dp

    @functools.partial(jax.jit, static_argnames=("single_buffer",))
    def _apply(x, packed_args, single_buffer):
        B = x.shape[0]
        TB = _choose_batch_tile(B, max_batch_tile, num_cores)
        grid = (pl.cdiv(B, TB),)

        x_map = lambda i: (i, 0)
        # Grid-invariant weights/biases (constant index_map -> resident across steps).
        # Buffered(1), when supported, drops the useless second pipeline buffer and
        # halves resident weight VMEM (matters at production D=H=512 on v7x's 64 MiB).
        wkw = {"pipeline_mode": pl.Buffered(1)} if single_buffer else {}
        weight_specs = [
            pl.BlockSpec(p.shape, (lambda i, nd=p.ndim: (0,) * nd), **wkw)
            for p in packed_args
        ]

        # Advisory cost hint for the XLA scheduler.
        flops = 2 * B * (D * H + H * H + H * D + D * W + 3 * Dp * Dp)
        weight_bytes = 2 * (D * H + H * H + H * D + D * W + 3 * Dp * Dp)
        bias_bytes = 4 * (2 * H + D + 2 * W)
        io_bytes = 4 * B * (D + W)
        cost = pl.CostEstimate(flops=flops, transcendentals=0,
                               bytes_accessed=weight_bytes + bias_bytes + io_bytes)

        out = pl.pallas_call(
            bayescap_mlp_kernel,
            out_shape=jax.ShapeDtypeStruct((B, W), x.dtype),
            grid_spec=pltpu.PrefetchScalarGridSpec(
                num_scalar_prefetch=0,
                grid=grid,
                in_specs=[pl.BlockSpec((TB, D), x_map)] + weight_specs,
                out_specs=pl.BlockSpec((TB, W), x_map),
            ),
            compiler_params=pltpu.CompilerParams(
                dimension_semantics=("parallel",),       # batch axis -> megacore shardable
                vmem_limit_bytes=vmem_limit_bytes,       # None -> default scoped limit
            ),
            cost_estimate=cost,
        )(x, *packed_args)

        # Per-head stripes start at 128-aligned lane offsets; drop the zero padding.
        mu = out[:, 0:D]
        alpha = out[:, Dp:Dp + D]
        beta = out[:, 2 * Dp:2 * Dp + D]
        return mu, alpha, beta

    # Probe Buffered(1) once on a tiny batch; silently fall back to default
    # double-buffered weight specs if this JAX/Mosaic build rejects buffer_count=1.
    use_single_buffer = False
    if single_buffer_weights:
        try:
            probe = jnp.zeros((8, D), jnp.float32)
            jax.block_until_ready(_apply(probe, packed, single_buffer=True))
            use_single_buffer = True
        except Exception:
            use_single_buffer = False

    def apply(x):
        return _apply(x, packed, single_buffer=use_single_buffer)

    return apply


# ------------------------------------------------------------------ params & reference
def init_params(key, inp_dim, out_dim, hid_dim):
    """Deterministic synthetic parameters. Weights are (in, out); biases (1, out)."""
    assert inp_dim == out_dim, "residual requires inp_dim == out_dim"
    shapes = {
        "w1": (inp_dim, hid_dim), "b1": (1, hid_dim),
        "w2": (hid_dim, hid_dim), "b2": (1, hid_dim),
        "w3": (hid_dim, out_dim), "b3": (1, out_dim),
        "wmu1": (out_dim, out_dim), "bmu1": (1, out_dim),
        "wmu2": (out_dim, out_dim), "bmu2": (1, out_dim),
        "wa1": (out_dim, out_dim), "ba1": (1, out_dim),
        "wa2": (out_dim, out_dim), "ba2": (1, out_dim),
        "wb1": (out_dim, out_dim), "bb1": (1, out_dim),
        "wb2": (out_dim, out_dim), "bb2": (1, out_dim),
    }
    params = {}
    keys = jax.random.split(key, len(shapes))
    for k, (name, shape) in zip(keys, sorted(shapes.items())):
        fan_in = shape[0] if len(shape) == 2 and shape[0] > 1 else max(shape)
        scale = 1.0 / jnp.sqrt(jnp.float32(fan_in))
        params[name] = jax.random.uniform(k, shape, jnp.float32, -1.0, 1.0) * scale
    return params


def bayescap_mlp_ref(x, p, compute_dtype=jnp.bfloat16):
    """Layer-by-layer reference mirroring the kernel's numerics (bf16 MXU inputs,
    f32 accumulate / elementwise), using the UNFUSED, UNPADDED per-head weights."""
    cd = compute_dtype

    def lin(h, w, b):
        return jnp.dot(h.astype(cd), w.astype(cd), preferred_element_type=jnp.float32) + b

    relu = lambda v: jnp.maximum(v, 0.0)
    h = relu(lin(x, p["w1"], p["b1"]))
    h = relu(lin(h, p["w2"], p["b2"]))
    x_intr = lin(h, p["w3"], p["b3"]) + x
    x_mu = lin(relu(lin(x_intr, p["wmu1"], p["bmu1"])), p["wmu2"], p["bmu2"])
    x_1alpha = relu(lin(relu(lin(x_intr, p["wa1"], p["ba1"])), p["wa2"], p["ba2"]))
    x_beta = relu(lin(relu(lin(x_intr, p["wb1"], p["bb1"])), p["wb2"], p["bb2"]))
    return x_mu, x_1alpha, x_beta


def _check(got, want, name):
    if not jnp.allclose(got, want, atol=2e-3, rtol=2e-3):
        raise AssertionError(f"Pallas kernel does not match reference on '{name}'")


# --------------------------------------------------------------------------- demo
if __name__ == "__main__":
    key = jax.random.PRNGKey(0)
    k_x, k_x2, k_p = jax.random.split(key, 3)

    # Small demo shapes: batch=512, inp_dim == out_dim = 32, hid_dim = 64.
    B, D, H = 512, 32, 64
    x = jax.random.normal(k_x, (B, D), jnp.float32)
    params = init_params(k_p, inp_dim=D, out_dim=D, hid_dim=H)

    apply_fn = make_bayescap_mlp(params)
    mu, alpha, beta = apply_fn(x)
    jax.block_until_ready((mu, alpha, beta))

    mu_r, alpha_r, beta_r = bayescap_mlp_ref(x, params)
    _check(mu, mu_r, "mu")
    _check(alpha, alpha_r, "alpha")
    _check(beta, beta_r, "beta")

    # Ragged-batch check (B % TB != 0): exercises the clipped last tile.
    B2 = 200
    x2 = jax.random.normal(k_x2, (B2, D), jnp.float32)
    apply_ragged = make_bayescap_mlp(params, max_batch_tile=128)
    mu2, alpha2, beta2 = apply_ragged(x2)
    jax.block_until_ready((mu2, alpha2, beta2))
    mu2_r, alpha2_r, beta2_r = bayescap_mlp_ref(x2, params)
    _check(mu2, mu2_r, "mu (ragged)")
    _check(alpha2, alpha2_r, "alpha (ragged)")
    _check(beta2, beta2_r, "beta (ragged)")

    print("KERNEL_OK")
</pallas_src>

<mosaic_0001>
module attributes {stable_mosaic.version = 11 : i64} {
  func.func @bayescap_mlp_kernel(%arg0: i32, %arg1: memref<8x32xf32, #tpu.memory_space<vmem>>, %arg2: memref<32x64xbf16, #tpu.memory_space<vmem>>, %arg3: memref<1x64xf32, #tpu.memory_space<vmem>>, %arg4: memref<64x64xbf16, #tpu.memory_space<vmem>>, %arg5: memref<1x64xf32, #tpu.memory_space<vmem>>, %arg6: memref<64x32xbf16, #tpu.memory_space<vmem>>, %arg7: memref<1x32xf32, #tpu.memory_space<vmem>>, %arg8: memref<32x384xbf16, #tpu.memory_space<vmem>>, %arg9: memref<1x384xf32, #tpu.memory_space<vmem>>, %arg10: memref<3x128x128xbf16, #tpu.memory_space<vmem>>, %arg11: memref<1x384xf32, #tpu.memory_space<vmem>>, %arg12: memref<8x384xf32, #tpu.memory_space<vmem>>) attributes {dimension_semantics = [#tpu.dimension_semantics<parallel>], iteration_bounds = array<i64: 1>, scalar_prefetch = 0 : i64, scratch_operands = 0 : i64, tpu.core_type = #tpu.core_type<tc>, window_params = [{transform_indices = @transform_0, window_bounds = array<i64: 8, 32>}, {pipeline_mode = #tpu.pipeline_mode<synchronous>, transform_indices = @transform_1, window_bounds = array<i64: 32, 64>}, {pipeline_mode = #tpu.pipeline_mode<synchronous>, transform_indices = @transform_2, window_bounds = array<i64: 1, 64>}, {pipeline_mode = #tpu.pipeline_mode<synchronous>, transform_indices = @transform_3, window_bounds = array<i64: 64, 64>}, {pipeline_mode = #tpu.pipeline_mode<synchronous>, transform_indices = @transform_4, window_bounds = array<i64: 1, 64>}, {pipeline_mode = #tpu.pipeline_mode<synchronous>, transform_indices = @transform_5, window_bounds = array<i64: 64, 32>}, {pipeline_mode = #tpu.pipeline_mode<synchronous>, transform_indices = @transform_6, window_bounds = array<i64: 1, 32>}, {pipeline_mode = #tpu.pipeline_mode<synchronous>, transform_indices = @transform_7, window_bounds = array<i64: 32, 384>}, {pipeline_mode = #tpu.pipeline_mode<synchronous>, transform_indices = @transform_8, window_bounds = array<i64: 1, 384>}, {pipeline_mode = #tpu.pipeline_mode<synchronous>, transform_indices = @transform_9, window_bounds = array<i64: 3, 128, 128>}, {pipeline_mode = #tpu.pipeline_mode<synchronous>, transform_indices = @transform_10, window_bounds = array<i64: 1, 384>}, {transform_indices = @transform_11, window_bounds = array<i64: 8, 384>}]} {
    %c0 = arith.constant 0 : index
    %c0_0 = arith.constant 0 : index
    %0 = vector.load %arg1[%c0, %c0_0] : memref<8x32xf32, #tpu.memory_space<vmem>>, vector<8x32xf32>
    %1 = arith.truncf %0 : vector<8x32xf32> to vector<8x32xbf16>
    %c0_1 = arith.constant 0 : index
    %c0_2 = arith.constant 0 : index
    %2 = vector.load %arg2[%c0_1, %c0_2] : memref<32x64xbf16, #tpu.memory_space<vmem>>, vector<32x64xbf16>
    %cst = arith.constant dense<0.000000e+00> : vector<8x64xf32>
    %3 = tpu.matmul %1, %2, %cst {dimension_numbers = #tpu.dot_dimension_numbers<[1], [0], [0], [1], [0, 0, 1, 1], [], []>} : vector<8x32xbf16>, vector<32x64xbf16>, vector<8x64xf32> -> vector<8x64xf32>
    %c0_3 = arith.constant 0 : index
    %c0_4 = arith.constant 0 : index
    %4 = vector.load %arg3[%c0_3, %c0_4] : memref<1x64xf32, #tpu.memory_space<vmem>>, vector<1x64xf32>
    %5 = vector.broadcast %4 : vector<1x64xf32> to vector<8x64xf32>
    %6 = arith.addf %3, %5 : vector<8x64xf32>
    %cst_5 = arith.constant 0.000000e+00 : f32
    %7 = vector.broadcast %cst_5 : f32 to vector<8x64xf32>
    %8 = arith.maximumf %6, %7 : vector<8x64xf32>
    %9 = arith.truncf %8 : vector<8x64xf32> to vector<8x64xbf16>
    %c0_6 = arith.constant 0 : index
    %c0_7 = arith.constant 0 : index
    %10 = vector.load %arg4[%c0_6, %c0_7] : memref<64x64xbf16, #tpu.memory_space<vmem>>, vector<64x64xbf16>
    %cst_8 = arith.constant dense<0.000000e+00> : vector<8x64xf32>
    %11 = tpu.matmul %9, %10, %cst_8 {dimension_numbers = #tpu.dot_dimension_numbers<[1], [0], [0], [1], [0, 0, 1, 1], [], []>} : vector<8x64xbf16>, vector<64x64xbf16>, vector<8x64xf32> -> vector<8x64xf32>
    %c0_9 = arith.constant 0 : index
    %c0_10 = arith.constant 0 : index
    %12 = vector.load %arg5[%c0_9, %c0_10] : memref<1x64xf32, #tpu.memory_space<vmem>>, vector<1x64xf32>
    %13 = vector.broadcast %12 : vector<1x64xf32> to vector<8x64xf32>
    %14 = arith.addf %11, %13 : vector<8x64xf32>
    %cst_11 = arith.constant 0.000000e+00 : f32
    %15 = vector.broadcast %cst_11 : f32 to vector<8x64xf32>
    %16 = arith.maximumf %14, %15 : vector<8x64xf32>
    %17 = arith.truncf %16 : vector<8x64xf32> to vector<8x64xbf16>
    %c0_12 = arith.constant 0 : index
    %c0_13 = arith.constant 0 : index
    %18 = vector.load %arg6[%c0_12, %c0_13] : memref<64x32xbf16, #tpu.memory_space<vmem>>, vector<64x32xbf16>
    %cst_14 = arith.constant dense<0.000000e+00> : vector<8x32xf32>
    %19 = tpu.matmul %17, %18, %cst_14 {dimension_numbers = #tpu.dot_dimension_numbers<[1], [0], [0], [1], [0, 0, 1, 1], [], []>} : vector<8x64xbf16>, vector<64x32xbf16>, vector<8x32xf32> -> vector<8x32xf32>
    %c0_15 = arith.constant 0 : index
    %c0_16 = arith.constant 0 : index
    %20 = vector.load %arg7[%c0_15, %c0_16] : memref<1x32xf32, #tpu.memory_space<vmem>>, vector<1x32xf32>
    %21 = vector.broadcast %20 : vector<1x32xf32> to vector<8x32xf32>
    %22 = arith.addf %19, %21 : vector<8x32xf32>
    %23 = arith.addf %22, %0 : vector<8x32xf32>
    %24 = arith.truncf %23 : vector<8x32xf32> to vector<8x32xbf16>
    %c0_17 = arith.constant 0 : index
    %c0_18 = arith.constant 0 : index
    %25 = vector.load %arg8[%c0_17, %c0_18] : memref<32x384xbf16, #tpu.memory_space<vmem>>, vector<32x384xbf16>
    %cst_19 = arith.constant dense<0.000000e+00> : vector<8x384xf32>
    %26 = tpu.matmul %24, %25, %cst_19 {dimension_numbers = #tpu.dot_dimension_numbers<[1], [0], [0], [1], [0, 0, 1, 1], [], []>} : vector<8x32xbf16>, vector<32x384xbf16>, vector<8x384xf32> -> vector<8x384xf32>
    %c0_20 = arith.constant 0 : index
    %c0_21 = arith.constant 0 : index
    %27 = vector.load %arg9[%c0_20, %c0_21] : memref<1x384xf32, #tpu.memory_space<vmem>>, vector<1x384xf32>
    %28 = vector.broadcast %27 : vector<1x384xf32> to vector<8x384xf32>
    %29 = arith.addf %26, %28 : vector<8x384xf32>
    %cst_22 = arith.constant 0.000000e+00 : f32
    %30 = vector.broadcast %cst_22 : f32 to vector<8x384xf32>
    %31 = arith.maximumf %29, %30 : vector<8x384xf32>
    %32 = arith.truncf %31 : vector<8x384xf32> to vector<8x384xbf16>
    %33 = vector.extract_strided_slice %32 {offsets = [0, 0], sizes = [8, 128], strides = [1, 1]} : vector<8x384xbf16> to vector<8x128xbf16>
    %c0_23 = arith.constant 0 : index
    %c0_24 = arith.constant 0 : index
    %c0_25 = arith.constant 0 : index
    %34 = vector.load %arg10[%c0_23, %c0_24, %c0_25] : memref<3x128x128xbf16, #tpu.memory_space<vmem>>, vector<1x128x128xbf16>
    %35 = vector.shape_cast %34 : vector<1x128x128xbf16> to vector<128x128xbf16>
    %cst_26 = arith.constant dense<0.000000e+00> : vector<8x128xf32>
    %36 = tpu.matmul %33, %35, %cst_26 {dimension_numbers = #tpu.dot_dimension_numbers<[1], [0], [0], [1], [0, 0, 1, 1], [], []>} : vector<8x128xbf16>, vector<128x128xbf16>, vector<8x128xf32> -> vector<8x128xf32>
    %c0_27 = arith.constant 0 : index
    %c0_28 = arith.constant 0 : index
    %37 = vector.load %arg11[%c0_27, %c0_28] : memref<1x384xf32, #tpu.memory_space<vmem>>, vector<1x128xf32>
    %38 = vector.broadcast %37 : vector<1x128xf32> to vector<8x128xf32>
    %39 = arith.addf %36, %38 : vector<8x128xf32>
    %c0_29 = arith.constant 0 : index
    %c0_30 = arith.constant 0 : index
    %40 = vector.load %arg12[%c0_29, %c0_30] : memref<8x384xf32, #tpu.memory_space<vmem>>, vector<8x128xf32>
    tpu.vector_store %arg12[%c0_29, %c0_30], %39 {strides = array<i32>} : memref<8x384xf32, #tpu.memory_space<vmem>>, vector<8x128xf32>,
    %41 = vector.extract_strided_slice %32 {offsets = [0, 128], sizes = [8, 128], strides = [1, 1]} : vector<8x384xbf16> to vector<8x128xbf16>
    %c1 = arith.constant 1 : index
    %c0_31 = arith.constant 0 : index
    %c0_32 = arith.constant 0 : index
    %42 = vector.load %arg10[%c1, %c0_31, %c0_32] : memref<3x128x128xbf16, #tpu.memory_space<vmem>>, vector<1x128x128xbf16>
    %43 = vector.shape_cast %42 : vector<1x128x128xbf16> to vector<128x128xbf16>
    %cst_33 = arith.constant dense<0.000000e+00> : vector<8x128xf32>
    %44 = tpu.matmul %41, %43, %cst_33 {dimension_numbers = #tpu.dot_dimension_numbers<[1], [0], [0], [1], [0, 0, 1, 1], [], []>} : vector<8x128xbf16>, vector<128x128xbf16>, vector<8x128xf32> -> vector<8x128xf32>
    %c0_34 = arith.constant 0 : index
    %c128 = arith.constant 128 : index
    %45 = vector.load %arg11[%c0_34, %c128] : memref<1x384xf32, #tpu.memory_space<vmem>>, vector<1x128xf32>
    %46 = vector.broadcast %45 : vector<1x128xf32> to vector<8x128xf32>
    %47 = arith.addf %44, %46 : vector<8x128xf32>
    %cst_35 = arith.constant 0.000000e+00 : f32
    %48 = vector.broadcast %cst_35 : f32 to vector<8x128xf32>
    %49 = arith.maximumf %47, %48 : vector<8x128xf32>
    %c0_36 = arith.constant 0 : index
    %c128_37 = arith.constant 128 : index
    %50 = vector.load %arg12[%c0_36, %c128_37] : memref<8x384xf32, #tpu.memory_space<vmem>>, vector<8x128xf32>
    tpu.vector_store %arg12[%c0_36, %c128_37], %49 {strides = array<i32>} : memref<8x384xf32, #tpu.memory_space<vmem>>, vector<8x128xf32>,
    %51 = vector.extract_strided_slice %32 {offsets = [0, 256], sizes = [8, 128], strides = [1, 1]} : vector<8x384xbf16> to vector<8x128xbf16>
    %c2 = arith.constant 2 : index
    %c0_38 = arith.constant 0 : index
    %c0_39 = arith.constant 0 : index
    %52 = vector.load %arg10[%c2, %c0_38, %c0_39] : memref<3x128x128xbf16, #tpu.memory_space<vmem>>, vector<1x128x128xbf16>
    %53 = vector.shape_cast %52 : vector<1x128x128xbf16> to vector<128x128xbf16>
    %cst_40 = arith.constant dense<0.000000e+00> : vector<8x128xf32>
    %54 = tpu.matmul %51, %53, %cst_40 {dimension_numbers = #tpu.dot_dimension_numbers<[1], [0], [0], [1], [0, 0, 1, 1], [], []>} : vector<8x128xbf16>, vector<128x128xbf16>, vector<8x128xf32> -> vector<8x128xf32>
    %c0_41 = arith.constant 0 : index
    %c256 = arith.constant 256 : index
    %55 = vector.load %arg11[%c0_41, %c256] : memref<1x384xf32, #tpu.memory_space<vmem>>, vector<1x128xf32>
    %56 = vector.broadcast %55 : vector<1x128xf32> to vector<8x128xf32>
    %57 = arith.addf %54, %56 : vector<8x128xf32>
    %cst_42 = arith.constant 0.000000e+00 : f32
    %58 = vector.broadcast %cst_42 : f32 to vector<8x128xf32>
    %59 = arith.maximumf %57, %58 : vector<8x128xf32>
    %c0_43 = arith.constant 0 : index
    %c256_44 = arith.constant 256 : index
    %60 = vector.load %arg12[%c0_43, %c256_44] : memref<8x384xf32, #tpu.memory_space<vmem>>, vector<8x128xf32>
    tpu.vector_store %arg12[%c0_43, %c256_44], %59 {strides = array<i32>} : memref<8x384xf32, #tpu.memory_space<vmem>>, vector<8x128xf32>,
    return
  }
  func.func @transform_0(%arg0: i32) -> (i32, i32) {
    %c0_i32 = arith.constant 0 : i32
    %c0_i32_0 = arith.constant 0 : i32
    return %arg0, %c0_i32 : i32, i32
  }
  func.func @transform_1(%arg0: i32) -> (i32, i32) {
    %c0_i32 = arith.constant 0 : i32
    %c0_i32_0 = arith.constant 0 : i32
    %c0_i32_1 = arith.constant 0 : i32
    return %c0_i32, %c0_i32_0 : i32, i32
  }
  func.func @transform_2(%arg0: i32) -> (i32, i32) {
    %c0_i32 = arith.constant 0 : i32
    %c0_i32_0 = arith.constant 0 : i32
    %c0_i32_1 = arith.constant 0 : i32
    return %c0_i32, %c0_i32_0 : i32, i32
  }
  func.func @transform_3(%arg0: i32) -> (i32, i32) {
    %c0_i32 = arith.constant 0 : i32
    %c0_i32_0 = arith.constant 0 : i32
    %c0_i32_1 = arith.constant 0 : i32
    return %c0_i32, %c0_i32_0 : i32, i32
  }
  func.func @transform_4(%arg0: i32) -> (i32, i32) {
    %c0_i32 = arith.constant 0 : i32
    %c0_i32_0 = arith.constant 0 : i32
    %c0_i32_1 = arith.constant 0 : i32
    return %c0_i32, %c0_i32_0 : i32, i32
  }
  func.func @transform_5(%arg0: i32) -> (i32, i32) {
    %c0_i32 = arith.constant 0 : i32
    %c0_i32_0 = arith.constant 0 : i32
    %c0_i32_1 = arith.constant 0 : i32
    return %c0_i32, %c0_i32_0 : i32, i32
  }
  func.func @transform_6(%arg0: i32) -> (i32, i32) {
    %c0_i32 = arith.constant 0 : i32
    %c0_i32_0 = arith.constant 0 : i32
    %c0_i32_1 = arith.constant 0 : i32
    return %c0_i32, %c0_i32_0 : i32, i32
  }
  func.func @transform_7(%arg0: i32) -> (i32, i32) {
    %c0_i32 = arith.constant 0 : i32
    %c0_i32_0 = arith.constant 0 : i32
    %c0_i32_1 = arith.constant 0 : i32
    return %c0_i32, %c0_i32_0 : i32, i32
  }
  func.func @transform_8(%arg0: i32) -> (i32, i32) {
    %c0_i32 = arith.constant 0 : i32
    %c0_i32_0 = arith.constant 0 : i32
    %c0_i32_1 = arith.constant 0 : i32
    return %c0_i32, %c0_i32_0 : i32, i32
  }
  func.func @transform_9(%arg0: i32) -> (i32, i32, i32) {
    %c0_i32 = arith.constant 0 : i32
    %c0_i32_0 = arith.constant 0 : i32
    %c0_i32_1 = arith.constant 0 : i32
    %c0_i32_2 = arith.constant 0 : i32
    return %c0_i32, %c0_i32_0, %c0_i32_1 : i32, i32, i32
  }
  func.func @transform_10(%arg0: i32) -> (i32, i32) {
    %c0_i32 = arith.constant 0 : i32
    %c0_i32_0 = arith.constant 0 : i32
    %c0_i32_1 = arith.constant 0 : i32
    return %c0_i32, %c0_i32_0 : i32, i32
  }
  func.func @transform_11(%arg0: i32) -> (i32, i32) {
    %c0_i32 = arith.constant 0 : i32
    %c0_i32_0 = arith.constant 0 : i32
    return %arg0, %c0_i32 : i32, i32
  }
}

module attributes {stable_mosaic.version = 11 : i64} {
  func.func @bayescap_mlp_kernel(%arg0: i32, %arg1: memref<512x32xf32, #tpu.memory_space<vmem>>, %arg2: memref<32x64xbf16, #tpu.memory_space<vmem>>, %arg3: memref<1x64xf32, #tpu.memory_space<vmem>>, %arg4: memref<64x64xbf16, #tpu.memory_space<vmem>>, %arg5: memref<1x64xf32, #tpu.memory_space<vmem>>, %arg6: memref<64x32xbf16, #tpu.memory_space<vmem>>, %arg7: memref<1x32xf32, #tpu.memory_space<vmem>>, %arg8: memref<32x384xbf16, #tpu.memory_space<vmem>>, %arg9: memref<1x384xf32, #tpu.memory_space<vmem>>, %arg10: memref<3x128x128xbf16, #tpu.memory_space<vmem>>, %arg11: memref<1x384xf32, #tpu.memory_space<vmem>>, %arg12: memref<512x384xf32, #tpu.memory_space<vmem>>) attributes {dimension_semantics = [#tpu.dimension_semantics<parallel>], iteration_bounds = array<i64: 1>, scalar_prefetch = 0 : i64, scratch_operands = 0 : i64, tpu.core_type = #tpu.core_type<tc>, window_params = [{transform_indices = @transform_0, window_bounds = array<i64: 512, 32>}, {pipeline_mode = #tpu.pipeline_mode<synchronous>, transform_indices = @transform_1, window_bounds = array<i64: 32, 64>}, {pipeline_mode = #tpu.pipeline_mode<synchronous>, transform_indices = @transform_2, window_bounds = array<i64: 1, 64>}, {pipeline_mode = #tpu.pipeline_mode<synchronous>, transform_indices = @transform_3, window_bounds = array<i64: 64, 64>}, {pipeline_mode = #tpu.pipeline_mode<synchronous>, transform_indices = @transform_4, window_bounds = array<i64: 1, 64>}, {pipeline_mode = #tpu.pipeline_mode<synchronous>, transform_indices = @transform_5, window_bounds = array<i64: 64, 32>}, {pipeline_mode = #tpu.pipeline_mode<synchronous>, transform_indices = @transform_6, window_bounds = array<i64: 1, 32>}, {pipeline_mode = #tpu.pipeline_mode<synchronous>, transform_indices = @transform_7, window_bounds = array<i64: 32, 384>}, {pipeline_mode = #tpu.pipeline_mode<synchronous>, transform_indices = @transform_8, window_bounds = array<i64: 1, 384>}, {pipeline_mode = #tpu.pipeline_mode<synchronous>, transform_indices = @transform_9, window_bounds = array<i64: 3, 128, 128>}, {pipeline_mode = #tpu.pipeline_mode<synchronous>, transform_indices = @transform_10, window_bounds = array<i64: 1, 384>}, {transform_indices = @transform_11, window_bounds = array<i64: 512, 384>}]} {
    %c0 = arith.constant 0 : index
    %c0_0 = arith.constant 0 : index
    %0 = vector.load %arg1[%c0, %c0_0] : memref<512x32xf32, #tpu.memory_space<vmem>>, vector<512x32xf32>
    %1 = arith.truncf %0 : vector<512x32xf32> to vector<512x32xbf16>
    %c0_1 = arith.constant 0 : index
    %c0_2 = arith.constant 0 : index
    %2 = vector.load %arg2[%c0_1, %c0_2] : memref<32x64xbf16, #tpu.memory_space<vmem>>, vector<32x64xbf16>
    %cst = arith.constant dense<0.000000e+00> : vector<512x64xf32>
    %3 = tpu.matmul %1, %2, %cst {dimension_numbers = #tpu.dot_dimension_numbers<[1], [0], [0], [1], [0, 0, 1, 1], [], []>} : vector<512x32xbf16>, vector<32x64xbf16>, vector<512x64xf32> -> vector<512x64xf32>
    %c0_3 = arith.constant 0 : index
    %c0_4 = arith.constant 0 : index
    %4 = vector.load %arg3[%c0_3, %c0_4] : memref<1x64xf32, #tpu.memory_space<vmem>>, vector<1x64xf32>
    %5 = vector.broadcast %4 : vector<1x64xf32> to vector<512x64xf32>
    %6 = arith.addf %3, %5 : vector<512x64xf32>
    %cst_5 = arith.constant 0.000000e+00 : f32
    %7 = vector.broadcast %cst_5 : f32 to vector<512x64xf32>
    %8 = arith.maximumf %6, %7 : vector<512x64xf32>
    %9 = arith.truncf %8 : vector<512x64xf32> to vector<512x64xbf16>
    %c0_6 = arith.constant 0 : index
    %c0_7 = arith.constant 0 : index
    %10 = vector.load %arg4[%c0_6, %c0_7] : memref<64x64xbf16, #tpu.memory_space<vmem>>, vector<64x64xbf16>
    %cst_8 = arith.constant dense<0.000000e+00> : vector<512x64xf32>
    %11 = tpu.matmul %9, %10, %cst_8 {dimension_numbers = #tpu.dot_dimension_numbers<[1], [0], [0], [1], [0, 0, 1, 1], [], []>} : vector<512x64xbf16>, vector<64x64xbf16>, vector<512x64xf32> -> vector<512x64xf32>
    %c0_9 = arith.constant 0 : index
    %c0_10 = arith.constant 0 : index
    %12 = vector.load %arg5[%c0_9, %c0_10] : memref<1x64xf32, #tpu.memory_space<vmem>>, vector<1x64xf32>
    %13 = vector.broadcast %12 : vector<1x64xf32> to vector<512x64xf32>
    %14 = arith.addf %11, %13 : vector<512x64xf32>
    %cst_11 = arith.constant 0.000000e+00 : f32
    %15 = vector.broadcast %cst_11 : f32 to vector<512x64xf32>
    %16 = arith.maximumf %14, %15 : vector<512x64xf32>
    %17 = arith.truncf %16 : vector<512x64xf32> to vector<512x64xbf16>
    %c0_12 = arith.constant 0 : index
    %c0_13 = arith.constant 0 : index
    %18 = vector.load %arg6[%c0_12, %c0_13] : memref<64x32xbf16, #tpu.memory_space<vmem>>, vector<64x32xbf16>
    %cst_14 = arith.constant dense<0.000000e+00> : vector<512x32xf32>
    %19 = tpu.matmul %17, %18, %cst_14 {dimension_numbers = #tpu.dot_dimension_numbers<[1], [0], [0], [1], [0, 0, 1, 1], [], []>} : vector<512x64xbf16>, vector<64x32xbf16>, vector<512x32xf32> -> vector<512x32xf32>
    %c0_15 = arith.constant 0 : index
    %c0_16 = arith.constant 0 : index
    %20 = vector.load %arg7[%c0_15, %c0_16] : memref<1x32xf32, #tpu.memory_space<vmem>>, vector<1x32xf32>
    %21 = vector.broadcast %20 : vector<1x32xf32> to vector<512x32xf32>
    %22 = arith.addf %19, %21 : vector<512x32xf32>
    %23 = arith.addf %22, %0 : vector<512x32xf32>
    %24 = arith.truncf %23 : vector<512x32xf32> to vector<512x32xbf16>
    %c0_17 = arith.constant 0 : index
    %c0_18 = arith.constant 0 : index
    %25 = vector.load %arg8[%c0_17, %c0_18] : memref<32x384xbf16, #tpu.memory_space<vmem>>, vector<32x384xbf16>
    %cst_19 = arith.constant dense<0.000000e+00> : vector<512x384xf32>
    %26 = tpu.matmul %24, %25, %cst_19 {dimension_numbers = #tpu.dot_dimension_numbers<[1], [0], [0], [1], [0, 0, 1, 1], [], []>} : vector<512x32xbf16>, vector<32x384xbf16>, vector<512x384xf32> -> vector<512x384xf32>
    %c0_20 = arith.constant 0 : index
    %c0_21 = arith.constant 0 : index
    %27 = vector.load %arg9[%c0_20, %c0_21] : memref<1x384xf32, #tpu.memory_space<vmem>>, vector<1x384xf32>
    %28 = vector.broadcast %27 : vector<1x384xf32> to vector<512x384xf32>
    %29 = arith.addf %26, %28 : vector<512x384xf32>
    %cst_22 = arith.constant 0.000000e+00 : f32
    %30 = vector.broadcast %cst_22 : f32 to vector<512x384xf32>
    %31 = arith.maximumf %29, %30 : vector<512x384xf32>
    %32 = arith.truncf %31 : vector<512x384xf32> to vector<512x384xbf16>
    %33 = vector.extract_strided_slice %32 {offsets = [0, 0], sizes = [512, 128], strides = [1, 1]} : vector<512x384xbf16> to vector<512x128xbf16>
    %c0_23 = arith.constant 0 : index
    %c0_24 = arith.constant 0 : index
    %c0_25 = arith.constant 0 : index
    %34 = vector.load %arg10[%c0_23, %c0_24, %c0_25] : memref<3x128x128xbf16, #tpu.memory_space<vmem>>, vector<1x128x128xbf16>
    %35 = vector.shape_cast %34 : vector<1x128x128xbf16> to vector<128x128xbf16>
    %cst_26 = arith.constant dense<0.000000e+00> : vector<512x128xf32>
    %36 = tpu.matmul %33, %35, %cst_26 {dimension_numbers = #tpu.dot_dimension_numbers<[1], [0], [0], [1], [0, 0, 1, 1], [], []>} : vector<512x128xbf16>, vector<128x128xbf16>, vector<512x128xf32> -> vector<512x128xf32>
    %c0_27 = arith.constant 0 : index
    %c0_28 = arith.constant 0 : index
    %37 = vector.load %arg11[%c0_27, %c0_28] : memref<1x384xf32, #tpu.memory_space<vmem>>, vector<1x128xf32>
    %38 = vector.broadcast %37 : vector<1x128xf32> to vector<512x128xf32>
    %39 = arith.addf %36, %38 : vector<512x128xf32>
    %c0_29 = arith.constant 0 : index
    %c0_30 = arith.constant 0 : index
    %40 = vector.load %arg12[%c0_29, %c0_30] : memref<512x384xf32, #tpu.memory_space<vmem>>, vector<512x128xf32>
    tpu.vector_store %arg12[%c0_29, %c0_30], %39 {strides = array<i32>} : memref<512x384xf32, #tpu.memory_space<vmem>>, vector<512x128xf32>,
    %41 = vector.extract_strided_slice %32 {offsets = [0, 128], sizes = [512, 128], strides = [1, 1]} : vector<512x384xbf16> to vector<512x128xbf16>
    %c1 = arith.constant 1 : index
    %c0_31 = arith.constant 0 : index
    %c0_32 = arith.constant 0 : index
    %42 = vector.load %arg10[%c1, %c0_31, %c0_32] : memref<3x128x128xbf16, #tpu.memory_space<vmem>>, vector<1x128x128xbf16>
    %43 = vector.shape_cast %42 : vector<1x128x128xbf16> to vector<128x128xbf16>
    %cst_33 = arith.constant dense<0.000000e+00> : vector<512x128xf32>
    %44 = tpu.matmul %41, %43, %cst_33 {dimension_numbers = #tpu.dot_dimension_numbers<[1], [0], [0], [1], [0, 0, 1, 1], [], []>} : vector<512x128xbf16>, vector<128x128xbf16>, vector<512x128xf32> -> vector<512x128xf32>
    %c0_34 = arith.constant 0 : index
    %c128 = arith.constant 128 : index
    %45 = vector.load %arg11[%c0_34, %c128] : memref<1x384xf32, #tpu.memory_space<vmem>>, vector<1x128xf32>
    %46 = vector.broadcast %45 : vector<1x128xf32> to vector<512x128xf32>
    %47 = arith.addf %44, %46 : vector<512x128xf32>
    %cst_35 = arith.constant 0.000000e+00 : f32
    %48 = vector.broadcast %cst_35 : f32 to vector<512x128xf32>
    %49 = arith.maximumf %47, %48 : vector<512x128xf32>
    %c0_36 = arith.constant 0 : index
    %c128_37 = arith.constant 128 : index
    %50 = vector.load %arg12[%c0_36, %c128_37] : memref<512x384xf32, #tpu.memory_space<vmem>>, vector<512x128xf32>
    tpu.vector_store %arg12[%c0_36, %c128_37], %49 {strides = array<i32>} : memref<512x384xf32, #tpu.memory_space<vmem>>, vector<512x128xf32>,
    %51 = vector.extract_strided_slice %32 {offsets = [0, 256], sizes = [512, 128], strides = [1, 1]} : vector<512x384xbf16> to vector<512x128xbf16>
    %c2 = arith.constant 2 : index
    %c0_38 = arith.constant 0 : index
    %c0_39 = arith.constant 0 : index
    %52 = vector.load %arg10[%c2, %c0_38, %c0_39] : memref<3x128x128xbf16, #tpu.memory_space<vmem>>, vector<1x128x128xbf16>
    %53 = vector.shape_cast %52 : vector<1x128x128xbf16> to vector<128x128xbf16>
    %cst_40 = arith.constant dense<0.000000e+00> : vector<512x128xf32>
    %54 = tpu.matmul %51, %53, %cst_40 {dimension_numbers = #tpu.dot_dimension_numbers<[1], [0], [0], [1], [0, 0, 1, 1], [], []>} : vector<512x128xbf16>, vector<128x128xbf16>, vector<512x128xf32> -> vector<512x128xf32>
    %c0_41 = arith.constant 0 : index
    %c256 = arith.constant 256 : index
    %55 = vector.load %arg11[%c0_41, %c256] : memref<1x384xf32, #tpu.memory_space<vmem>>, vector<1x128xf32>
    %56 = vector.broadcast %55 : vector<1x128xf32> to vector<512x128xf32>
    %57 = arith.addf %54, %56 : vector<512x128xf32>
    %cst_42 = arith.constant 0.000000e+00 : f32
    %58 = vector.broadcast %cst_42 : f32 to vector<512x128xf32>
    %59 = arith.maximumf %57, %58 : vector<512x128xf32>
    %c0_43 = arith.constant 0 : index
    %c256_44 = arith.constant 256 : index
    %60 = vector.load %arg12[%c0_43, %c256_44] : memref<512x384xf32, #tpu.memory_space<vmem>>, vector<512x128xf32>
    tpu.vector_store %arg12[%c0_43, %c256_44], %59 {strides = array<i32>} : memref<512x384xf32, #tpu.memory_space<vmem>>, vector<512x128xf32>,
    return
  }
  func.func @transform_0(%arg0: i32) -> (i32, i32) {
    %c0_i32 = arith.constant 0 : i32
    %c0_i32_0 = arith.constant 0 : i32
    return %arg0, %c0_i32 : i32, i32
  }
  func.func @transform_1(%arg0: i32) -> (i32, i32) {
    %c0_i32 = arith.constant 0 : i32
    %c0_i32_0 = arith.constant 0 : i32
    %c0_i32_1 = arith.constant 0 : i32
    return %c0_i32, %c0_i32_0 : i32, i32
  }
  func.func @transform_2(%arg0: i32) -> (i32, i32) {
    %c0_i32 = arith.constant 0 : i32
    %c0_i32_0 = arith.constant 0 : i32
    %c0_i32_1 = arith.constant 0 : i32
    return %c0_i32, %c0_i32_0 : i32, i32
  }
  func.func @transform_3(%arg0: i32) -> (i32, i32) {
    %c0_i32 = arith.constant 0 : i32
    %c0_i32_0 = arith.constant 0 : i32
    %c0_i32_1 = arith.constant 0 : i32
    return %c0_i32, %c0_i32_0 : i32, i32
  }
  func.func @transform_4(%arg0: i32) -> (i32, i32) {
    %c0_i32 = arith.constant 0 : i32
    %c0_i32_0 = arith.constant 0 : i32
    %c0_i32_1 = arith.constant 0 : i32
    return %c0_i32, %c0_i32_0 : i32, i32
  }
  func.func @transform_5(%arg0: i32) -> (i32, i32) {
    %c0_i32 = arith.constant 0 : i32
    %c0_i32_0 = arith.constant 0 : i32
    %c0_i32_1 = arith.constant 0 : i32
    return %c0_i32, %c0_i32_0 : i32, i32
  }
  func.func @transform_6(%arg0: i32) -> (i32, i32) {
    %c0_i32 = arith.constant 0 : i32
    %c0_i32_0 = arith.constant 0 : i32
    %c0_i32_1 = arith.constant 0 : i32
    return %c0_i32, %c0_i32_0 : i32, i32
  }
  func.func @transform_7(%arg0: i32) -> (i32, i32) {
    %c0_i32 = arith.constant 0 : i32
    %c0_i32_0 = arith.constant 0 : i32
    %c0_i32_1 = arith.constant 0 : i32
    return %c0_i32, %c0_i32_0 : i32, i32
  }
  func.func @transform_8(%arg0: i32) -> (i32, i32) {
    %c0_i32 = arith.constant 0 : i32
    %c0_i32_0 = arith.constant 0 : i32
    %c0_i32_1 = arith.constant 0 : i32
    return %c0_i32, %c0_i32_0 : i32, i32
  }
  func.func @transform_9(%arg0: i32) -> (i32, i32, i32) {
    %c0_i32 = arith.constant 0 : i32
    %c0_i32_0 = arith.constant 0 : i32
    %c0_i32_1 = arith.constant 0 : i32
    %c0_i32_2 = arith.constant 0 : i32
    return %c0_i32, %c0_i32_0, %c0_i32_1 : i32, i32, i32
  }
  func.func @transform_10(%arg0: i32) -> (i32, i32) {
    %c0_i32 = arith.constant 0 : i32
    %c0_i32_0 = arith.constant 0 : i32
    %c0_i32_1 = arith.constant 0 : i32
    return %c0_i32, %c0_i32_0 : i32, i32
  }
  func.func @transform_11(%arg0: i32) -> (i32, i32) {
    %c0_i32 = arith.constant 0 : i32
    %c0_i32_0 = arith.constant 0 : i32
    return %arg0, %c0_i32 : i32, i32
  }
}

</mosaic_0001>

<llo_original>
// kernel: _apply.1
$region0: #{_apply.1}
  #allocation0 [shape = 'u32[]', space=smem, size = 0x4, offset = 0x4, fixed_abs, tag = 'smem constant byte address 0x4 - core index']
  #allocation1 [shape = 'u32[144,128]{1,0:T(1,128)}', space=vmem, size = 0x12000, scoped, tag = 'internal scratch']
  %s0 = inlined_call_operand.vmem [shape: f32[8,32], index: 0, kind: input, shape index: {}]
  %s1 = inlined_call_operand.vmem [shape: bf16[32,64], index: 1, kind: input, shape index: {}]
  %s2 = inlined_call_operand.hbm [shape: f32[1,64], index: 2, kind: input, shape index: {}]
  %s3 = inlined_call_operand.hbm [shape: bf16[64,64], index: 3, kind: input, shape index: {}]
  %s4 = inlined_call_operand.hbm [shape: f32[1,64], index: 4, kind: input, shape index: {}]
  %s5 = inlined_call_operand.vmem [shape: bf16[64,32], index: 5, kind: input, shape index: {}]
  %s6 = inlined_call_operand.hbm [shape: f32[1,32], index: 6, kind: input, shape index: {}]
  %s7 = inlined_call_operand.vmem [shape: bf16[32,384], index: 7, kind: input, shape index: {}]
  %s8 = inlined_call_operand.vmem [shape: f32[1,384], index: 8, kind: input, shape index: {}]
  %s9 = inlined_call_operand.hbm [shape: bf16[3,128,128], index: 9, kind: input, shape index: {}]
  %s10 = inlined_call_operand.vmem [shape: f32[1,384], index: 10, kind: input, shape index: {}]
  %s11 = inlined_call_operand.vmem [shape: f32[8,384], index: 11, kind: output, shape index: {}]
  %s12 = sld [smem:[#allocation0]]
  $region74: #{_apply.1} parent=0
    _
  %s14 = ssub.s32 1, %s12
  %s15 = scalar_select 0, %s14, %s12
  $region1: #{_apply.1} parent=0
    #allocation2 [shape = 'u8[512]{0}', space=vmem, size = 0x400, scoped, tag = 'input window, operand 2, single buffered']
    #allocation3 [shape = 's32[1]{0}', space=sflag, size = 0x4, scoped, tag = 'scoped memory for _apply.1']
    #allocation4 [shape = 'u8[16384]{0}', space=vmem, size = 0x4000, scoped, tag = 'input window, operand 3, single buffered']
    #allocation5 [shape = 's32[1]{0}', space=sflag, size = 0x4, scoped, tag = 'scoped memory for _apply.1']
    #allocation6 [shape = 'u8[512]{0}', space=vmem, size = 0x400, scoped, tag = 'input window, operand 4, single buffered']
    #allocation7 [shape = 'u8[512]{0}', space=vmem, size = 0x400, scoped, tag = 'input window, operand 6, single buffered']
    #allocation8 [shape = 's32[1]{0}', space=sflag, size = 0x4, scoped, tag = 'scoped memory for _apply.1']
    #allocation9 [shape = 'u8[98304]{0}', space=vmem, size = 0x18000, scoped, tag = 'input window, operand 9, single buffered']
    %16 = vsyncpa [#allocation3], 0
    %17 = vsyncpa [#allocation5], 0
    %18 = vsyncpa [#allocation8], 0
    // Predicated region
    $region2: #{_apply.1} parent=1 // pred_check
      _
    $region3: #{_apply.1} parent=1 // pred_check_branch
      %20 = sbr.rel (0) target = $region5
    $region4: #{_apply.1} parent=1 // pred_region
      _
    $region5: #{_apply.1} parent=1 // pred_fallthru
      _
    // Predicated region
    $region6: #{_apply.1} parent=1 // pred_check
      _
    $region7: #{_apply.1} parent=1 // pred_check_branch
      %22 = sbr.rel (0) target = $region9
    $region8: #{_apply.1} parent=1 // pred_region
      _
    $region9: #{_apply.1} parent=1 // pred_fallthru
      _
    // Predicated region
    $region10: #{_apply.1} parent=1 // pred_check
      _
    $region11: #{_apply.1} parent=1 // pred_check_branch
      %24 = sbr.rel (0) target = $region13
    $region12: #{_apply.1} parent=1 // pred_region
      %s26 = ssub.s32 16, 16
      %27 = vsyncadd [#allocation3], %s26
      %s29 = sshll.u32 [#allocation2], 4
      %s30 = int_to_ptr.vmem [resolvable:$true] %s29
      %32 = dma.hbm_to_vmem [thread:$0]  %s2, 16, %s30, [#allocation3]
    $region13: #{_apply.1} parent=1 // pred_fallthru
      _
    // Predicated region
    $region14: #{_apply.1} parent=1 // pred_check
      _
    $region15: #{_apply.1} parent=1 // pred_check_branch
      %34 = sbr.rel (0) target = $region17
    $region16: #{_apply.1} parent=1 // pred_region
      %s36 = ssub.s32 512, 512
      %37 = vsyncadd [#allocation5], %s36
      %s38 = sshll.u32 [#allocation4], 4
      %s39 = int_to_ptr.vmem [resolvable:$true] %s38
      %44 = dma.hbm_to_vmem [thread:$0]  %s3, 512, %s39, [#allocation5], 64, 64, 4
    $region17: #{_apply.1} parent=1 // pred_fallthru
      _
    // Predicated region
    $region18: #{_apply.1} parent=1 // pred_check
      _
    $region19: #{_apply.1} parent=1 // pred_check_branch
      %46 = sbr.rel (0) target = $region21
    $region20: #{_apply.1} parent=1 // pred_region
      %s48 = ssub.s32 16, 16
      %49 = vsyncadd [#allocation5], %s48
      %s51 = sshll.u32 [#allocation6], 4
      %s52 = int_to_ptr.vmem [resolvable:$true] %s51
      %54 = dma.hbm_to_vmem [thread:$0]  %s4, 16, %s52, [#allocation5]
    $region21: #{_apply.1} parent=1 // pred_fallthru
      _
    // Predicated region
    $region22: #{_apply.1} parent=1 // pred_check
      _
    $region23: #{_apply.1} parent=1 // pred_check_branch
      %56 = sbr.rel (0) target = $region25
    $region24: #{_apply.1} parent=1 // pred_region
      _
    $region25: #{_apply.1} parent=1 // pred_fallthru
      _
    // Predicated region
    $region26: #{_apply.1} parent=1 // pred_check
      _
    $region27: #{_apply.1} parent=1 // pred_check_branch
      %58 = sbr.rel (0) target = $region29
    $region28: #{_apply.1} parent=1 // pred_region
      %s60 = ssub.s32 16, 16
      %61 = vsyncadd [#allocation8], %s60
      %s63 = sshll.u32 [#allocation7], 4
      %s64 = int_to_ptr.vmem [resolvable:$true] %s63
      %66 = dma.hbm_to_vmem [thread:$0]  %s6, 16, %s64, [#allocation8]
    $region29: #{_apply.1} parent=1 // pred_fallthru
      _
    // Predicated region
    $region30: #{_apply.1} parent=1 // pred_check
      _
    $region31: #{_apply.1} parent=1 // pred_check_branch
      %68 = sbr.rel (0) target = $region33
    $region32: #{_apply.1} parent=1 // pred_region
      _
    $region33: #{_apply.1} parent=1 // pred_fallthru
      _
    // Predicated region
    $region34: #{_apply.1} parent=1 // pred_check
      _
    $region35: #{_apply.1} parent=1 // pred_check_branch
      %70 = sbr.rel (0) target = $region37
    $region36: #{_apply.1} parent=1 // pred_region
      _
    $region37: #{_apply.1} parent=1 // pred_fallthru
      _
    // Predicated region
    $region38: #{_apply.1} parent=1 // pred_check
      _
    $region39: #{_apply.1} parent=1 // pred_check_branch
      %72 = sbr.rel (0) target = $region41
    $region40: #{_apply.1} parent=1 // pred_region
      %s74 = ssub.s32 3072, 3072
      %75 = vsyncadd [#allocation8], %s74
      %s76 = sshll.u32 [#allocation9], 4
      %s77 = int_to_ptr.vmem [resolvable:$true] %s76
      %82 = dma.hbm_to_vmem [thread:$0]  %s9, 3072, %s77, [#allocation8], 64, 64, 4
    $region41: #{_apply.1} parent=1 // pred_fallthru
      _
    // Predicated region
    $region42: #{_apply.1} parent=1 // pred_check
      _
    $region43: #{_apply.1} parent=1 // pred_check_branch
      %84 = sbr.rel (0) target = $region45
    $region44: #{_apply.1} parent=1 // pred_region
      _
    $region45: #{_apply.1} parent=1 // pred_fallthru
      _
    // Predicated region
    $region46: #{_apply.1} parent=1 // pred_check
      _
    $region47: #{_apply.1} parent=1 // pred_check_branch
      %86 = sbr.rel (0) target = $region49
    $region48: #{_apply.1} parent=1 // pred_region
      %87 = dma.done [#allocation3], 16
    $region49: #{_apply.1} parent=1 // pred_fallthru
      _
    // Predicated region
    $region50: #{_apply.1} parent=1 // pred_check
      _
    $region51: #{_apply.1} parent=1 // pred_check_branch
      %89 = sbr.rel (0) target = $region53
    $region52: #{_apply.1} parent=1 // pred_region
      %90 = dma.done [#allocation5], 512
    $region53: #{_apply.1} parent=1 // pred_fallthru
      _
    // Predicated region
    $region54: #{_apply.1} parent=1 // pred_check
      _
    $region55: #{_apply.1} parent=1 // pred_check_branch
      %92 = sbr.rel (0) target = $region57
    $region56: #{_apply.1} parent=1 // pred_region
      %93 = dma.done [#allocation5], 16
    $region57: #{_apply.1} parent=1 // pred_fallthru
      _
    // Predicated region
    $region58: #{_apply.1} parent=1 // pred_check
      _
    $region59: #{_apply.1} parent=1 // pred_check_branch
      %95 = sbr.rel (0) target = $region61
    $region60: #{_apply.1} parent=1 // pred_region
      %96 = dma.done [#allocation8], 16
    $region61: #{_apply.1} parent=1 // pred_fallthru
      _
    // Predicated region
    $region62: #{_apply.1} parent=1 // pred_check
      _
    $region63: #{_apply.1} parent=1 // pred_check_branch
      %98 = sbr.rel (0) target = $region65
    $region64: #{_apply.1} parent=1 // pred_region
      %99 = dma.done [#allocation8], 3072
    $region65: #{_apply.1} parent=1 // pred_fallthru
      _
    %v101 = vld [vmem:[%s0] sm:$0xff]
    %v102 = vpack.c.bf16 %v101, %v101
    %v103 = vld [vmem:[%s1] sm:$0xf]
    %v104 = vld [vmem:[%s1 + $0x4] sm:$0xf]
    %v105 = vld [vmem:[%s1 + $0x8] sm:$0xf]
    %v106 = vld [vmem:[%s1 + $0xc] sm:$0xf]
    %v107 = vld [vmem:[#allocation2] sm:$0x1]
    %v109 = vlaneseq
    %v110 = vshrl.u32 %v109, 7
    %v111 = vsub.s32 0, %v110
    %v112 = vrot.slane %v107, %v111
    %v118 = vunpack.c.l.b16 %v103
    %v119 = vunpack.c.l.b16 %v104
    %v120 = vunpack.c.l.b16 %v105
    %v121 = vunpack.c.l.b16 %v106
    %v122 = vpack.c.b16 %v119, %v118
    %v123 = vpack.c.b16 %v121, %v120
    %vm126 = vcmask 261120
    %v128 = vsel %vm126, %v102, 0
    %130 = vmatprep.subr.bf16.mxu0 0
    %131 = vmatpush1.bf16.msra.mxu0 %v122
    %132 = vmatprep.subr.bf16.mxu0 0
    %133 = vmatpush1.bf16.msra.mxu0 %v123
    %134 = vmatprep.subr.bf16.mxu0 0
    %135 = vmatpush1.bf16.msra.mxu0 0
    %136 = vmatprep.subr.bf16.mxu0 0
    %137 = vmatpush1.bf16.msra.mxu0 0
    %138 = vmatprep.subr.bf16.mxu0 0
    %139 = vmatpush1.bf16.msra.mxu0 0
    %140 = vmatprep.subr.bf16.mxu0 0
    %141 = vmatpush1.bf16.msra.mxu0 0
    %142 = vmatprep.subr.bf16.mxu0 0
    %143 = vmatpush1.bf16.msra.mxu0 0
    %144 = vmatprep.subr.bf16.mxu0 0
    %145 = vmatpush1.bf16.msra.mxu0 0
    %146 = vmatprep.subr.bf16.mxu0 0
    %147 = vmatpush1.bf16.msra.mxu0 0
    %148 = vmatprep.subr.bf16.mxu0 0
    %149 = vmatpush1.bf16.msra.mxu0 0
    %150 = vmatprep.subr.bf16.mxu0 0
    %151 = vmatpush1.bf16.msra.mxu0 0
    %152 = vmatprep.subr.bf16.mxu0 0
    %153 = vmatpush1.bf16.msra.mxu0 0
    %154 = vmatprep.subr.bf16.mxu0 0
    %155 = vmatpush1.bf16.msra.mxu0 0
    %156 = vmatprep.subr.bf16.mxu0 0
    %157 = vmatpush1.bf16.msra.mxu0 0
    %158 = vmatprep.subr.bf16.mxu0 0
    %159 = vmatpush1.bf16.msra.mxu0 0
    %160 = vmatprep.subr.bf16.mxu0 0
    %161 = vmatpush1.bf16.msra.mxu0 0
    %162 = vmatprep.mubr.bf16.mxu0 0
    %163 = vmatmul.mubr.bf16.gmra.mrb[0].mxu0 %v128
    %v164 = vpop.f32.mrb[0].mxu0
    %v165 = vadd.f32 %v112, %v164
    %v166 = vpop.f32.mrb[0].mxu0
    %v167 = vpop.f32.mrb[0].mxu0
    %v168 = vpop.f32.mrb[0].mxu0
    %169 = vdwg.mxu0
    %v170 = vmax.f32 %v165, 0.0
    %v171 = vpack.c.bf16 %v170, %v170
    %v172 = vld [vmem:[#allocation4] sm:$0xf]
    %v173 = vld [vmem:[#allocation4 + $0x4] sm:$0xf]
    %v174 = vld [vmem:[#allocation4 + $0x8] sm:$0xf]
    %v175 = vld [vmem:[#allocation4 + $0xc] sm:$0xf]
    %v176 = vld [vmem:[#allocation4 + $0x10] sm:$0xf]
    %v177 = vld [vmem:[#allocation4 + $0x14] sm:$0xf]
    %v178 = vld [vmem:[#allocation4 + $0x18] sm:$0xf]
    %v179 = vld [vmem:[#allocation4 + $0x1c] sm:$0xf]
    %v180 = vld [vmem:[#allocation6] sm:$0x1]
    %v182 = vlaneseq
    %v183 = vshrl.u32 %v182, 7
    %v184 = vsub.s32 0, %v183
    %v185 = vrot.slane %v180, %v184
    %v195 = vunpack.c.l.b16 %v172
    %v196 = vunpack.c.l.b16 %v173
    %v197 = vunpack.c.l.b16 %v174
    %v198 = vunpack.c.l.b16 %v175
    %v199 = vunpack.c.l.b16 %v176
    %v200 = vunpack.c.l.b16 %v177
    %v201 = vunpack.c.l.b16 %v178
    %v202 = vunpack.c.l.b16 %v179
    %v203 = vpack.c.b16 %v196, %v195
    %v204 = vpack.c.b16 %v198, %v197
    %v205 = vpack.c.b16 %v200, %v199
    %v206 = vpack.c.b16 %v202, %v201
    %vm211 = vcmask 523264
    %v213 = vsel %vm211, %v171, 0
    %215 = vmatprep.subr.bf16.mxu0 0
    %216 = vmatpush1.bf16.msra.mxu0 %v203
    %217 = vmatprep.subr.bf16.mxu0 0
    %218 = vmatpush1.bf16.msra.mxu0 %v204
    %219 = vmatprep.subr.bf16.mxu0 0
    %220 = vmatpush1.bf16.msra.mxu0 %v205
    %221 = vmatprep.subr.bf16.mxu0 0
    %222 = vmatpush1.bf16.msra.mxu0 %v206
    %223 = vmatprep.subr.bf16.mxu0 0
    %224 = vmatpush1.bf16.msra.mxu0 0
    %225 = vmatprep.subr.bf16.mxu0 0
    %226 = vmatpush1.bf16.msra.mxu0 0
    %227 = vmatprep.subr.bf16.mxu0 0
    %228 = vmatpush1.bf16.msra.mxu0 0
    %229 = vmatprep.subr.bf16.mxu0 0
    %230 = vmatpush1.bf16.msra.mxu0 0
    %231 = vmatprep.subr.bf16.mxu0 0
    %232 = vmatpush1.bf16.msra.mxu0 0
    %233 = vmatprep.subr.bf16.mxu0 0
    %234 = vmatpush1.bf16.msra.mxu0 0
    %235 = vmatprep.subr.bf16.mxu0 0
    %236 = vmatpush1.bf16.msra.mxu0 0
    %237 = vmatprep.subr.bf16.mxu0 0
    %238 = vmatpush1.bf16.msra.mxu0 0
    %239 = vmatprep.subr.bf16.mxu0 0
    %240 = vmatpush1.bf16.msra.mxu0 0
    %241 = vmatprep.subr.bf16.mxu0 0
    %242 = vmatpush1.bf16.msra.mxu0 0
    %243 = vmatprep.subr.bf16.mxu0 0
    %244 = vmatpush1.bf16.msra.mxu0 0
    %245 = vmatprep.subr.bf16.mxu0 0
    %246 = vmatpush1.bf16.msra.mxu0 0
    %247 = vmatprep.mubr.bf16.mxu0 0
    %248 = vmatmul.mubr.bf16.gmra.mrb[0].mxu0 %v213
    %v249 = vpop.f32.mrb[0].mxu0
    %v250 = vadd.f32 %v185, %v249
    %v251 = vpop.f32.mrb[0].mxu0
    %v252 = vpop.f32.mrb[0].mxu0
    %v253 = vpop.f32.mrb[0].mxu0
    %254 = vdwg.mxu0
    %v255 = vmax.f32 %v250, 0.0
    %v256 = vpack.c.bf16 %v255, %v255
    %v257 = vld [vmem:[%s5] sm:$0xf]
    %v258 = vld [vmem:[%s5 + $0x4] sm:$0xf]
    %v259 = vld [vmem:[%s5 + $0x8] sm:$0xf]
    %v260 = vld [vmem:[%s5 + $0xc] sm:$0xf]
    %v261 = vld [vmem:[%s5 + $0x10] sm:$0xf]
    %v262 = vld [vmem:[%s5 + $0x14] sm:$0xf]
    %v263 = vld [vmem:[%s5 + $0x18] sm:$0xf]
    %v264 = vld [vmem:[%s5 + $0x1c] sm:$0xf]
    %v265 = vld [vmem:[#allocation7] sm:$0x1]
    %v267 = vlaneseq
    %v268 = vshrl.u32 %v267, 7
    %v269 = vsub.s32 0, %v268
    %v270 = vrot.slane %v265, %v269
    %v280 = vunpack.c.l.b16 %v257
    %v281 = vunpack.c.l.b16 %v258
    %v282 = vunpack.c.l.b16 %v259
    %v283 = vunpack.c.l.b16 %v260
    %v284 = vunpack.c.l.b16 %v261
    %v285 = vunpack.c.l.b16 %v262
    %v286 = vunpack.c.l.b16 %v263
    %v287 = vunpack.c.l.b16 %v264
    %v288 = vpack.c.b16 %v281, %v280
    %v289 = vpack.c.b16 %v283, %v282
    %v290 = vpack.c.b16 %v285, %v284
    %v291 = vpack.c.b16 %v287, %v286
    %v297 = vsel %vm211, %v256, 0
    %299 = vmatprep.subr.bf16.mxu0 0
    %300 = vmatpush1.bf16.msra.mxu0 %v288
    %301 = vmatprep.subr.bf16.mxu0 0
    %302 = vmatpush1.bf16.msra.mxu0 %v289
    %303 = vmatprep.subr.bf16.mxu0 0
    %304 = vmatpush1.bf16.msra.mxu0 %v290
    %305 = vmatprep.subr.bf16.mxu0 0
    %306 = vmatpush1.bf16.msra.mxu0 %v291
    %307 = vmatprep.subr.bf16.mxu0 0
    %308 = vmatpush1.bf16.msra.mxu0 0
    %309 = vmatprep.subr.bf16.mxu0 0
    %310 = vmatpush1.bf16.msra.mxu0 0
    %311 = vmatprep.subr.bf16.mxu0 0
    %312 = vmatpush1.bf16.msra.mxu0 0
    %313 = vmatprep.subr.bf16.mxu0 0
    %314 = vmatpush1.bf16.msra.mxu0 0
    %315 = vmatprep.subr.bf16.mxu0 0
    %316 = vmatpush1.bf16.msra.mxu0 0
    %317 = vmatprep.subr.bf16.mxu0 0
    %318 = vmatpush1.bf16.msra.mxu0 0
    %319 = vmatprep.subr.bf16.mxu0 0
    %320 = vmatpush1.bf16.msra.mxu0 0
    %321 = vmatprep.subr.bf16.mxu0 0
    %322 = vmatpush1.bf16.msra.mxu0 0
    %323 = vmatprep.subr.bf16.mxu0 0
    %324 = vmatpush1.bf16.msra.mxu0 0
    %325 = vmatprep.subr.bf16.mxu0 0
    %326 = vmatpush1.bf16.msra.mxu0 0
    %327 = vmatprep.subr.bf16.mxu0 0
    %328 = vmatpush1.bf16.msra.mxu0 0
    %329 = vmatprep.subr.bf16.mxu0 0
    %330 = vmatpush1.bf16.msra.mxu0 0
    %331 = vmatprep.mubr.bf16.mxu0 0
    %332 = vmatmul.mubr.bf16.gmra.mrb[0].mxu0 %v297
    %v333 = vpop.f32.mrb[0].mxu0
    %v334 = vadd.f32 %v270, %v333
    %v335 = vpop.f32.mrb[0].mxu0
    %v336 = vpop.f32.mrb[0].mxu0
    %v337 = vpop.f32.mrb[0].mxu0
    %338 = vdwg.mxu0
    %v339 = vadd.f32 %v334, %v101
    %v340 = vpack.c.bf16 %v339, %v339
    %v341 = vld [vmem:[%s7] sm:$0xff]
    %v342 = vld [vmem:[%s7 + $0x8] sm:$0xf]
    %v343 = vld [vmem:[%s7 + $0xc] sm:$0xff]
    %v344 = vld [vmem:[%s7 + $0x14] sm:$0xf]
    %v345 = vld [vmem:[%s7 + $0x18] sm:$0xff]
    %v346 = vld [vmem:[%s7 + $0x20] sm:$0xf]
    %v347 = vld [vmem:[%s7 + $0x24] sm:$0xff]
    %v348 = vld [vmem:[%s7 + $0x2c] sm:$0xf]
    %v349 = vld [vmem:[%s8] sm:$0x7]
    %v351 = vlaneseq
    %v352 = vshrl.u32 %v351, 7
    %v353 = vsub.s32 0, %v352
    %v354 = vrot.slane %v349, %v353
    %v355 = vlaneseq
    %v356 = vshrl.u32 %v355, 7
    %v357 = vsub.s32 1, %v356
    %v358 = vrot.slane %v349, %v357
    %v359 = vlaneseq
    %v360 = vshrl.u32 %v359, 7
    %v361 = vsub.s32 2, %v360
    %v362 = vrot.slane %v349, %v361
    %v374 = vunpack.c.l.b16 %v341
    %v375 = vunpack.c.h.b16 %v341
    %v376 = vunpack.c.l.b16 %v342
    %v377 = vunpack.c.l.b16 %v343
    %v378 = vunpack.c.h.b16 %v343
    %v379 = vunpack.c.l.b16 %v344
    %v380 = vunpack.c.l.b16 %v345
    %v381 = vunpack.c.h.b16 %v345
    %v382 = vunpack.c.l.b16 %v346
    %v383 = vunpack.c.l.b16 %v347
    %v384 = vunpack.c.h.b16 %v347
    %v385 = vunpack.c.l.b16 %v348
    %v386 = vpack.c.b16 %v377, %v374
    %v387 = vpack.c.b16 %v378, %v375
    %v388 = vpack.c.b16 %v379, %v376
    %v389 = vpack.c.b16 %v383, %v380
    %v390 = vpack.c.b16 %v384, %v381
    %v391 = vpack.c.b16 %v385, %v382
    %v399 = vsel %vm126, %v340, 0
    %401 = vmatprep.subr.bf16.mxu0 %v387
    %402 = vmatpush1.bf16.msra.mxu0 %v386
    %403 = vmatprep.subr.bf16.mxu0 %v390
    %404 = vmatpush1.bf16.msra.mxu0 %v389
    %405 = vmatprep.subr.bf16.mxu0 0
    %406 = vmatpush1.bf16.msra.mxu0 0
    %407 = vmatprep.subr.bf16.mxu0 0
    %408 = vmatpush1.bf16.msra.mxu0 0
    %409 = vmatprep.subr.bf16.mxu0 0
    %410 = vmatpush1.bf16.msra.mxu0 0
    %411 = vmatprep.subr.bf16.mxu0 0
    %412 = vmatpush1.bf16.msra.mxu0 0
    %413 = vmatprep.subr.bf16.mxu0 0
    %414 = vmatpush1.bf16.msra.mxu0 0
    %415 = vmatprep.subr.bf16.mxu0 0
    %416 = vmatpush1.bf16.msra.mxu0 0
    %417 = vmatprep.subr.bf16.mxu0 0
    %418 = vmatpush1.bf16.msra.mxu0 0
    %419 = vmatprep.subr.bf16.mxu0 0
    %420 = vmatpush1.bf16.msra.mxu0 0
    %421 = vmatprep.subr.bf16.mxu0 0
    %422 = vmatpush1.bf16.msra.mxu0 0
    %423 = vmatprep.subr.bf16.mxu0 0
    %424 = vmatpush1.bf16.msra.mxu0 0
    %425 = vmatprep.subr.bf16.mxu0 0
    %426 = vmatpush1.bf16.msra.mxu0 0
    %427 = vmatprep.subr.bf16.mxu0 0
    %428 = vmatpush1.bf16.msra.mxu0 0
    %429 = vmatprep.subr.bf16.mxu0 0
    %430 = vmatpush1.bf16.msra.mxu0 0
    %431 = vmatprep.subr.bf16.mxu0 0
    %432 = vmatpush1.bf16.msra.mxu0 0
    %433 = vmatprep.mubr.bf16.mxu0 0
    %434 = vmatmul.mubr.bf16.gmra.mrb[0].mxu0 %v399
    %v435 = vpop.f32.mrb[0].mxu0
    %v436 = vadd.f32 %v354, %v435
    %v437 = vpop.f32.mrb[0].mxu0
    %v438 = vadd.f32 %v358, %v437
    %v439 = vpop.f32.mrb[0].mxu0
    %v440 = vpop.f32.mrb[0].mxu0
    %441 = vdwg.mxu0
    %442 = vmatprep.subr.bf16.mxu0 0
    %443 = vmatpush1.bf16.msra.mxu0 %v388
    %444 = vmatprep.subr.bf16.mxu0 0
    %445 = vmatpush1.bf16.msra.mxu0 %v391
    %446 = vmatprep.subr.bf16.mxu0 0
    %447 = vmatpush1.bf16.msra.mxu0 0
    %448 = vmatprep.subr.bf16.mxu0 0
    %449 = vmatpush1.bf16.msra.mxu0 0
    %450 = vmatprep.subr.bf16.mxu0 0
    %451 = vmatpush1.bf16.msra.mxu0 0
    %452 = vmatprep.subr.bf16.mxu0 0
    %453 = vmatpush1.bf16.msra.mxu0 0
    %454 = vmatprep.subr.bf16.mxu0 0
    %455 = vmatpush1.bf16.msra.mxu0 0
    %456 = vmatprep.subr.bf16.mxu0 0
    %457 = vmatpush1.bf16.msra.mxu0 0
    %458 = vmatprep.subr.bf16.mxu0 0
    %459 = vmatpush1.bf16.msra.mxu0 0
    %460 = vmatprep.subr.bf16.mxu0 0
    %461 = vmatpush1.bf16.msra.mxu0 0
    %462 = vmatprep.subr.bf16.mxu0 0
    %463 = vmatpush1.bf16.msra.mxu0 0
    %464 = vmatprep.subr.bf16.mxu0 0
    %465 = vmatpush1.bf16.msra.mxu0 0
    %466 = vmatprep.subr.bf16.mxu0 0
    %467 = vmatpush1.bf16.msra.mxu0 0
    %468 = vmatprep.subr.bf16.mxu0 0
    %469 = vmatpush1.bf16.msra.mxu0 0
    %470 = vmatprep.subr.bf16.mxu0 0
    %471 = vmatpush1.bf16.msra.mxu0 0
    %472 = vmatprep.subr.bf16.mxu0 0
    %473 = vmatpush1.bf16.msra.mxu0 0
    %474 = vmatprep.mubr.bf16.mxu0 0
    %475 = vmatmul.mubr.bf16.gmra.mrb[0].mxu0 %v399
    %v476 = vpop.f32.mrb[0].mxu0
    %v477 = vadd.f32 %v362, %v476
    %v478 = vpop.f32.mrb[0].mxu0
    %v479 = vpop.f32.mrb[0].mxu0
    %v480 = vpop.f32.mrb[0].mxu0
    %481 = vdwg.mxu0
    %v482 = vmax.f32 %v436, 0.0
    %v483 = vmax.f32 %v438, 0.0
    %v484 = vmax.f32 %v477, 0.0
    %v485 = vpack.c.bf16 %v482, %v482
    %v486 = vpack.c.bf16 %v483, %v483
    %v487 = vpack.c.bf16 %v484, %v484
    %v488 = vld [vmem:[#allocation9] sm:$0xf]
    %v489 = vld [vmem:[#allocation9 + $0x4] sm:$0xf]
    %v490 = vld [vmem:[#allocation9 + $0x8] sm:$0xf]
    %v491 = vld [vmem:[#allocation9 + $0xc] sm:$0xf]
    %v492 = vld [vmem:[#allocation9 + $0x10] sm:$0xf]
    %v493 = vld [vmem:[#allocation9 + $0x14] sm:$0xf]
    %v494 = vld [vmem:[#allocation9 + $0x18] sm:$0xf]
    %v495 = vld [vmem:[#allocation9 + $0x1c] sm:$0xf]
    %v496 = vld [vmem:[#allocation9 + $0x20] sm:$0xf]
    %v497 = vld [vmem:[#allocation9 + $0x24] sm:$0xf]
    %v498 = vld [vmem:[#allocation9 + $0x28] sm:$0xf]
    %v499 = vld [vmem:[#allocation9 + $0x2c] sm:$0xf]
    %v500 = vld [vmem:[#allocation9 + $0x30] sm:$0xf]
    %v501 = vld [vmem:[#allocation9 + $0x34] sm:$0xf]
    %v502 = vld [vmem:[#allocation9 + $0x38] sm:$0xf]
    %v503 = vld [vmem:[#allocation9 + $0x3c] sm:$0xf]
    %v504 = vld [vmem:[%s10] sm:$0x1]
    %v506 = vlaneseq
    %v507 = vshrl.u32 %v506, 7
    %v508 = vsub.s32 0, %v507
    %v509 = vrot.slane %v504, %v508
    %v527 = vunpack.c.l.b16 %v488
    %v528 = vunpack.c.l.b16 %v489
    %v529 = vunpack.c.l.b16 %v490
    %v530 = vunpack.c.l.b16 %v491
    %v531 = vunpack.c.l.b16 %v492
    %v532 = vunpack.c.l.b16 %v493
    %v533 = vunpack.c.l.b16 %v494
    %v534 = vunpack.c.l.b16 %v495
    %v535 = vunpack.c.l.b16 %v496
    %v536 = vunpack.c.l.b16 %v497
    %v537 = vunpack.c.l.b16 %v498
    %v538 = vunpack.c.l.b16 %v499
    %v539 = vunpack.c.l.b16 %v500
    %v540 = vunpack.c.l.b16 %v501
    %v541 = vunpack.c.l.b16 %v502
    %v542 = vunpack.c.l.b16 %v503
    %v543 = vpack.c.b16 %v528, %v527
    %v544 = vpack.c.b16 %v530, %v529
    %v545 = vpack.c.b16 %v532, %v531
    %v546 = vpack.c.b16 %v534, %v533
    %v547 = vpack.c.b16 %v536, %v535
    %v548 = vpack.c.b16 %v538, %v537
    %v549 = vpack.c.b16 %v540, %v539
    %v550 = vpack.c.b16 %v542, %v541
    %559 = vmatprep.subr.bf16.mxu0 0
    %560 = vmatpush1.bf16.msra.mxu0 %v543
    %561 = vmatprep.subr.bf16.mxu0 0
    %562 = vmatpush1.bf16.msra.mxu0 %v544
    %563 = vmatprep.subr.bf16.mxu0 0
    %564 = vmatpush1.bf16.msra.mxu0 %v545
    %565 = vmatprep.subr.bf16.mxu0 0
    %566 = vmatpush1.bf16.msra.mxu0 %v546
    %567 = vmatprep.subr.bf16.mxu0 0
    %568 = vmatpush1.bf16.msra.mxu0 %v547
    %569 = vmatprep.subr.bf16.mxu0 0
    %570 = vmatpush1.bf16.msra.mxu0 %v548
    %571 = vmatprep.subr.bf16.mxu0 0
    %572 = vmatpush1.bf16.msra.mxu0 %v549
    %573 = vmatprep.subr.bf16.mxu0 0
    %574 = vmatpush1.bf16.msra.mxu0 %v550
    %575 = vmatprep.subr.bf16.mxu0 0
    %576 = vmatpush1.bf16.msra.mxu0 0
    %577 = vmatprep.subr.bf16.mxu0 0
    %578 = vmatpush1.bf16.msra.mxu0 0
    %579 = vmatprep.subr.bf16.mxu0 0
    %580 = vmatpush1.bf16.msra.mxu0 0
    %581 = vmatprep.subr.bf16.mxu0 0
    %582 = vmatpush1.bf16.msra.mxu0 0
    %583 = vmatprep.subr.bf16.mxu0 0
    %584 = vmatpush1.bf16.msra.mxu0 0
    %585 = vmatprep.subr.bf16.mxu0 0
    %586 = vmatpush1.bf16.msra.mxu0 0
    %587 = vmatprep.subr.bf16.mxu0 0
    %588 = vmatpush1.bf16.msra.mxu0 0
    %589 = vmatprep.subr.bf16.mxu0 0
    %590 = vmatpush1.bf16.msra.mxu0 0
    %591 = vmatprep.mubr.bf16.mxu0 0
    %592 = vmatmul.mubr.bf16.gmra.mrb[0].mxu0 %v485
    %v593 = vpop.f32.mrb[0].mxu0
    %v594 = vadd.f32 %v509, %v593
    %v595 = vpop.f32.mrb[0].mxu0
    %v596 = vpop.f32.mrb[0].mxu0
    %v597 = vpop.f32.mrb[0].mxu0
    %598 = vdwg.mxu0
    %599 = vst [vmem:[%s11] sm:$0xff] %v594
    %s600 = scalar_lea.vmem [#allocation9], 64
    %v601 = vld [vmem:[%s600] sm:$0xf]
    %v602 = vld [vmem:[%s600 + $0x4] sm:$0xf]
    %v603 = vld [vmem:[%s600 + $0x8] sm:$0xf]
    %v604 = vld [vmem:[%s600 + $0xc] sm:$0xf]
    %v605 = vld [vmem:[%s600 + $0x10] sm:$0xf]
    %v606 = vld [vmem:[%s600 + $0x14] sm:$0xf]
    %v607 = vld [vmem:[%s600 + $0x18] sm:$0xf]
    %v608 = vld [vmem:[%s600 + $0x1c] sm:$0xf]
    %v609 = vld [vmem:[%s600 + $0x20] sm:$0xf]
    %v610 = vld [vmem:[%s600 + $0x24] sm:$0xf]
    %v611 = vld [vmem:[%s600 + $0x28] sm:$0xf]
    %v612 = vld [vmem:[%s600 + $0x2c] sm:$0xf]
    %v613 = vld [vmem:[%s600 + $0x30] sm:$0xf]
    %v614 = vld [vmem:[%s600 + $0x34] sm:$0xf]
    %v615 = vld [vmem:[%s600 + $0x38] sm:$0xf]
    %v616 = vld [vmem:[%s600 + $0x3c] sm:$0xf]
    %v617 = vld [vmem:[%s10 + $0x1] sm:$0x1]
    %v619 = vlaneseq
    %v620 = vshrl.u32 %v619, 7
    %v621 = vsub.s32 0, %v620
    %v622 = vrot.slane %v617, %v621
    %v640 = vunpack.c.l.b16 %v601
    %v641 = vunpack.c.l.b16 %v602
    %v642 = vunpack.c.l.b16 %v603
    %v643 = vunpack.c.l.b16 %v604
    %v644 = vunpack.c.l.b16 %v605
    %v645 = vunpack.c.l.b16 %v606
    %v646 = vunpack.c.l.b16 %v607
    %v647 = vunpack.c.l.b16 %v608
    %v648 = vunpack.c.l.b16 %v609
    %v649 = vunpack.c.l.b16 %v610
    %v650 = vunpack.c.l.b16 %v611
    %v651 = vunpack.c.l.b16 %v612
    %v652 = vunpack.c.l.b16 %v613
    %v653 = vunpack.c.l.b16 %v614
    %v654 = vunpack.c.l.b16 %v615
    %v655 = vunpack.c.l.b16 %v616
    %v656 = vpack.c.b16 %v641, %v640
    %v657 = vpack.c.b16 %v643, %v642
    %v658 = vpack.c.b16 %v645, %v644
    %v659 = vpack.c.b16 %v647, %v646
    %v660 = vpack.c.b16 %v649, %v648
    %v661 = vpack.c.b16 %v651, %v650
    %v662 = vpack.c.b16 %v653, %v652
    %v663 = vpack.c.b16 %v655, %v654
    %672 = vmatprep.subr.bf16.mxu0 0
    %673 = vmatpush1.bf16.msra.mxu0 %v656
    %674 = vmatprep.subr.bf16.mxu0 0
    %675 = vmatpush1.bf16.msra.mxu0 %v657
    %676 = vmatprep.subr.bf16.mxu0 0
    %677 = vmatpush1.bf16.msra.mxu0 %v658
    %678 = vmatprep.subr.bf16.mxu0 0
    %679 = vmatpush1.bf16.msra.mxu0 %v659
    %680 = vmatprep.subr.bf16.mxu0 0
    %681 = vmatpush1.bf16.msra.mxu0 %v660
    %682 = vmatprep.subr.bf16.mxu0 0
    %683 = vmatpush1.bf16.msra.mxu0 %v661
    %684 = vmatprep.subr.bf16.mxu0 0
    %685 = vmatpush1.bf16.msra.mxu0 %v662
    %686 = vmatprep.subr.bf16.mxu0 0
    %687 = vmatpush1.bf16.msra.mxu0 %v663
    %688 = vmatprep.subr.bf16.mxu0 0
    %689 = vmatpush1.bf16.msra.mxu0 0
    %690 = vmatprep.subr.bf16.mxu0 0
    %691 = vmatpush1.bf16.msra.mxu0 0
    %692 = vmatprep.subr.bf16.mxu0 0
    %693 = vmatpush1.bf16.msra.mxu0 0
    %694 = vmatprep.subr.bf16.mxu0 0
    %695 = vmatpush1.bf16.msra.mxu0 0
    %696 = vmatprep.subr.bf16.mxu0 0
    %697 = vmatpush1.bf16.msra.mxu0 0
    %698 = vmatprep.subr.bf16.mxu0 0
    %699 = vmatpush1.bf16.msra.mxu0 0
    %700 = vmatprep.subr.bf16.mxu0 0
    %701 = vmatpush1.bf16.msra.mxu0 0
    %702 = vmatprep.subr.bf16.mxu0 0
    %703 = vmatpush1.bf16.msra.mxu0 0
    %704 = vmatprep.mubr.bf16.mxu0 0
    %705 = vmatmul.mubr.bf16.gmra.mrb[0].mxu0 %v486
    %v706 = vpop.f32.mrb[0].mxu0
    %v707 = vadd.f32 %v622, %v706
    %v708 = vpop.f32.mrb[0].mxu0
    %v709 = vpop.f32.mrb[0].mxu0
    %v710 = vpop.f32.mrb[0].mxu0
    %711 = vdwg.mxu0
    %v712 = vmax.f32 %v707, 0.0
    %713 = vst [vmem:[%s11 + $0x8] sm:$0xff] %v712
    %s714 = scalar_lea.vmem [#allocation9], 128
    %v715 = vld [vmem:[%s714] sm:$0xf]
    %v716 = vld [vmem:[%s714 + $0x4] sm:$0xf]
    %v717 = vld [vmem:[%s714 + $0x8] sm:$0xf]
    %v718 = vld [vmem:[%s714 + $0xc] sm:$0xf]
    %v719 = vld [vmem:[%s714 + $0x10] sm:$0xf]
    %v720 = vld [vmem:[%s714 + $0x14] sm:$0xf]
    %v721 = vld [vmem:[%s714 + $0x18] sm:$0xf]
    %v722 = vld [vmem:[%s714 + $0x1c] sm:$0xf]
    %v723 = vld [vmem:[%s714 + $0x20] sm:$0xf]
    %v724 = vld [vmem:[%s714 + $0x24] sm:$0xf]
    %v725 = vld [vmem:[%s714 + $0x28] sm:$0xf]
    %v726 = vld [vmem:[%s714 + $0x2c] sm:$0xf]
    %v727 = vld [vmem:[%s714 + $0x30] sm:$0xf]
    %v728 = vld [vmem:[%s714 + $0x34] sm:$0xf]
    %v729 = vld [vmem:[%s714 + $0x38] sm:$0xf]
    %v730 = vld [vmem:[%s714 + $0x3c] sm:$0xf]
    %v731 = vld [vmem:[%s10 + $0x2] sm:$0x1]
    %v733 = vlaneseq
    %v734 = vshrl.u32 %v733, 7
    %v735 = vsub.s32 0, %v734
    %v736 = vrot.slane %v731, %v735
    %v754 = vunpack.c.l.b16 %v715
    %v755 = vunpack.c.l.b16 %v716
    %v756 = vunpack.c.l.b16 %v717
    %v757 = vunpack.c.l.b16 %v718
    %v758 = vunpack.c.l.b16 %v719
    %v759 = vunpack.c.l.b16 %v720
    %v760 = vunpack.c.l.b16 %v721
    %v761 = vunpack.c.l.b16 %v722
    %v762 = vunpack.c.l.b16 %v723
    %v763 = vunpack.c.l.b16 %v724
    %v764 = vunpack.c.l.b16 %v725
    %v765 = vunpack.c.l.b16 %v726
    %v766 = vunpack.c.l.b16 %v727
    %v767 = vunpack.c.l.b16 %v728
    %v768 = vunpack.c.l.b16 %v729
    %v769 = vunpack.c.l.b16 %v730
    %v770 = vpack.c.b16 %v755, %v754
    %v771 = vpack.c.b16 %v757, %v756
    %v772 = vpack.c.b16 %v759, %v758
    %v773 = vpack.c.b16 %v761, %v760
    %v774 = vpack.c.b16 %v763, %v762
    %v775 = vpack.c.b16 %v765, %v764
    %v776 = vpack.c.b16 %v767, %v766
    %v777 = vpack.c.b16 %v769, %v768
    %786 = vmatprep.subr.bf16.mxu0 0
    %787 = vmatpush1.bf16.msra.mxu0 %v770
    %788 = vmatprep.subr.bf16.mxu0 0
    %789 = vmatpush1.bf16.msra.mxu0 %v771
    %790 = vmatprep.subr.bf16.mxu0 0
    %791 = vmatpush1.bf16.msra.mxu0 %v772
    %792 = vmatprep.subr.bf16.mxu0 0
    %793 = vmatpush1.bf16.msra.mxu0 %v773
    %794 = vmatprep.subr.bf16.mxu0 0
    %795 = vmatpush1.bf16.msra.mxu0 %v774
    %796 = vmatprep.subr.bf16.mxu0 0
    %797 = vmatpush1.bf16.msra.mxu0 %v775
    %798 = vmatprep.subr.bf16.mxu0 0
    %799 = vmatpush1.bf16.msra.mxu0 %v776
    %800 = vmatprep.subr.bf16.mxu0 0
    %801 = vmatpush1.bf16.msra.mxu0 %v777
    %802 = vmatprep.subr.bf16.mxu0 0
    %803 = vmatpush1.bf16.msra.mxu0 0
    %804 = vmatprep.subr.bf16.mxu0 0
    %805 = vmatpush1.bf16.msra.mxu0 0
    %806 = vmatprep.subr.bf16.mxu0 0
    %807 = vmatpush1.bf16.msra.mxu0 0
    %808 = vmatprep.subr.bf16.mxu0 0
    %809 = vmatpush1.bf16.msra.mxu0 0
    %810 = vmatprep.subr.bf16.mxu0 0
    %811 = vmatpush1.bf16.msra.mxu0 0
    %812 = vmatprep.subr.bf16.mxu0 0
    %813 = vmatpush1.bf16.msra.mxu0 0
    %814 = vmatprep.subr.bf16.mxu0 0
    %815 = vmatpush1.bf16.msra.mxu0 0
    %816 = vmatprep.subr.bf16.mxu0 0
    %817 = vmatpush1.bf16.msra.mxu0 0
    %818 = vmatprep.mubr.bf16.mxu0 0
    %819 = vmatmul.mubr.bf16.gmra.mrb[0].mxu0 %v487
    %v820 = vpop.f32.mrb[0].mxu0
    %v821 = vadd.f32 %v736, %v820
    %v822 = vpop.f32.mrb[0].mxu0
    %v823 = vpop.f32.mrb[0].mxu0
    %v824 = vpop.f32.mrb[0].mxu0
    %825 = vdwg.mxu0
    %v826 = vmax.f32 %v821, 0.0
    %827 = vst [vmem:[%s11 + $0x10] sm:$0xff] %v826
    // Predicated region
    $region66: #{_apply.1} parent=1 // pred_check
      _
    $region67: #{_apply.1} parent=1 // pred_check_branch
      %829 = sbr.rel (0) target = $region69
    $region68: #{_apply.1} parent=1 // pred_region
      _
    $region69: #{_apply.1} parent=1 // pred_fallthru
      _
    // Predicated region
    $region70: #{_apply.1} parent=1 // pred_check
      _
    $region71: #{_apply.1} parent=1 // pred_check_branch
      %831 = sbr.rel (0) target = $region73
    $region72: #{_apply.1} parent=1 // pred_region
      _
    $region73: #{_apply.1} parent=1 // pred_fallthru
      _
    %832 = vsyncpa [#allocation3], 1
    %833 = vsyncpa [#allocation5], 1
    %834 = vsyncpa [#allocation8], 1

// kernel: _apply.1
$region0: #{_apply.1}
  #allocation0 [shape = 'u32[]', space=smem, size = 0x4, offset = 0x4, fixed_abs, tag = 'smem constant byte address 0x4 - core index']
  #allocation1 [shape = 'u32[144,128]{1,0:T(1,128)}', space=vmem, size = 0x12000, scoped, tag = 'internal scratch']
  %s0 = inlined_call_operand.vmem [shape: f32[512,32], index: 0, kind: input, shape index: {}]
  %s1 = inlined_call_operand.vmem [shape: bf16[32,64], index: 1, kind: input, shape index: {}]
  %s2 = inlined_call_operand.vmem [shape: f32[1,64], index: 2, kind: input, shape index: {}]
  %s3 = inlined_call_operand.vmem [shape: bf16[64,64], index: 3, kind: input, shape index: {}]
  %s4 = inlined_call_operand.vmem [shape: f32[1,64], index: 4, kind: input, shape index: {}]
  %s5 = inlined_call_operand.vmem [shape: bf16[64,32], index: 5, kind: input, shape index: {}]
  %s6 = inlined_call_operand.vmem [shape: f32[1,32], index: 6, kind: input, shape index: {}]
  %s7 = inlined_call_operand.vmem [shape: bf16[32,384], index: 7, kind: input, shape index: {}]
  %s8 = inlined_call_operand.vmem [shape: f32[1,384], index: 8, kind: input, shape index: {}]
  %s9 = inlined_call_operand.vmem [shape: bf16[3,128,128], index: 9, kind: input, shape index: {}]
  %s10 = inlined_call_operand.vmem [shape: f32[1,384], index: 10, kind: input, shape index: {}]
  %s11 = inlined_call_operand.vmem [shape: f32[512,384], index: 11, kind: output, shape index: {}]
  %s12 = sld [smem:[#allocation0]]
  $region54: #{_apply.1} parent=0
    _
  %s14 = ssub.s32 1, %s12
  %s15 = scalar_select 0, %s14, %s12
  // Predicated region
  $region2: #{_apply.1} parent=0 // pred_check
    _
  $region3: #{_apply.1} parent=0 // pred_check_branch
    %17 = sbr.rel (0) target = $region5
  $region4: #{_apply.1} parent=0 // pred_region
    _
  $region5: #{_apply.1} parent=0 // pred_fallthru
    _
  // Predicated region
  $region6: #{_apply.1} parent=0 // pred_check
    _
  $region7: #{_apply.1} parent=0 // pred_check_branch
    %19 = sbr.rel (0) target = $region9
  $region8: #{_apply.1} parent=0 // pred_region
    _
  $region9: #{_apply.1} parent=0 // pred_fallthru
    _
  // Predicated region
  $region10: #{_apply.1} parent=0 // pred_check
    _
  $region11: #{_apply.1} parent=0 // pred_check_branch
    %21 = sbr.rel (0) target = $region13
  $region12: #{_apply.1} parent=0 // pred_region
    _
  $region13: #{_apply.1} parent=0 // pred_fallthru
    _
  // Predicated region
  $region14: #{_apply.1} parent=0 // pred_check
    _
  $region15: #{_apply.1} parent=0 // pred_check_branch
    %23 = sbr.rel (0) target = $region17
  $region16: #{_apply.1} parent=0 // pred_region
    _
  $region17: #{_apply.1} parent=0 // pred_fallthru
    _
  // Predicated region
  $region18: #{_apply.1} parent=0 // pred_check
    _
  $region19: #{_apply.1} parent=0 // pred_check_branch
    %25 = sbr.rel (0) target = $region21
  $region20: #{_apply.1} parent=0 // pred_region
    _
  $region21: #{_apply.1} parent=0 // pred_fallthru
    _
  // Predicated region
  $region22: #{_apply.1} parent=0 // pred_check
    _
  $region23: #{_apply.1} parent=0 // pred_check_branch
    %27 = sbr.rel (0) target = $region25
  $region24: #{_apply.1} parent=0 // pred_region
    _
  $region25: #{_apply.1} parent=0 // pred_fallthru
    _
  // Predicated region
  $region26: #{_apply.1} parent=0 // pred_check
    _
  $region27: #{_apply.1} parent=0 // pred_check_branch
    %29 = sbr.rel (0) target = $region29
  $region28: #{_apply.1} parent=0 // pred_region
    _
  $region29: #{_apply.1} parent=0 // pred_fallthru
    _
  // Predicated region
  $region30: #{_apply.1} parent=0 // pred_check
    _
  $region31: #{_apply.1} parent=0 // pred_check_branch
    %31 = sbr.rel (0) target = $region33
  $region32: #{_apply.1} parent=0 // pred_region
    _
  $region33: #{_apply.1} parent=0 // pred_fallthru
    _
  // Predicated region
  $region34: #{_apply.1} parent=0 // pred_check
    _
  $region35: #{_apply.1} parent=0 // pred_check_branch
    %33 = sbr.rel (0) target = $region37
  $region36: #{_apply.1} parent=0 // pred_region
    _
  $region37: #{_apply.1} parent=0 // pred_fallthru
    _
  // Predicated region
  $region38: #{_apply.1} parent=0 // pred_check
    _
  $region39: #{_apply.1} parent=0 // pred_check_branch
    %35 = sbr.rel (0) target = $region41
  $region40: #{_apply.1} parent=0 // pred_region
    _
  $region41: #{_apply.1} parent=0 // pred_fallthru
    _
  // Predicated region
  $region42: #{_apply.1} parent=0 // pred_check
    _
  $region43: #{_apply.1} parent=0 // pred_check_branch
    %37 = sbr.rel (0) target = $region45
  $region44: #{_apply.1} parent=0 // pred_region
    _
  $region45: #{_apply.1} parent=0 // pred_fallthru
    _
  %v39 = vld [vmem:[%s0] sm:$0xff]
  %v40 = vld [vmem:[%s0 + $0x8] sm:$0xff]
  %v41 = vld [vmem:[%s0 + $0x10] sm:$0xff]
  %v42 = vld [vmem:[%s0 + $0x18] sm:$0xff]
  %v43 = vld [vmem:[%s0 + $0x20] sm:$0xff]
  %v44 = vld [vmem:[%s0 + $0x28] sm:$0xff]
  %v45 = vld [vmem:[%s0 + $0x30] sm:$0xff]
  %v46 = vld [vmem:[%s0 + $0x38] sm:$0xff]
  %v47 = vld [vmem:[%s0 + $0x40] sm:$0xff]
  %v48 = vld [vmem:[%s0 + $0x48] sm:$0xff]
  %v49 = vld [vmem:[%s0 + $0x50] sm:$0xff]
  %v50 = vld [vmem:[%s0 + $0x58] sm:$0xff]
  %v51 = vld [vmem:[%s0 + $0x60] sm:$0xff]
  %v52 = vld [vmem:[%s0 + $0x68] sm:$0xff]
  %v53 = vld [vmem:[%s0 + $0x70] sm:$0xff]
  %v54 = vld [vmem:[%s0 + $0x78] sm:$0xff]
  %v55 = vld [vmem:[%s0 + $0x80] sm:$0xff]
  %v56 = vld [vmem:[%s0 + $0x88] sm:$0xff]
  %v57 = vld [vmem:[%s0 + $0x90] sm:$0xff]
  %v58 = vld [vmem:[%s0 + $0x98] sm:$0xff]
  %v59 = vld [vmem:[%s0 + $0xa0] sm:$0xff]
  %v60 = vld [vmem:[%s0 + $0xa8] sm:$0xff]
  %v61 = vld [vmem:[%s0 + $0xb0] sm:$0xff]
  %v62 = vld [vmem:[%s0 + $0xb8] sm:$0xff]
  %v63 = vld [vmem:[%s0 + $0xc0] sm:$0xff]
  %v64 = vld [vmem:[%s0 + $0xc8] sm:$0xff]
  %v65 = vld [vmem:[%s0 + $0xd0] sm:$0xff]
  %v66 = vld [vmem:[%s0 + $0xd8] sm:$0xff]
  %v67 = vld [vmem:[%s0 + $0xe0] sm:$0xff]
  %v68 = vld [vmem:[%s0 + $0xe8] sm:$0xff]
  %v69 = vld [vmem:[%s0 + $0xf0] sm:$0xff]
  %v70 = vld [vmem:[%s0 + $0xf8] sm:$0xff]
  %v71 = vld [vmem:[%s0 + $0x100] sm:$0xff]
  %v72 = vld [vmem:[%s0 + $0x108] sm:$0xff]
  %v73 = vld [vmem:[%s0 + $0x110] sm:$0xff]
  %v74 = vld [vmem:[%s0 + $0x118] sm:$0xff]
  %v75 = vld [vmem:[%s0 + $0x120] sm:$0xff]
  %v76 = vld [vmem:[%s0 + $0x128] sm:$0xff]
  %v77 = vld [vmem:[%s0 + $0x130] sm:$0xff]
  %v78 = vld [vmem:[%s0 + $0x138] sm:$0xff]
  %v79 = vld [vmem:[%s0 + $0x140] sm:$0xff]
  %v80 = vld [vmem:[%s0 + $0x148] sm:$0xff]
  %v81 = vld [vmem:[%s0 + $0x150] sm:$0xff]
  %v82 = vld [vmem:[%s0 + $0x158] sm:$0xff]
  %v83 = vld [vmem:[%s0 + $0x160] sm:$0xff]
  %v84 = vld [vmem:[%s0 + $0x168] sm:$0xff]
  %v85 = vld [vmem:[%s0 + $0x170] sm:$0xff]
  %v86 = vld [vmem:[%s0 + $0x178] sm:$0xff]
  %v87 = vld [vmem:[%s0 + $0x180] sm:$0xff]
  %v88 = vld [vmem:[%s0 + $0x188] sm:$0xff]
  %v89 = vld [vmem:[%s0 + $0x190] sm:$0xff]
  %v90 = vld [vmem:[%s0 + $0x198] sm:$0xff]
  %v91 = vld [vmem:[%s0 + $0x1a0] sm:$0xff]
  %v92 = vld [vmem:[%s0 + $0x1a8] sm:$0xff]
  %v93 = vld [vmem:[%s0 + $0x1b0] sm:$0xff]
  %v94 = vld [vmem:[%s0 + $0x1b8] sm:$0xff]
  %v95 = vld [vmem:[%s0 + $0x1c0] sm:$0xff]
  %v96 = vld [vmem:[%s0 + $0x1c8] sm:$0xff]
  %v97 = vld [vmem:[%s0 + $0x1d0] sm:$0xff]
  %v98 = vld [vmem:[%s0 + $0x1d8] sm:$0xff]
  %v99 = vld [vmem:[%s0 + $0x1e0] sm:$0xff]
  %v100 = vld [vmem:[%s0 + $0x1e8] sm:$0xff]
  %v101 = vld [vmem:[%s0 + $0x1f0] sm:$0xff]
  %v102 = vld [vmem:[%s0 + $0x1f8] sm:$0xff]
  %v103 = vpack.c.bf16 %v40, %v39
  %v104 = vpack.c.bf16 %v42, %v41
  %v105 = vpack.c.bf16 %v44, %v43
  %v106 = vpack.c.bf16 %v46, %v45
  %v107 = vpack.c.bf16 %v48, %v47
  %v108 = vpack.c.bf16 %v50, %v49
  %v109 = vpack.c.bf16 %v52, %v51
  %v110 = vpack.c.bf16 %v54, %v53
  %v111 = vpack.c.bf16 %v56, %v55
  %v112 = vpack.c.bf16 %v58, %v57
  %v113 = vpack.c.bf16 %v60, %v59
  %v114 = vpack.c.bf16 %v62, %v61
  %v115 = vpack.c.bf16 %v64, %v63
  %v116 = vpack.c.bf16 %v66, %v65
  %v117 = vpack.c.bf16 %v68, %v67
  %v118 = vpack.c.bf16 %v70, %v69
  %v119 = vpack.c.bf16 %v72, %v71
  %v120 = vpack.c.bf16 %v74, %v73
  %v121 = vpack.c.bf16 %v76, %v75
  %v122 = vpack.c.bf16 %v78, %v77
  %v123 = vpack.c.bf16 %v80, %v79
  %v124 = vpack.c.bf16 %v82, %v81
  %v125 = vpack.c.bf16 %v84, %v83
  %v126 = vpack.c.bf16 %v86, %v85
  %v127 = vpack.c.bf16 %v88, %v87
  %v128 = vpack.c.bf16 %v90, %v89
  %v129 = vpack.c.bf16 %v92, %v91
  %v130 = vpack.c.bf16 %v94, %v93
  %v131 = vpack.c.bf16 %v96, %v95
  %v132 = vpack.c.bf16 %v98, %v97
  %v133 = vpack.c.bf16 %v100, %v99
  %v134 = vpack.c.bf16 %v102, %v101
  %v135 = vld [vmem:[%s1] sm:$0xf]
  %v136 = vld [vmem:[%s1 + $0x4] sm:$0xf]
  %v137 = vld [vmem:[%s1 + $0x8] sm:$0xf]
  %v138 = vld [vmem:[%s1 + $0xc] sm:$0xf]
  %v139 = vld [vmem:[%s2] sm:$0x1]
  %v141 = vlaneseq
  %v142 = vshrl.u32 %v141, 7
  %v143 = vsub.s32 0, %v142
  %v144 = vrot.slane %v139, %v143
  %v150 = vunpack.c.l.b16 %v135
  %v151 = vunpack.c.l.b16 %v136
  %v152 = vunpack.c.l.b16 %v137
  %v153 = vunpack.c.l.b16 %v138
  %v154 = vpack.c.b16 %v151, %v150
  %v155 = vpack.c.b16 %v153, %v152
  %vm158 = vcmask 261120
  %v160 = vsel %vm158, %v103, 0
  %v163 = vsel %vm158, %v104, 0
  %v166 = vsel %vm158, %v105, 0
  %v169 = vsel %vm158, %v106, 0
  %v172 = vsel %vm158, %v107, 0
  %v175 = vsel %vm158, %v108, 0
  %v178 = vsel %vm158, %v109, 0
  %v181 = vsel %vm158, %v110, 0
  %v184 = vsel %vm158, %v111, 0
  %v187 = vsel %vm158, %v112, 0
  %v190 = vsel %vm158, %v113, 0
  %v193 = vsel %vm158, %v114, 0
  %v196 = vsel %vm158, %v115, 0
  %v199 = vsel %vm158, %v116, 0
  %v202 = vsel %vm158, %v117, 0
  %v205 = vsel %vm158, %v118, 0
  %v208 = vsel %vm158, %v119, 0
  %v211 = vsel %vm158, %v120, 0
  %v214 = vsel %vm158, %v121, 0
  %v217 = vsel %vm158, %v122, 0
  %v220 = vsel %vm158, %v123, 0
  %v223 = vsel %vm158, %v124, 0
  %v226 = vsel %vm158, %v125, 0
  %v229 = vsel %vm158, %v126, 0
  %v232 = vsel %vm158, %v127, 0
  %v235 = vsel %vm158, %v128, 0
  %v238 = vsel %vm158, %v129, 0
  %v241 = vsel %vm158, %v130, 0
  %v244 = vsel %vm158, %v131, 0
  %v247 = vsel %vm158, %v132, 0
  %v250 = vsel %vm158, %v133, 0
  %v253 = vsel %vm158, %v134, 0
  %255 = vmatprep.subr.bf16.mxu0 0
  %256 = vmatpush1.bf16.msra.mxu0 %v154
  %257 = vmatprep.subr.bf16.mxu0 0
  %258 = vmatpush1.bf16.msra.mxu0 %v155
  %259 = vmatprep.subr.bf16.mxu0 0
  %260 = vmatpush1.bf16.msra.mxu0 0
  %261 = vmatprep.subr.bf16.mxu0 0
  %262 = vmatpush1.bf16.msra.mxu0 0
  %263 = vmatprep.subr.bf16.mxu0 0
  %264 = vmatpush1.bf16.msra.mxu0 0
  %265 = vmatprep.subr.bf16.mxu0 0
  %266 = vmatpush1.bf16.msra.mxu0 0
  %267 = vmatprep.subr.bf16.mxu0 0
  %268 = vmatpush1.bf16.msra.mxu0 0
  %269 = vmatprep.subr.bf16.mxu0 0
  %270 = vmatpush1.bf16.msra.mxu0 0
  %271 = vmatprep.subr.bf16.mxu0 0
  %272 = vmatpush1.bf16.msra.mxu0 0
  %273 = vmatprep.subr.bf16.mxu0 0
  %274 = vmatpush1.bf16.msra.mxu0 0
  %275 = vmatprep.subr.bf16.mxu0 0
  %276 = vmatpush1.bf16.msra.mxu0 0
  %277 = vmatprep.subr.bf16.mxu0 0
  %278 = vmatpush1.bf16.msra.mxu0 0
  %279 = vmatprep.subr.bf16.mxu0 0
  %280 = vmatpush1.bf16.msra.mxu0 0
  %281 = vmatprep.subr.bf16.mxu0 0
  %282 = vmatpush1.bf16.msra.mxu0 0
  %283 = vmatprep.subr.bf16.mxu0 0
  %284 = vmatpush1.bf16.msra.mxu0 0
  %285 = vmatprep.subr.bf16.mxu0 0
  %286 = vmatpush1.bf16.msra.mxu0 0
  %287 = vmatprep.mubr.bf16.mxu0 0
  %288 = vmatmul.mubr.bf16.gmra.mrb[0].mxu0 %v160
  %v289 = vpop.f32.mrb[0].mxu0
  %v290 = vadd.f32 %v144, %v289
  %v291 = vpop.f32.mrb[0].mxu0
  %v292 = vpop.f32.mrb[0].mxu0
  %v293 = vadd.f32 %v144, %v292
  %v294 = vpop.f32.mrb[0].mxu0
  %295 = vmatprep.mubr.bf16.mxu0 0
  %296 = vmatmul.mubr.bf16.gmra.mrb[0].mxu0 %v163
  %v297 = vpop.f32.mrb[0].mxu0
  %v298 = vadd.f32 %v144, %v297
  %v299 = vpop.f32.mrb[0].mxu0
  %v300 = vpop.f32.mrb[0].mxu0
  %v301 = vadd.f32 %v144, %v300
  %v302 = vpop.f32.mrb[0].mxu0
  %303 = vmatprep.mubr.bf16.mxu0 0
  %304 = vmatmul.mubr.bf16.gmra.mrb[0].mxu0 %v166
  %v305 = vpop.f32.mrb[0].mxu0
  %v306 = vadd.f32 %v144, %v305
  %v307 = vpop.f32.mrb[0].mxu0
  %v308 = vpop.f32.mrb[0].mxu0
  %v309 = vadd.f32 %v144, %v308
  %v310 = vpop.f32.mrb[0].mxu0
  %311 = vmatprep.mubr.bf16.mxu0 0
  %312 = vmatmul.mubr.bf16.gmra.mrb[0].mxu0 %v169
  %v313 = vpop.f32.mrb[0].mxu0
  %v314 = vadd.f32 %v144, %v313
  %v315 = vpop.f32.mrb[0].mxu0
  %v316 = vpop.f32.mrb[0].mxu0
  %v317 = vadd.f32 %v144, %v316
  %v318 = vpop.f32.mrb[0].mxu0
  %319 = vmatprep.mubr.bf16.mxu0 0
  %320 = vmatmul.mubr.bf16.gmra.mrb[0].mxu0 %v172
  %v321 = vpop.f32.mrb[0].mxu0
  %v322 = vadd.f32 %v144, %v321
  %v323 = vpop.f32.mrb[0].mxu0
  %v324 = vpop.f32.mrb[0].mxu0
  %v325 = vadd.f32 %v144, %v324
  %v326 = vpop.f32.mrb[0].mxu0
  %327 = vmatprep.mubr.bf16.mxu0 0
  %328 = vmatmul.mubr.bf16.gmra.mrb[0].mxu0 %v175
  %v329 = vpop.f32.mrb[0].mxu0
  %v330 = vadd.f32 %v144, %v329
  %v331 = vpop.f32.mrb[0].mxu0
  %v332 = vpop.f32.mrb[0].mxu0
  %v333 = vadd.f32 %v144, %v332
  %v334 = vpop.f32.mrb[0].mxu0
  %335 = vmatprep.mubr.bf16.mxu0 0
  %336 = vmatmul.mubr.bf16.gmra.mrb[0].mxu0 %v178
  %v337 = vpop.f32.mrb[0].mxu0
  %v338 = vadd.f32 %v144, %v337
  %v339 = vpop.f32.mrb[0].mxu0
  %v340 = vpop.f32.mrb[0].mxu0
  %v341 = vadd.f32 %v144, %v340
  %v342 = vpop.f32.mrb[0].mxu0
  %343 = vmatprep.mubr.bf16.mxu0 0
  %344 = vmatmul.mubr.bf16.gmra.mrb[0].mxu0 %v181
  %v345 = vpop.f32.mrb[0].mxu0
  %v346 = vadd.f32 %v144, %v345
  %v347 = vpop.f32.mrb[0].mxu0
  %v348 = vpop.f32.mrb[0].mxu0
  %v349 = vadd.f32 %v144, %v348
  %v350 = vpop.f32.mrb[0].mxu0
  %351 = vmatprep.mubr.bf16.mxu0 0
  %352 = vmatmul.mubr.bf16.gmra.mrb[0].mxu0 %v184
  %v353 = vpop.f32.mrb[0].mxu0
  %v354 = vadd.f32 %v144, %v353
  %v355 = vpop.f32.mrb[0].mxu0
  %v356 = vpop.f32.mrb[0].mxu0
  %v357 = vadd.f32 %v144, %v356
  %v358 = vpop.f32.mrb[0].mxu0
  %359 = vmatprep.mubr.bf16.mxu0 0
  %360 = vmatmul.mubr.bf16.gmra.mrb[0].mxu0 %v187
  %v361 = vpop.f32.mrb[0].mxu0
  %v362 = vadd.f32 %v144, %v361
  %v363 = vpop.f32.mrb[0].mxu0
  %v364 = vpop.f32.mrb[0].mxu0
  %v365 = vadd.f32 %v144, %v364
  %v366 = vpop.f32.mrb[0].mxu0
  %367 = vmatprep.mubr.bf16.mxu0 0
  %368 = vmatmul.mubr.bf16.gmra.mrb[0].mxu0 %v190
  %v369 = vpop.f32.mrb[0].mxu0
  %v370 = vadd.f32 %v144, %v369
  %v371 = vpop.f32.mrb[0].mxu0
  %v372 = vpop.f32.mrb[0].mxu0
  %v373 = vadd.f32 %v144, %v372
  %v374 = vpop.f32.mrb[0].mxu0
  %375 = vmatprep.mubr.bf16.mxu0 0
  %376 = vmatmul.mubr.bf16.gmra.mrb[0].mxu0 %v193
  %v377 = vpop.f32.mrb[0].mxu0
  %v378 = vadd.f32 %v144, %v377
  %v379 = vpop.f32.mrb[0].mxu0
  %v380 = vpop.f32.mrb[0].mxu0
  %v381 = vadd.f32 %v144, %v380
  %v382 = vpop.f32.mrb[0].mxu0
  %383 = vmatprep.mubr.bf16.mxu0 0
  %384 = vmatmul.mubr.bf16.gmra.mrb[0].mxu0 %v196
  %v385 = vpop.f32.mrb[0].mxu0
  %v386 = vadd.f32 %v144, %v385
  %v387 = vpop.f32.mrb[0].mxu0
  %v388 = vpop.f32.mrb[0].mxu0
  %v389 = vadd.f32 %v144, %v388
  %v390 = vpop.f32.mrb[0].mxu0
  %391 = vmatprep.mubr.bf16.mxu0 0
  %392 = vmatmul.mubr.bf16.gmra.mrb[0].mxu0 %v199
  %v393 = vpop.f32.mrb[0].mxu0
  %v394 = vadd.f32 %v144, %v393
  %v395 = vpop.f32.mrb[0].mxu0
  %v396 = vpop.f32.mrb[0].mxu0
  %v397 = vadd.f32 %v144, %v396
  %v398 = vpop.f32.mrb[0].mxu0
  %399 = vmatprep.mubr.bf16.mxu0 0
  %400 = vmatmul.mubr.bf16.gmra.mrb[0].mxu0 %v202
  %v401 = vpop.f32.mrb[0].mxu0
  %v402 = vadd.f32 %v144, %v401
  %v403 = vpop.f32.mrb[0].mxu0
  %v404 = vpop.f32.mrb[0].mxu0
  %v405 = vadd.f32 %v144, %v404
  %v406 = vpop.f32.mrb[0].mxu0
  %407 = vmatprep.mubr.bf16.mxu0 0
  %408 = vmatmul.mubr.bf16.gmra.mrb[0].mxu0 %v205
  %v409 = vpop.f32.mrb[0].mxu0
  %v410 = vadd.f32 %v144, %v409
  %v411 = vpop.f32.mrb[0].mxu0
  %v412 = vpop.f32.mrb[0].mxu0
  %v413 = vadd.f32 %v144, %v412
  %v414 = vpop.f32.mrb[0].mxu0
  %415 = vmatprep.mubr.bf16.mxu0 0
  %416 = vmatmul.mubr.bf16.gmra.mrb[0].mxu0 %v208
  %v417 = vpop.f32.mrb[0].mxu0
  %v418 = vadd.f32 %v144, %v417
  %v419 = vpop.f32.mrb[0].mxu0
  %v420 = vpop.f32.mrb[0].mxu0
  %v421 = vadd.f32 %v144, %v420
  %v422 = vpop.f32.mrb[0].mxu0
  %423 = vmatprep.mubr.bf16.mxu0 0
  %424 = vmatmul.mubr.bf16.gmra.mrb[0].mxu0 %v211
  %v425 = vpop.f32.mrb[0].mxu0
  %v426 = vadd.f32 %v144, %v425
  %v427 = vpop.f32.mrb[0].mxu0
  %v428 = vpop.f32.mrb[0].mxu0
  %v429 = vadd.f32 %v144, %v428
  %v430 = vpop.f32.mrb[0].mxu0
  %431 = vmatprep.mubr.bf16.mxu0 0
  %432 = vmatmul.mubr.bf16.gmra.mrb[0].mxu0 %v214
  %v433 = vpop.f32.mrb[0].mxu0
  %v434 = vadd.f32 %v144, %v433
  %v435 = vpop.f32.mrb[0].mxu0
  %v436 = vpop.f32.mrb[0].mxu0
  %v437 = vadd.f32 %v144, %v436
  %v438 = vpop.f32.mrb[0].mxu0
  %439 = vmatprep.mubr.bf16.mxu0 0
  %440 = vmatmul.mubr.bf16.gmra.mrb[0].mxu0 %v217
  %v441 = vpop.f32.mrb[0].mxu0
  %v442 = vadd.f32 %v144, %v441
  %v443 = vpop.f32.mrb[0].mxu0
  %v444 = vpop.f32.mrb[0].mxu0
  %v445 = vadd.f32 %v144, %v444
  %v446 = vpop.f32.mrb[0].mxu0
  %447 = vmatprep.mubr.bf16.mxu0 0
  %448 = vmatmul.mubr.bf16.gmra.mrb[0].mxu0 %v220
  %v449 = vpop.f32.mrb[0].mxu0
  %v450 = vadd.f32 %v144, %v449
  %v451 = vpop.f32.mrb[0].mxu0
  %v452 = vpop.f32.mrb[0].mxu0
  %v453 = vadd.f32 %v144, %v452
  %v454 = vpop.f32.mrb[0].mxu0
  %455 = vmatprep.mubr.bf16.mxu0 0
  %456 = vmatmul.mubr.bf16.gmra.mrb[0].mxu0 %v223
  %v457 = vpop.f32.mrb[0].mxu0
  %v458 = vadd.f32 %v144, %v457
  %v459 = vpop.f32.mrb[0].mxu0
  %v460 = vpop.f32.mrb[0].mxu0
  %v461 = vadd.f32 %v144, %v460
  %v462 = vpop.f32.mrb[0].mxu0
  %463 = vmatprep.mubr.bf16.mxu0 0
  %464 = vmatmul.mubr.bf16.gmra.mrb[0].mxu0 %v226
  %v465 = vpop.f32.mrb[0].mxu0
  %v466 = vadd.f32 %v144, %v465
  %v467 = vpop.f32.mrb[0].mxu0
  %v468 = vpop.f32.mrb[0].mxu0
  %v469 = vadd.f32 %v144, %v468
  %v470 = vpop.f32.mrb[0].mxu0
  %471 = vmatprep.mubr.bf16.mxu0 0
  %472 = vmatmul.mubr.bf16.gmra.mrb[0].mxu0 %v229
  %v473 = vpop.f32.mrb[0].mxu0
  %v474 = vadd.f32 %v144, %v473
  %v475 = vpop.f32.mrb[0].mxu0
  %v476 = vpop.f32.mrb[0].mxu0
  %v477 = vadd.f32 %v144, %v476
  %v478 = vpop.f32.mrb[0].mxu0
  %479 = vmatprep.mubr.bf16.mxu0 0
  %480 = vmatmul.mubr.bf16.gmra.mrb[0].mxu0 %v232
  %v481 = vpop.f32.mrb[0].mxu0
  %v482 = vadd.f32 %v144, %v481
  %v483 = vpop.f32.mrb[0].mxu0
  %v484 = vpop.f32.mrb[0].mxu0
  %v485 = vadd.f32 %v144, %v484
  %v486 = vpop.f32.mrb[0].mxu0
  %487 = vmatprep.mubr.bf16.mxu0 0
  %488 = vmatmul.mubr.bf16.gmra.mrb[0].mxu0 %v235
  %v489 = vpop.f32.mrb[0].mxu0
  %v490 = vadd.f32 %v144, %v489
  %v491 = vpop.f32.mrb[0].mxu0
  %v492 = vpop.f32.mrb[0].mxu0
  %v493 = vadd.f32 %v144, %v492
  %v494 = vpop.f32.mrb[0].mxu0
  %495 = vmatprep.mubr.bf16.mxu0 0
  %496 = vmatmul.mubr.bf16.gmra.mrb[0].mxu0 %v238
  %v497 = vpop.f32.mrb[0].mxu0
  %v498 = vadd.f32 %v144, %v497
  %v499 = vpop.f32.mrb[0].mxu0
  %v500 = vpop.f32.mrb[0].mxu0
  %v501 = vadd.f32 %v144, %v500
  %v502 = vpop.f32.mrb[0].mxu0
  %503 = vmatprep.mubr.bf16.mxu0 0
  %504 = vmatmul.mubr.bf16.gmra.mrb[0].mxu0 %v241
  %v505 = vpop.f32.mrb[0].mxu0
  %v506 = vadd.f32 %v144, %v505
  %v507 = vpop.f32.mrb[0].mxu0
  %v508 = vpop.f32.mrb[0].mxu0
  %v509 = vadd.f32 %v144, %v508
  %v510 = vpop.f32.mrb[0].mxu0
  %511 = vmatprep.mubr.bf16.mxu0 0
  %512 = vmatmul.mubr.bf16.gmra.mrb[0].mxu0 %v244
  %v513 = vpop.f32.mrb[0].mxu0
  %v514 = vadd.f32 %v144, %v513
  %v515 = vpop.f32.mrb[0].mxu0
  %v516 = vpop.f32.mrb[0].mxu0
  %v517 = vadd.f32 %v144, %v516
  %v518 = vpop.f32.mrb[0].mxu0
  %519 = vmatprep.mubr.bf16.mxu0 0
  %520 = vmatmul.mubr.bf16.gmra.mrb[0].mxu0 %v247
  %v521 = vpop.f32.mrb[0].mxu0
  %v522 = vadd.f32 %v144, %v521
  %v523 = vpop.f32.mrb[0].mxu0
  %v524 = vpop.f32.mrb[0].mxu0
  %v525 = vadd.f32 %v144, %v524
  %v526 = vpop.f32.mrb[0].mxu0
  %527 = vmatprep.mubr.bf16.mxu0 0
  %528 = vmatmul.mubr.bf16.gmra.mrb[0].mxu0 %v250
  %v529 = vpop.f32.mrb[0].mxu0
  %v530 = vadd.f32 %v144, %v529
  %v531 = vpop.f32.mrb[0].mxu0
  %v532 = vpop.f32.mrb[0].mxu0
  %v533 = vadd.f32 %v144, %v532
  %v534 = vpop.f32.mrb[0].mxu0
  %535 = vmatprep.mubr.bf16.mxu0 0
  %536 = vmatmul.mubr.bf16.gmra.mrb[0].mxu0 %v253
  %v537 = vpop.f32.mrb[0].mxu0
  %v538 = vadd.f32 %v144, %v537
  %v539 = vpop.f32.mrb[0].mxu0
  %v540 = vpop.f32.mrb[0].mxu0
  %v541 = vadd.f32 %v144, %v540
  %v542 = vpop.f32.mrb[0].mxu0
  %543 = vdwg.mxu0
  %v544 = vmax.f32 %v290, 0.0
  %v545 = vmax.f32 %v293, 0.0
  %v546 = vmax.f32 %v298, 0.0
  %v547 = vmax.f32 %v301, 0.0
  %v548 = vmax.f32 %v306, 0.0
  %v549 = vmax.f32 %v309, 0.0
  %v550 = vmax.f32 %v314, 0.0
  %v551 = vmax.f32 %v317, 0.0
  %v552 = vmax.f32 %v322, 0.0
  %v553 = vmax.f32 %v325, 0.0
  %v554 = vmax.f32 %v330, 0.0
  %v555 = vmax.f32 %v333, 0.0
  %v556 = vmax.f32 %v338, 0.0
  %v557 = vmax.f32 %v341, 0.0
  %v558 = vmax.f32 %v346, 0.0
  %v559 = vmax.f32 %v349, 0.0
  %v560 = vmax.f32 %v354, 0.0
  %v561 = vmax.f32 %v357, 0.0
  %v562 = vmax.f32 %v362, 0.0
  %v563 = vmax.f32 %v365, 0.0
  %v564 = vmax.f32 %v370, 0.0
  %v565 = vmax.f32 %v373, 0.0
  %v566 = vmax.f32 %v378, 0.0
  %v567 = vmax.f32 %v381, 0.0
  %v568 = vmax.f32 %v386, 0.0
  %v569 = vmax.f32 %v389, 0.0
  %v570 = vmax.f32 %v394, 0.0
  %v571 = vmax.f32 %v397, 0.0
  %v572 = vmax.f32 %v402, 0.0
  %v573 = vmax.f32 %v405, 0.0
  %v574 = vmax.f32 %v410, 0.0
  %v575 = vmax.f32 %v413, 0.0
  %v576 = vmax.f32 %v418, 0.0
  %v577 = vmax.f32 %v421, 0.0
  %v578 = vmax.f32 %v426, 0.0
  %v579 = vmax.f32 %v429, 0.0
  %v580 = vmax.f32 %v434, 0.0
  %v581 = vmax.f32 %v437, 0.0
  %v582 = vmax.f32 %v442, 0.0
  %v583 = vmax.f32 %v445, 0.0
  %v584 = vmax.f32 %v450, 0.0
  %v585 = vmax.f32 %v453, 0.0
  %v586 = vmax.f32 %v458, 0.0
  %v587 = vmax.f32 %v461, 0.0
  %v588 = vmax.f32 %v466, 0.0
  %v589 = vmax.f32 %v469, 0.0
  %v590 = vmax.f32 %v474, 0.0
  %v591 = vmax.f32 %v477, 0.0
  %v592 = vmax.f32 %v482, 0.0
  %v593 = vmax.f32 %v485, 0.0
  %v594 = vmax.f32 %v490, 0.0
  %v595 = vmax.f32 %v493, 0.0
  %v596 = vmax.f32 %v498, 0.0
  %v597 = vmax.f32 %v501, 0.0
  %v598 = vmax.f32 %v506, 0.0
  %v599 = vmax.f32 %v509, 0.0
  %v600 = vmax.f32 %v514, 0.0
  %v601 = vmax.f32 %v517, 0.0
  %v602 = vmax.f32 %v522, 0.0
  %v603 = vmax.f32 %v525, 0.0
  %v604 = vmax.f32 %v530, 0.0
  %v605 = vmax.f32 %v533, 0.0
  %v606 = vmax.f32 %v538, 0.0
  %v607 = vmax.f32 %v541, 0.0
  %v608 = vpack.c.bf16 %v545, %v544
  %v609 = vpack.c.bf16 %v547, %v546
  %v610 = vpack.c.bf16 %v549, %v548
  %v611 = vpack.c.bf16 %v551, %v550
  %v612 = vpack.c.bf16 %v553, %v552
  %v613 = vpack.c.bf16 %v555, %v554
  %v614 = vpack.c.bf16 %v557, %v556
  %v615 = vpack.c.bf16 %v559, %v558
  %v616 = vpack.c.bf16 %v561, %v560
  %v617 = vpack.c.bf16 %v563, %v562
  %v618 = vpack.c.bf16 %v565, %v564
  %v619 = vpack.c.bf16 %v567, %v566
  %v620 = vpack.c.bf16 %v569, %v568
  %v621 = vpack.c.bf16 %v571, %v570
  %v622 = vpack.c.bf16 %v573, %v572
  %v623 = vpack.c.bf16 %v575, %v574
  %v624 = vpack.c.bf16 %v577, %v576
  %v625 = vpack.c.bf16 %v579, %v578
  %v626 = vpack.c.bf16 %v581, %v580
  %v627 = vpack.c.bf16 %v583, %v582
  %v628 = vpack.c.bf16 %v585, %v584
  %v629 = vpack.c.bf16 %v587, %v586
  %v630 = vpack.c.bf16 %v589, %v588
  %v631 = vpack.c.bf16 %v591, %v590
  %v632 = vpack.c.bf16 %v593, %v592
  %v633 = vpack.c.bf16 %v595, %v594
  %v634 = vpack.c.bf16 %v597, %v596
  %v635 = vpack.c.bf16 %v599, %v598
  %v636 = vpack.c.bf16 %v601, %v600
  %v637 = vpack.c.bf16 %v603, %v602
  %v638 = vpack.c.bf16 %v605, %v604
  %v639 = vpack.c.bf16 %v607, %v606
  %v640 = vld [vmem:[%s3] sm:$0xf]
  %v641 = vld [vmem:[%s3 + $0x4] sm:$0xf]
  %v642 = vld [vmem:[%s3 + $0x8] sm:$0xf]
  %v643 = vld [vmem:[%s3 + $0xc] sm:$0xf]
  %v644 = vld [vmem:[%s3 + $0x10] sm:$0xf]
  %v645 = vld [vmem:[%s3 + $0x14] sm:$0xf]
  %v646 = vld [vmem:[%s3 + $0x18] sm:$0xf]
  %v647 = vld [vmem:[%s3 + $0x1c] sm:$0xf]
  %v648 = vld [vmem:[%s4] sm:$0x1]
  %v650 = vlaneseq
  %v651 = vshrl.u32 %v650, 7
  %v652 = vsub.s32 0, %v651
  %v653 = vrot.slane %v648, %v652
  %v663 = vunpack.c.l.b16 %v640
  %v664 = vunpack.c.l.b16 %v641
  %v665 = vunpack.c.l.b16 %v642
  %v666 = vunpack.c.l.b16 %v643
  %v667 = vunpack.c.l.b16 %v644
  %v668 = vunpack.c.l.b16 %v645
  %v669 = vunpack.c.l.b16 %v646
  %v670 = vunpack.c.l.b16 %v647
  %v671 = vpack.c.b16 %v664, %v663
  %v672 = vpack.c.b16 %v666, %v665
  %v673 = vpack.c.b16 %v668, %v667
  %v674 = vpack.c.b16 %v670, %v669
  %vm679 = vcmask 523264
  %v681 = vsel %vm679, %v608, 0
  %v684 = vsel %vm679, %v609, 0
  %v687 = vsel %vm679, %v610, 0
  %v690 = vsel %vm679, %v611, 0
  %v693 = vsel %vm679, %v612, 0
  %v696 = vsel %vm679, %v613, 0
  %v699 = vsel %vm679, %v614, 0
  %v702 = vsel %vm679, %v615, 0
  %v705 = vsel %vm679, %v616, 0
  %v708 = vsel %vm679, %v617, 0
  %v711 = vsel %vm679, %v618, 0
  %v714 = vsel %vm679, %v619, 0
  %v717 = vsel %vm679, %v620, 0
  %v720 = vsel %vm679, %v621, 0
  %v723 = vsel %vm679, %v622, 0
  %v726 = vsel %vm679, %v623, 0
  %v729 = vsel %vm679, %v624, 0
  %v732 = vsel %vm679, %v625, 0
  %v735 = vsel %vm679, %v626, 0
  %v738 = vsel %vm679, %v627, 0
  %v741 = vsel %vm679, %v628, 0
  %v744 = vsel %vm679, %v629, 0
  %v747 = vsel %vm679, %v630, 0
  %v750 = vsel %vm679, %v631, 0
  %v753 = vsel %vm679, %v632, 0
  %v756 = vsel %vm679, %v633, 0
  %v759 = vsel %vm679, %v634, 0
  %v762 = vsel %vm679, %v635, 0
  %v765 = vsel %vm679, %v636, 0
  %v768 = vsel %vm679, %v637, 0
  %v771 = vsel %vm679, %v638, 0
  %v774 = vsel %vm679, %v639, 0
  %776 = vmatprep.subr.bf16.mxu0 0
  %777 = vmatpush1.bf16.msra.mxu0 %v671
  %778 = vmatprep.subr.bf16.mxu0 0
  %779 = vmatpush1.bf16.msra.mxu0 %v672
  %780 = vmatprep.subr.bf16.mxu0 0
  %781 = vmatpush1.bf16.msra.mxu0 %v673
  %782 = vmatprep.subr.bf16.mxu0 0
  %783 = vmatpush1.bf16.msra.mxu0 %v674
  %784 = vmatprep.subr.bf16.mxu0 0
  %785 = vmatpush1.bf16.msra.mxu0 0
  %786 = vmatprep.subr.bf16.mxu0 0
  %787 = vmatpush1.bf16.msra.mxu0 0
  %788 = vmatprep.subr.bf16.mxu0 0
  %789 = vmatpush1.bf16.msra.mxu0 0
  %790 = vmatprep.subr.bf16.mxu0 0
  %791 = vmatpush1.bf16.msra.mxu0 0
  %792 = vmatprep.subr.bf16.mxu0 0
  %793 = vmatpush1.bf16.msra.mxu0 0
  %794 = vmatprep.subr.bf16.mxu0 0
  %795 = vmatpush1.bf16.msra.mxu0 0
  %796 = vmatprep.subr.bf16.mxu0 0
  %797 = vmatpush1.bf16.msra.mxu0 0
  %798 = vmatprep.subr.bf16.mxu0 0
  %799 = vmatpush1.bf16.msra.mxu0 0
  %800 = vmatprep.subr.bf16.mxu0 0
  %801 = vmatpush1.bf16.msra.mxu0 0
  %802 = vmatprep.subr.bf16.mxu0 0
  %803 = vmatpush1.bf16.msra.mxu0 0
  %804 = vmatprep.subr.bf16.mxu0 0
  %805 = vmatpush1.bf16.msra.mxu0 0
  %806 = vmatprep.subr.bf16.mxu0 0
  %807 = vmatpush1.bf16.msra.mxu0 0
  %808 = vmatprep.mubr.bf16.mxu0 0
  %809 = vmatmul.mubr.bf16.gmra.mrb[0].mxu0 %v681
  %v810 = vpop.f32.mrb[0].mxu0
  %v811 = vadd.f32 %v653, %v810
  %v812 = vpop.f32.mrb[0].mxu0
  %v813 = vpop.f32.mrb[0].mxu0
  %v814 = vadd.f32 %v653, %v813
  %v815 = vpop.f32.mrb[0].mxu0
  %816 = vmatprep.mubr.bf16.mxu0 0
  %817 = vmatmul.mubr.bf16.gmra.mrb[0].mxu0 %v684
  %v818 = vpop.f32.mrb[0].mxu0
  %v819 = vadd.f32 %v653, %v818
  %v820 = vpop.f32.mrb[0].mxu0
  %v821 = vpop.f32.mrb[0].mxu0
  %v822 = vadd.f32 %v653, %v821
  %v823 = vpop.f32.mrb[0].mxu0
  %824 = vmatprep.mubr.bf16.mxu0 0
  %825 = vmatmul.mubr.bf16.gmra.mrb[0].mxu0 %v687
  %v826 = vpop.f32.mrb[0].mxu0
  %v827 = vadd.f32 %v653, %v826
  %v828 = vpop.f32.mrb[0].mxu0
  %v829 = vpop.f32.mrb[0].mxu0
  %v830 = vadd.f32 %v653, %v829
  %v831 = vpop.f32.mrb[0].mxu0
  %832 = vmatprep.mubr.bf16.mxu0 0
  %833 = vmatmul.mubr.bf16.gmra.mrb[0].mxu0 %v690
  %v834 = vpop.f32.mrb[0].mxu0
  %v835 = vadd.f32 %v653, %v834
  %v836 = vpop.f32.mrb[0].mxu0
  %v837 = vpop.f32.mrb[0].mxu0
  %v838 = vadd.f32 %v653, %v837
  %v839 = vpop.f32.mrb[0].mxu0
  %840 = vmatprep.mubr.bf16.mxu0 0
  %841 = vmatmul.mubr.bf16.gmra.mrb[0].mxu0 %v693
  %v842 = vpop.f32.mrb[0].mxu0
  %v843 = vadd.f32 %v653, %v842
  %v844 = vpop.f32.mrb[0].mxu0
  %v845 = vpop.f32.mrb[0].mxu0
  %v846 = vadd.f32 %v653, %v845
  %v847 = vpop.f32.mrb[0].mxu0
  %848 = vmatprep.mubr.bf16.mxu0 0
  %849 = vmatmul.mubr.bf16.gmra.mrb[0].mxu0 %v696
  %v850 = vpop.f32.mrb[0].mxu0
  %v851 = vadd.f32 %v653, %v850
  %v852 = vpop.f32.mrb[0].mxu0
  %v853 = vpop.f32.mrb[0].mxu0
  %v854 = vadd.f32 %v653, %v853
  %v855 = vpop.f32.mrb[0].mxu0
  %856 = vmatprep.mubr.bf16.mxu0 0
  %857 = vmatmul.mubr.bf16.gmra.mrb[0].mxu0 %v699
  %v858 = vpop.f32.mrb[0].mxu0
  %v859 = vadd.f32 %v653, %v858
  %v860 = vpop.f32.mrb[0].mxu0
  %v861 = vpop.f32.mrb[0].mxu0
  %v862 = vadd.f32 %v653, %v861
  %v863 = vpop.f32.mrb[0].mxu0
  %864 = vmatprep.mubr.bf16.mxu0 0
  %865 = vmatmul.mubr.bf16.gmra.mrb[0].mxu0 %v702
  %v866 = vpop.f32.mrb[0].mxu0
  %v867 = vadd.f32 %v653, %v866
  %v868 = vpop.f32.mrb[0].mxu0
  %v869 = vpop.f32.mrb[0].mxu0
  %v870 = vadd.f32 %v653, %v869
  %v871 = vpop.f32.mrb[0].mxu0
  %872 = vmatprep.mubr.bf16.mxu0 0
  %873 = vmatmul.mubr.bf16.gmra.mrb[0].mxu0 %v705
  %v874 = vpop.f32.mrb[0].mxu0
  %v875 = vadd.f32 %v653, %v874
  %v876 = vpop.f32.mrb[0].mxu0
  %v877 = vpop.f32.mrb[0].mxu0
  %v878 = vadd.f32 %v653, %v877
  %v879 = vpop.f32.mrb[0].mxu0
  %880 = vmatprep.mubr.bf16.mxu0 0
  %881 = vmatmul.mubr.bf16.gmra.mrb[0].mxu0 %v708
  %v882 = vpop.f32.mrb[0].mxu0
  %v883 = vadd.f32 %v653, %v882
  %v884 = vpop.f32.mrb[0].mxu0
  %v885 = vpop.f32.mrb[0].mxu0
  %v886 = vadd.f32 %v653, %v885
  %v887 = vpop.f32.mrb[0].mxu0
  %888 = vmatprep.mubr.bf16.mxu0 0
  %889 = vmatmul.mubr.bf16.gmra.mrb[0].mxu0 %v711
  %v890 = vpop.f32.mrb[0].mxu0
  %v891 = vadd.f32 %v653, %v890
  %v892 = vpop.f32.mrb[0].mxu0
  %v893 = vpop.f32.mrb[0].mxu0
  %v894 = vadd.f32 %v653, %v893
  %v895 = vpop.f32.mrb[0].mxu0
  %896 = vmatprep.mubr.bf16.mxu0 0
  %897 = vmatmul.mubr.bf16.gmra.mrb[0].mxu0 %v714
  %v898 = vpop.f32.mrb[0].mxu0
  %v899 = vadd.f32 %v653, %v898
  %v900 = vpop.f32.mrb[0].mxu0
  %v901 = vpop.f32.mrb[0].mxu0
  %v902 = vadd.f32 %v653, %v901
  %v903 = vpop.f32.mrb[0].mxu0
  %904 = vmatprep.mubr.bf16.mxu0 0
  %905 = vmatmul.mubr.bf16.gmra.mrb[0].mxu0 %v717
  %v906 = vpop.f32.mrb[0].mxu0
  %v907 = vadd.f32 %v653, %v906
  %v908 = vpop.f32.mrb[0].mxu0
  %v909 = vpop.f32.mrb[0].mxu0
  %v910 = vadd.f32 %v653, %v909
  %v911 = vpop.f32.mrb[0].mxu0
  %912 = vmatprep.mubr.bf16.mxu0 0
  %913 = vmatmul.mubr.bf16.gmra.mrb[0].mxu0 %v720
  %v914 = vpop.f32.mrb[0].mxu0
  %v915 = vadd.f32 %v653, %v914
  %v916 = vpop.f32.mrb[0].mxu0
  %v917 = vpop.f32.mrb[0].mxu0
  %v918 = vadd.f32 %v653, %v917
  %v919 = vpop.f32.mrb[0].mxu0
  %920 = vmatprep.mubr.bf16.mxu0 0
  %921 = vmatmul.mubr.bf16.gmra.mrb[0].mxu0 %v723
  %v922 = vpop.f32.mrb[0].mxu0
  %v923 = vadd.f32 %v653, %v922
  %v924 = vpop.f32.mrb[0].mxu0
  %v925 = vpop.f32.mrb[0].mxu0
  %v926 = vadd.f32 %v653, %v925
  %v927 = vpop.f32.mrb[0].mxu0
  %928 = vmatprep.mubr.bf16.mxu0 0
  %929 = vmatmul.mubr.bf16.gmra.mrb[0].mxu0 %v726
  %v930 = vpop.f32.mrb[0].mxu0
  %v931 = vadd.f32 %v653, %v930
  %v932 = vpop.f32.mrb[0].mxu0
  %v933 = vpop.f32.mrb[0].mxu0
  %v934 = vadd.f32 %v653, %v933
  %v935 = vpop.f32.mrb[0].mxu0
  %936 = vmatprep.mubr.bf16.mxu0 0
  %937 = vmatmul.mubr.bf16.gmra.mrb[0].mxu0 %v729
  %v938 = vpop.f32.mrb[0].mxu0
  %v939 = vadd.f32 %v653, %v938
  %v940 = vpop.f32.mrb[0].mxu0
  %v941 = vpop.f32.mrb[0].mxu0
  %v942 = vadd.f32 %v653, %v941
  %v943 = vpop.f32.mrb[0].mxu0
  %944 = vmatprep.mubr.bf16.mxu0 0
  %945 = vmatmul.mubr.bf16.gmra.mrb[0].mxu0 %v732
  %v946 = vpop.f32.mrb[0].mxu0
  %v947 = vadd.f32 %v653, %v946
  %v948 = vpop.f32.mrb[0].mxu0
  %v949 = vpop.f32.mrb[0].mxu0
  %v950 = vadd.f32 %v653, %v949
  %v951 = vpop.f32.mrb[0].mxu0
  %952 = vmatprep.mubr.bf16.mxu0 0
  %953 = vmatmul.mubr.bf16.gmra.mrb[0].mxu0 %v735
  %v954 = vpop.f32.mrb[0].mxu0
  %v955 = vadd.f32 %v653, %v954
  %v956 = vpop.f32.mrb[0].mxu0
  %v957 = vpop.f32.mrb[0].mxu0
  %v958 = vadd.f32 %v653, %v957
  %v959 = vpop.f32.mrb[0].mxu0
  %960 = vmatprep.mubr.bf16.mxu0 0
  %961 = vmatmul.mubr.bf16.gmra.mrb[0].mxu0 %v738
  %v962 = vpop.f32.mrb[0].mxu0
  %v963 = vadd.f32 %v653, %v962
  %v964 = vpop.f32.mrb[0].mxu0
  %v965 = vpop.f32.mrb[0].mxu0
  %v966 = vadd.f32 %v653, %v965
  %v967 = vpop.f32.mrb[0].mxu0
  %968 = vmatprep.mubr.bf16.mxu0 0
  %969 = vmatmul.mubr.bf16.gmra.mrb[0].mxu0 %v741
  %v970 = vpop.f32.mrb[0].mxu0
  %v971 = vadd.f32 %v653, %v970
  %v972 = vpop.f32.mrb[0].mxu0
  %v973 = vpop.f32.mrb[0].mxu0
  %v974 = vadd.f32 %v653, %v973
  %v975 = vpop.f32.mrb[0].mxu0
  %976 = vmatprep.mubr.bf16.mxu0 0
  %977 = vmatmul.mubr.bf16.gmra.mrb[0].mxu0 %v744
  %v978 = vpop.f32.mrb[0].mxu0
  %v979 = vadd.f32 %v653, %v978
  %v980 = vpop.f32.mrb[0].mxu0
  %v981 = vpop.f32.mrb[0].mxu0
  %v982 = vadd.f32 %v653, %v981
  %v983 = vpop.f32.mrb[0].mxu0
  %984 = vmatprep.mubr.bf16.mxu0 0
  %985 = vmatmul.mubr.bf16.gmra.mrb[0].mxu0 %v747
  %v986 = vpop.f32.mrb[0].mxu0
  %v987 = vadd.f32 %v653, %v986
  %v988 = vpop.f32.mrb[0].mxu0
  %v989 = vpop.f32.mrb[0].mxu0
  %v990 = vadd.f32 %v653, %v989
  %v991 = vpop.f32.mrb[0].mxu0
  %992 = vmatprep.mubr.bf16.mxu0 0
  %993 = vmatmul.mubr.bf16.gmra.mrb[0].mxu0 %v750
  %v994 = vpop.f32.mrb[0].mxu0
  %v995 = vadd.f32 %v653, %v994
  %v996 = vpop.f32.mrb[0].mxu0
  %v997 = vpop.f32.mrb[0].mxu0
  %v998 = vadd.f32 %v653, %v997
  %v999 = vpop.f32.mrb[0].mxu0
  %1000 = vmatprep.mubr.bf16.mxu0 0
  %1001 = vmatmul.mubr.bf16.gmra.mrb[0].mxu0 %v753
  %v1002 = vpop.f32.mrb[0].mxu0
  %v1003 = vadd.f32 %v653, %v1002
  %v1004 = vpop.f32.mrb[0].mxu0
  %v1005 = vpop.f32.mrb[0].mxu0
  %v1006 = vadd.f32 %v653, %v1005
  %v1007 = vpop.f32.mrb[0].mxu0
  %1008 = vmatprep.mubr.bf16.mxu0 0
  %1009 = vmatmul.mubr.bf16.gmra.mrb[0].mxu0 %v756
  %v1010 = vpop.f32.mrb[0].mxu0
  %v1011 = vadd.f32 %v653, %v1010
  %v1012 = vpop.f32.mrb[0].mxu0
  %v1013 = vpop.f32.mrb[0].mxu0
  %v1014 = vadd.f32 %v653, %v1013
  %v1015 = vpop.f32.mrb[0].mxu0
  %1016 = vmatprep.mubr.bf16.mxu0 0
  %1017 = vmatmul.mubr.bf16.gmra.mrb[0].mxu0 %v759
  %v1018 = vpop.f32.mrb[0].mxu0
  %v1019 = vadd.f32 %v653, %v1018
  %v1020 = vpop.f32.mrb[0].mxu0
  %v1021 = vpop.f32.mrb[0].mxu0
  %v1022 = vadd.f32 %v653, %v1021
  %v1023 = vpop.f32.mrb[0].mxu0
  %1024 = vmatprep.mubr.bf16.mxu0 0
  %1025 = vmatmul.mubr.bf16.gmra.mrb[0].mxu0 %v762
  %v1026 = vpop.f32.mrb[0].mxu0
  %v1027 = vadd.f32 %v653, %v1026
  %v1028 = vpop.f32.mrb[0].mxu0
  %v1029 = vpop.f32.mrb[0].mxu0
  %v1030 = vadd.f32 %v653, %v1029
  %v1031 = vpop.f32.mrb[0].mxu0
  %1032 = vmatprep.mubr.bf16.mxu0 0
  %1033 = vmatmul.mubr.bf16.gmra.mrb[0].mxu0 %v765
  %v1034 = vpop.f32.mrb[0].mxu0
  %v1035 = vadd.f32 %v653, %v1034
  %v1036 = vpop.f32.mrb[0].mxu0
  %v1037 = vpop.f32.mrb[0].mxu0
  %v1038 = vadd.f32 %v653, %v1037
  %v1039 = vpop.f32.mrb[0].mxu0
  %1040 = vmatprep.mubr.bf16.mxu0 0
  %1041 = vmatmul.mubr.bf16.gmra.mrb[0].mxu0 %v768
  %v1042 = vpop.f32.mrb[0].mxu0
  %v1043 = vadd.f32 %v653, %v1042
  %v1044 = vpop.f32.mrb[0].mxu0
  %v1045 = vpop.f32.mrb[0].mxu0
  %v1046 = vadd.f32 %v653, %v1045
  %v1047 = vpop.f32.mrb[0].mxu0
  %1048 = vmatprep.mubr.bf16.mxu0 0
  %1049 = vmatmul.mubr.bf16.gmra.mrb[0].mxu0 %v771
  %v1050 = vpop.f32.mrb[0].mxu0
  %v1051 = vadd.f32 %v653, %v1050
  %v1052 = vpop.f32.mrb[0].mxu0
  %v1053 = vpop.f32.mrb[0].mxu0
  %v1054 = vadd.f32 %v653, %v1053
  %v1055 = vpop.f32.mrb[0].mxu0
  %1056 = vmatprep.mubr.bf16.mxu0 0
  %1057 = vmatmul.mubr.bf16.gmra.mrb[0].mxu0 %v774
  %v1058 = vpop.f32.mrb[0].mxu0
  %v1059 = vadd.f32 %v653, %v1058
  %v1060 = vpop.f32.mrb[0].mxu0
  %v1061 = vpop.f32.mrb[0].mxu0
  %v1062 = vadd.f32 %v653, %v1061
  %v1063 = vpop.f32.mrb[0].mxu0
  %1064 = vdwg.mxu0
  %v1065 = vmax.f32 %v811, 0.0
  %v1066 = vmax.f32 %v814, 0.0
  %v1067 = vmax.f32 %v819, 0.0
  %v1068 = vmax.f32 %v822, 0.0
  %v1069 = vmax.f32 %v827, 0.0
  %v1070 = vmax.f32 %v830, 0.0
  %v1071 = vmax.f32 %v835, 0.0
  %v1072 = vmax.f32 %v838, 0.0
  %v1073 = vmax.f32 %v843, 0.0
  %v1074 = vmax.f32 %v846, 0.0
  %v1075 = vmax.f32 %v851, 0.0
  %v1076 = vmax.f32 %v854, 0.0
  %v1077 = vmax.f32 %v859, 0.0
  %v1078 = vmax.f32 %v862, 0.0
  %v1079 = vmax.f32 %v867, 0.0
  %v1080 = vmax.f32 %v870, 0.0
  %v1081 = vmax.f32 %v875, 0.0
  %v1082 = vmax.f32 %v878, 0.0
  %v1083 = vmax.f32 %v883, 0.0
  %v1084 = vmax.f32 %v886, 0.0
  %v1085 = vmax.f32 %v891, 0.0
  %v1086 = vmax.f32 %v894, 0.0
  %v1087 = vmax.f32 %v899, 0.0
  %v1088 = vmax.f32 %v902, 0.0
  %v1089 = vmax.f32 %v907, 0.0
  %v1090 = vmax.f32 %v910, 0.0
  %v1091 = vmax.f32 %v915, 0.0
  %v1092 = vmax.f32 %v918, 0.0
  %v1093 = vmax.f32 %v923, 0.0
  %v1094 = vmax.f32 %v926, 0.0
  %v1095 = vmax.f32 %v931, 0.0
  %v1096 = vmax.f32 %v934, 0.0
  %v1097 = vmax.f32 %v939, 0.0
  %v1098 = vmax.f32 %v942, 0.0
  %v1099 = vmax.f32 %v947, 0.0
  %v1100 = vmax.f32 %v950, 0.0
  %v1101 = vmax.f32 %v955, 0.0
  %v1102 = vmax.f32 %v958, 0.0
  %v1103 = vmax.f32 %v963, 0.0
  %v1104 = vmax.f32 %v966, 0.0
  %v1105 = vmax.f32 %v971, 0.0
  %v1106 = vmax.f32 %v974, 0.0
  %v1107 = vmax.f32 %v979, 0.0
  %v1108 = vmax.f32 %v982, 0.0
  %v1109 = vmax.f32 %v987, 0.0
  %v1110 = vmax.f32 %v990, 0.0
  %v1111 = vmax.f32 %v995, 0.0
  %v1112 = vmax.f32 %v998, 0.0
  %v1113 = vmax.f32 %v1003, 0.0
  %v1114 = vmax.f32 %v1006, 0.0
  %v1115 = vmax.f32 %v1011, 0.0
  %v1116 = vmax.f32 %v1014, 0.0
  %v1117 = vmax.f32 %v1019, 0.0
  %v1118 = vmax.f32 %v1022, 0.0
  %v1119 = vmax.f32 %v1027, 0.0
  %v1120 = vmax.f32 %v1030, 0.0
  %v1121 = vmax.f32 %v1035, 0.0
  %v1122 = vmax.f32 %v1038, 0.0
  %v1123 = vmax.f32 %v1043, 0.0
  %v1124 = vmax.f32 %v1046, 0.0
  %v1125 = vmax.f32 %v1051, 0.0
  %v1126 = vmax.f32 %v1054, 0.0
  %v1127 = vmax.f32 %v1059, 0.0
  %v1128 = vmax.f32 %v1062, 0.0
  %v1129 = vpack.c.bf16 %v1066, %v1065
  %v1130 = vpack.c.bf16 %v1068, %v1067
  %v1131 = vpack.c.bf16 %v1070, %v1069
  %v1132 = vpack.c.bf16 %v1072, %v1071
  %v1133 = vpack.c.bf16 %v1074, %v1073
  %v1134 = vpack.c.bf16 %v1076, %v1075
  %v1135 = vpack.c.bf16 %v1078, %v1077
  %v1136 = vpack.c.bf16 %v1080, %v1079
  %v1137 = vpack.c.bf16 %v1082, %v1081
  %v1138 = vpack.c.bf16 %v1084, %v1083
  %v1139 = vpack.c.bf16 %v1086, %v1085
  %v1140 = vpack.c.bf16 %v1088, %v1087
  %v1141 = vpack.c.bf16 %v1090, %v1089
  %v1142 = vpack.c.bf16 %v1092, %v1091
  %v1143 = vpack.c.bf16 %v1094, %v1093
  %v1144 = vpack.c.bf16 %v1096, %v1095
  %v1145 = vpack.c.bf16 %v1098, %v1097
  %v1146 = vpack.c.bf16 %v1100, %v1099
  %v1147 = vpack.c.bf16 %v1102, %v1101
  %v1148 = vpack.c.bf16 %v1104, %v1103
  %v1149 = vpack.c.bf16 %v1106, %v1105
  %v1150 = vpack.c.bf16 %v1108, %v1107
  %v1151 = vpack.c.bf16 %v1110, %v1109
  %v1152 = vpack.c.bf16 %v1112, %v1111
  %v1153 = vpack.c.bf16 %v1114, %v1113
  %v1154 = vpack.c.bf16 %v1116, %v1115
  %v1155 = vpack.c.bf16 %v1118, %v1117
  %v1156 = vpack.c.bf16 %v1120, %v1119
  %v1157 = vpack.c.bf16 %v1122, %v1121
  %v1158 = vpack.c.bf16 %v1124, %v1123
  %v1159 = vpack.c.bf16 %v1126, %v1125
  %v1160 = vpack.c.bf16 %v1128, %v1127
  %v1161 = vld [vmem:[%s5] sm:$0xf]
  %v1162 = vld [vmem:[%s5 + $0x4] sm:$0xf]
  %v1163 = vld [vmem:[%s5 + $0x8] sm:$0xf]
  %v1164 = vld [vmem:[%s5 + $0xc] sm:$0xf]
  %v1165 = vld [vmem:[%s5 + $0x10] sm:$0xf]
  %v1166 = vld [vmem:[%s5 + $0x14] sm:$0xf]
  %v1167 = vld [vmem:[%s5 + $0x18] sm:$0xf]
  %v1168 = vld [vmem:[%s5 + $0x1c] sm:$0xf]
  %v1169 = vld [vmem:[%s6] sm:$0x1]
  %v1171 = vlaneseq
  %v1172 = vshrl.u32 %v1171, 7
  %v1173 = vsub.s32 0, %v1172
  %v1174 = vrot.slane %v1169, %v1173
  %v1184 = vunpack.c.l.b16 %v1161
  %v1185 = vunpack.c.l.b16 %v1162
  %v1186 = vunpack.c.l.b16 %v1163
  %v1187 = vunpack.c.l.b16 %v1164
  %v1188 = vunpack.c.l.b16 %v1165
  %v1189 = vunpack.c.l.b16 %v1166
  %v1190 = vunpack.c.l.b16 %v1167
  %v1191 = vunpack.c.l.b16 %v1168
  %v1192 = vpack.c.b16 %v1185, %v1184
  %v1193 = vpack.c.b16 %v1187, %v1186
  %v1194 = vpack.c.b16 %v1189, %v1188
  %v1195 = vpack.c.b16 %v1191, %v1190
  %v1201 = vsel %vm679, %v1129, 0
  %v1204 = vsel %vm679, %v1130, 0
  %v1207 = vsel %vm679, %v1131, 0
  %v1210 = vsel %vm679, %v1132, 0
  %v1213 = vsel %vm679, %v1133, 0
  %v1216 = vsel %vm679, %v1134, 0
  %v1219 = vsel %vm679, %v1135, 0
  %v1222 = vsel %vm679, %v1136, 0
  %v1225 = vsel %vm679, %v1137, 0
  %v1228 = vsel %vm679, %v1138, 0
  %v1231 = vsel %vm679, %v1139, 0
  %v1234 = vsel %vm679, %v1140, 0
  %v1237 = vsel %vm679, %v1141, 0
  %v1240 = vsel %vm679, %v1142, 0
  %v1243 = vsel %vm679, %v1143, 0
  %v1246 = vsel %vm679, %v1144, 0
  %v1249 = vsel %vm679, %v1145, 0
  %v1252 = vsel %vm679, %v1146, 0
  %v1255 = vsel %vm679, %v1147, 0
  %v1258 = vsel %vm679, %v1148, 0
  %v1261 = vsel %vm679, %v1149, 0
  %v1264 = vsel %vm679, %v1150, 0
  %v1267 = vsel %vm679, %v1151, 0
  %v1270 = vsel %vm679, %v1152, 0
  %v1273 = vsel %vm679, %v1153, 0
  %v1276 = vsel %vm679, %v1154, 0
  %v1279 = vsel %vm679, %v1155, 0
  %v1282 = vsel %vm679, %v1156, 0
  %v1285 = vsel %vm679, %v1157, 0
  %v1288 = vsel %vm679, %v1158, 0
  %v1291 = vsel %vm679, %v1159, 0
  %v1294 = vsel %vm679, %v1160, 0
  %1296 = vmatprep.subr.bf16.mxu0 0
  %1297 = vmatpush1.bf16.msra.mxu0 %v1192
  %1298 = vmatprep.subr.bf16.mxu0 0
  %1299 = vmatpush1.bf16.msra.mxu0 %v1193
  %1300 = vmatprep.subr.bf16.mxu0 0
  %1301 = vmatpush1.bf16.msra.mxu0 %v1194
  %1302 = vmatprep.subr.bf16.mxu0 0
  %1303 = vmatpush1.bf16.msra.mxu0 %v1195
  %1304 = vmatprep.subr.bf16.mxu0 0
  %1305 = vmatpush1.bf16.msra.mxu0 0
  %1306 = vmatprep.subr.bf16.mxu0 0
  %1307 = vmatpush1.bf16.msra.mxu0 0
  %1308 = vmatprep.subr.bf16.mxu0 0
  %1309 = vmatpush1.bf16.msra.mxu0 0
  %1310 = vmatprep.subr.bf16.mxu0 0
  %1311 = vmatpush1.bf16.msra.mxu0 0
  %1312 = vmatprep.subr.bf16.mxu0 0
  %1313 = vmatpush1.bf16.msra.mxu0 0
  %1314 = vmatprep.subr.bf16.mxu0 0
  %1315 = vmatpush1.bf16.msra.mxu0 0
  %1316 = vmatprep.subr.bf16.mxu0 0
  %1317 = vmatpush1.bf16.msra.mxu0 0
  %1318 = vmatprep.subr.bf16.mxu0 0
  %1319 = vmatpush1.bf16.msra.mxu0 0
  %1320 = vmatprep.subr.bf16.mxu0 0
  %1321 = vmatpush1.bf16.msra.mxu0 0
  %1322 = vmatprep.subr.bf16.mxu0 0
  %1323 = vmatpush1.bf16.msra.mxu0 0
  %1324 = vmatprep.subr.bf16.mxu0 0
  %1325 = vmatpush1.bf16.msra.mxu0 0
  %1326 = vmatprep.subr.bf16.mxu0 0
  %1327 = vmatpush1.bf16.msra.mxu0 0
  %1328 = vmatprep.mubr.bf16.mxu0 0
  %1329 = vmatmul.mubr.bf16.gmra.mrb[0].mxu0 %v1201
  %v1330 = vpop.f32.mrb[0].mxu0
  %v1331 = vadd.f32 %v1174, %v1330
  %v1332 = vpop.f32.mrb[0].mxu0
  %v1333 = vpop.f32.mrb[0].mxu0
  %v1334 = vadd.f32 %v1174, %v1333
  %v1335 = vpop.f32.mrb[0].mxu0
  %1336 = vmatprep.mubr.bf16.mxu0 0
  %1337 = vmatmul.mubr.bf16.gmra.mrb[0].mxu0 %v1204
  %v1338 = vpop.f32.mrb[0].mxu0
  %v1339 = vadd.f32 %v1174, %v1338
  %v1340 = vpop.f32.mrb[0].mxu0
  %v1341 = vpop.f32.mrb[0].mxu0
  %v1342 = vadd.f32 %v1174, %v1341
  %v1343 = vpop.f32.mrb[0].mxu0
  %1344 = vmatprep.mubr.bf16.mxu0 0
  %1345 = vmatmul.mubr.bf16.gmra.mrb[0].mxu0 %v1207
  %v1346 = vpop.f32.mrb[0].mxu0
  %v1347 = vadd.f32 %v1174, %v1346
  %v1348 = vpop.f32.mrb[0].mxu0
  %v1349 = vpop.f32.mrb[0].mxu0
  %v1350 = vadd.f32 %v1174, %v1349
  %v1351 = vpop.f32.mrb[0].mxu0
  %1352 = vmatprep.mubr.bf16.mxu0 0
  %1353 = vmatmul.mubr.bf16.gmra.mrb[0].mxu0 %v1210
  %v1354 = vpop.f32.mrb[0].mxu0
  %v1355 = vadd.f32 %v1174, %v1354
  %v1356 = vpop.f32.mrb[0].mxu0
  %v1357 = vpop.f32.mrb[0].mxu0
  %v1358 = vadd.f32 %v1174, %v1357
  %v1359 = vpop.f32.mrb[0].mxu0
  %1360 = vmatprep.mubr.bf16.mxu0 0
  %1361 = vmatmul.mubr.bf16.gmra.mrb[0].mxu0 %v1213
  %v1362 = vpop.f32.mrb[0].mxu0
  %v1363 = vadd.f32 %v1174, %v1362
  %v1364 = vpop.f32.mrb[0].mxu0
  %v1365 = vpop.f32.mrb[0].mxu0
  %v1366 = vadd.f32 %v1174, %v1365
  %v1367 = vpop.f32.mrb[0].mxu0
  %1368 = vmatprep.mubr.bf16.mxu0 0
  %1369 = vmatmul.mubr.bf16.gmra.mrb[0].mxu0 %v1216
  %v1370 = vpop.f32.mrb[0].mxu0
  %v1371 = vadd.f32 %v1174, %v1370
  %v1372 = vpop.f32.mrb[0].mxu0
  %v1373 = vpop.f32.mrb[0].mxu0
  %v1374 = vadd.f32 %v1174, %v1373
  %v1375 = vpop.f32.mrb[0].mxu0
  %1376 = vmatprep.mubr.bf16.mxu0 0
  %1377 = vmatmul.mubr.bf16.gmra.mrb[0].mxu0 %v1219
  %v1378 = vpop.f32.mrb[0].mxu0
  %v1379 = vadd.f32 %v1174, %v1378
  %v1380 = vpop.f32.mrb[0].mxu0
  %v1381 = vpop.f32.mrb[0].mxu0
  %v1382 = vadd.f32 %v1174, %v1381
  %v1383 = vpop.f32.mrb[0].mxu0
  %1384 = vmatprep.mubr.bf16.mxu0 0
  %1385 = vmatmul.mubr.bf16.gmra.mrb[0].mxu0 %v1222
  %v1386 = vpop.f32.mrb[0].mxu0
  %v1387 = vadd.f32 %v1174, %v1386
  %v1388 = vpop.f32.mrb[0].mxu0
  %v1389 = vpop.f32.mrb[0].mxu0
  %v1390 = vadd.f32 %v1174, %v1389
  %v1391 = vpop.f32.mrb[0].mxu0
  %1392 = vmatprep.mubr.bf16.mxu0 0
  %1393 = vmatmul.mubr.bf16.gmra.mrb[0].mxu0 %v1225
  %v1394 = vpop.f32.mrb[0].mxu0
  %v1395 = vadd.f32 %v1174, %v1394
  %v1396 = vpop.f32.mrb[0].mxu0
  %v1397 = vpop.f32.mrb[0].mxu0
  %v1398 = vadd.f32 %v1174, %v1397
  %v1399 = vpop.f32.mrb[0].mxu0
  %1400 = vmatprep.mubr.bf16.mxu0 0
  %1401 = vmatmul.mubr.bf16.gmra.mrb[0].mxu0 %v1228
  %v1402 = vpop.f32.mrb[0].mxu0
  %v1403 = vadd.f32 %v1174, %v1402
  %v1404 = vpop.f32.mrb[0].mxu0
  %v1405 = vpop.f32.mrb[0].mxu0
  %v1406 = vadd.f32 %v1174, %v1405
  %v1407 = vpop.f32.mrb[0].mxu0
  %1408 = vmatprep.mubr.bf16.mxu0 0
  %1409 = vmatmul.mubr.bf16.gmra.mrb[0].mxu0 %v1231
  %v1410 = vpop.f32.mrb[0].mxu0
  %v1411 = vadd.f32 %v1174, %v1410
  %v1412 = vpop.f32.mrb[0].mxu0
  %v1413 = vpop.f32.mrb[0].mxu0
  %v1414 = vadd.f32 %v1174, %v1413
  %v1415 = vpop.f32.mrb[0].mxu0
  %1416 = vmatprep.mubr.bf16.mxu0 0
  %1417 = vmatmul.mubr.bf16.gmra.mrb[0].mxu0 %v1234
  %v1418 = vpop.f32.mrb[0].mxu0
  %v1419 = vadd.f32 %v1174, %v1418
  %v1420 = vpop.f32.mrb[0].mxu0
  %v1421 = vpop.f32.mrb[0].mxu0
  %v1422 = vadd.f32 %v1174, %v1421
  %v1423 = vpop.f32.mrb[0].mxu0
  %1424 = vmatprep.mubr.bf16.mxu0 0
  %1425 = vmatmul.mubr.bf16.gmra.mrb[0].mxu0 %v1237
  %v1426 = vpop.f32.mrb[0].mxu0
  %v1427 = vadd.f32 %v1174, %v1426
  %v1428 = vpop.f32.mrb[0].mxu0
  %v1429 = vpop.f32.mrb[0].mxu0
  %v1430 = vadd.f32 %v1174, %v1429
  %v1431 = vpop.f32.mrb[0].mxu0
  %1432 = vmatprep.mubr.bf16.mxu0 0
  %1433 = vmatmul.mubr.bf16.gmra.mrb[0].mxu0 %v1240
  %v1434 = vpop.f32.mrb[0].mxu0
  %v1435 = vadd.f32 %v1174, %v1434
  %v1436 = vpop.f32.mrb[0].mxu0
  %v1437 = vpop.f32.mrb[0].mxu0
  %v1438 = vadd.f32 %v1174, %v1437
  %v1439 = vpop.f32.mrb[0].mxu0
  %1440 = vmatprep.mubr.bf16.mxu0 0
  %1441 = vmatmul.mubr.bf16.gmra.mrb[0].mxu0 %v1243
  %v1442 = vpop.f32.mrb[0].mxu0
  %v1443 = vadd.f32 %v1174, %v1442
  %v1444 = vpop.f32.mrb[0].mxu0
  %v1445 = vpop.f32.mrb[0].mxu0
  %v1446 = vadd.f32 %v1174, %v1445
  %v1447 = vpop.f32.mrb[0].mxu0
  %1448 = vmatprep.mubr.bf16.mxu0 0
  %1449 = vmatmul.mubr.bf16.gmra.mrb[0].mxu0 %v1246
  %v1450 = vpop.f32.mrb[0].mxu0
  %v1451 = vadd.f32 %v1174, %v1450
  %v1452 = vpop.f32.mrb[0].mxu0
  %v1453 = vpop.f32.mrb[0].mxu0
  %v1454 = vadd.f32 %v1174, %v1453
  %v1455 = vpop.f32.mrb[0].mxu0
  %1456 = vmatprep.mubr.bf16.mxu0 0
  %1457 = vmatmul.mubr.bf16.gmra.mrb[0].mxu0 %v1249
  %v1458 = vpop.f32.mrb[0].mxu0
  %v1459 = vadd.f32 %v1174, %v1458
  %v1460 = vpop.f32.mrb[0].mxu0
  %v1461 = vpop.f32.mrb[0].mxu0
  %v1462 = vadd.f32 %v1174, %v1461
  %v1463 = vpop.f32.mrb[0].mxu0
  %1464 = vmatprep.mubr.bf16.mxu0 0
  %1465 = vmatmul.mubr.bf16.gmra.mrb[0].mxu0 %v1252
  %v1466 = vpop.f32.mrb[0].mxu0
  %v1467 = vadd.f32 %v1174, %v1466
  %v1468 = vpop.f32.mrb[0].mxu0
  %v1469 = vpop.f32.mrb[0].mxu0
  %v1470 = vadd.f32 %v1174, %v1469
  %v1471 = vpop.f32.mrb[0].mxu0
  %1472 = vmatprep.mubr.bf16.mxu0 0
  %1473 = vmatmul.mubr.bf16.gmra.mrb[0].mxu0 %v1255
  %v1474 = vpop.f32.mrb[0].mxu0
  %v1475 = vadd.f32 %v1174, %v1474
  %v1476 = vpop.f32.mrb[0].mxu0
  %v1477 = vpop.f32.mrb[0].mxu0
  %v1478 = vadd.f32 %v1174, %v1477
  %v1479 = vpop.f32.mrb[0].mxu0
  %1480 = vmatprep.mubr.bf16.mxu0 0
  %1481 = vmatmul.mubr.bf16.gmra.mrb[0].mxu0 %v1258
  %v1482 = vpop.f32.mrb[0].mxu0
  %v1483 = vadd.f32 %v1174, %v1482
  %v1484 = vpop.f32.mrb[0].mxu0
  %v1485 = vpop.f32.mrb[0].mxu0
  %v1486 = vadd.f32 %v1174, %v1485
  %v1487 = vpop.f32.mrb[0].mxu0
  %1488 = vmatprep.mubr.bf16.mxu0 0
  %1489 = vmatmul.mubr.bf16.gmra.mrb[0].mxu0 %v1261
  %v1490 = vpop.f32.mrb[0].mxu0
  %v1491 = vadd.f32 %v1174, %v1490
  %v1492 = vpop.f32.mrb[0].mxu0
  %v1493 = vpop.f32.mrb[0].mxu0
  %v1494 = vadd.f32 %v1174, %v1493
  %v1495 = vpop.f32.mrb[0].mxu0
  %1496 = vmatprep.mubr.bf16.mxu0 0
  %1497 = vmatmul.mubr.bf16.gmra.mrb[0].mxu0 %v1264
  %v1498 = vpop.f32.mrb[0].mxu0
  %v1499 = vadd.f32 %v1174, %v1498
  %v1500 = vpop.f32.mrb[0].mxu0
  %v1501 = vpop.f32.mrb[0].mxu0
  %v1502 = vadd.f32 %v1174, %v1501
  %v1503 = vpop.f32.mrb[0].mxu0
  %1504 = vmatprep.mubr.bf16.mxu0 0
  %1505 = vmatmul.mubr.bf16.gmra.mrb[0].mxu0 %v1267
  %v1506 = vpop.f32.mrb[0].mxu0
  %v1507 = vadd.f32 %v1174, %v1506
  %v1508 = vpop.f32.mrb[0].mxu0
  %v1509 = vpop.f32.mrb[0].mxu0
  %v1510 = vadd.f32 %v1174, %v1509
  %v1511 = vpop.f32.mrb[0].mxu0
  %1512 = vmatprep.mubr.bf16.mxu0 0
  %1513 = vmatmul.mubr.bf16.gmra.mrb[0].mxu0 %v1270
  %v1514 = vpop.f32.mrb[0].mxu0
  %v1515 = vadd.f32 %v1174, %v1514
  %v1516 = vpop.f32.mrb[0].mxu0
  %v1517 = vpop.f32.mrb[0].mxu0
  %v1518 = vadd.f32 %v1174, %v1517
  %v1519 = vpop.f32.mrb[0].mxu0
  %1520 = vmatprep.mubr.bf16.mxu0 0
  %1521 = vmatmul.mubr.bf16.gmra.mrb[0].mxu0 %v1273
  %v1522 = vpop.f32.mrb[0].mxu0
  %v1523 = vadd.f32 %v1174, %v1522
  %v1524 = vpop.f32.mrb[0].mxu0
  %v1525 = vpop.f32.mrb[0].mxu0
  %v1526 = vadd.f32 %v1174, %v1525
  %v1527 = vpop.f32.mrb[0].mxu0
  %1528 = vmatprep.mubr.bf16.mxu0 0
  %1529 = vmatmul.mubr.bf16.gmra.mrb[0].mxu0 %v1276
  %v1530 = vpop.f32.mrb[0].mxu0
  %v1531 = vadd.f32 %v1174, %v1530
  %v1532 = vpop.f32.mrb[0].mxu0
  %v1533 = vpop.f32.mrb[0].mxu0
  %v1534 = vadd.f32 %v1174, %v1533
  %v1535 = vpop.f32.mrb[0].mxu0
  %1536 = vmatprep.mubr.bf16.mxu0 0
  %1537 = vmatmul.mubr.bf16.gmra.mrb[0].mxu0 %v1279
  %v1538 = vpop.f32.mrb[0].mxu0
  %v1539 = vadd.f32 %v1174, %v1538
  %v1540 = vpop.f32.mrb[0].mxu0
  %v1541 = vpop.f32.mrb[0].mxu0
  %v1542 = vadd.f32 %v1174, %v1541
  %v1543 = vpop.f32.mrb[0].mxu0
  %1544 = vmatprep.mubr.bf16.mxu0 0
  %1545 = vmatmul.mubr.bf16.gmra.mrb[0].mxu0 %v1282
  %v1546 = vpop.f32.mrb[0].mxu0
  %v1547 = vadd.f32 %v1174, %v1546
  %v1548 = vpop.f32.mrb[0].mxu0
  %v1549 = vpop.f32.mrb[0].mxu0
  %v1550 = vadd.f32 %v1174, %v1549
  %v1551 = vpop.f32.mrb[0].mxu0
  %1552 = vmatprep.mubr.bf16.mxu0 0
  %1553 = vmatmul.mubr.bf16.gmra.mrb[0].mxu0 %v1285
  %v1554 = vpop.f32.mrb[0].mxu0
  %v1555 = vadd.f32 %v1174, %v1554
  %v1556 = vpop.f32.mrb[0].mxu0
  %v1557 = vpop.f32.mrb[0].mxu0
  %v1558 = vadd.f32 %v1174, %v1557
  %v1559 = vpop.f32.mrb[0].mxu0
  %1560 = vmatprep.mubr.bf16.mxu0 0
  %1561 = vmatmul.mubr.bf16.gmra.mrb[0].mxu0 %v1288
  %v1562 = vpop.f32.mrb[0].mxu0
  %v1563 = vadd.f32 %v1174, %v1562
  %v1564 = vpop.f32.mrb[0].mxu0
  %v1565 = vpop.f32.mrb[0].mxu0
  %v1566 = vadd.f32 %v1174, %v1565
  %v1567 = vpop.f32.mrb[0].mxu0
  %1568 = vmatprep.mubr.bf16.mxu0 0
  %1569 = vmatmul.mubr.bf16.gmra.mrb[0].mxu0 %v1291
  %v1570 = vpop.f32.mrb[0].mxu0
  %v1571 = vadd.f32 %v1174, %v1570
  %v1572 = vpop.f32.mrb[0].mxu0
  %v1573 = vpop.f32.mrb[0].mxu0
  %v1574 = vadd.f32 %v1174, %v1573
  %v1575 = vpop.f32.mrb[0].mxu0
  %1576 = vmatprep.mubr.bf16.mxu0 0
  %1577 = vmatmul.mubr.bf16.gmra.mrb[0].mxu0 %v1294
  %v1578 = vpop.f32.mrb[0].mxu0
  %v1579 = vadd.f32 %v1174, %v1578
  %v1580 = vpop.f32.mrb[0].mxu0
  %v1581 = vpop.f32.mrb[0].mxu0
  %v1582 = vadd.f32 %v1174, %v1581
  %v1583 = vpop.f32.mrb[0].mxu0
  %1584 = vdwg.mxu0
  %v1585 = vadd.f32 %v1331, %v39
  %v1586 = vadd.f32 %v1334, %v40
  %v1587 = vadd.f32 %v1339, %v41
  %v1588 = vadd.f32 %v1342, %v42
  %v1589 = vadd.f32 %v1347, %v43
  %v1590 = vadd.f32 %v1350, %v44
  %v1591 = vadd.f32 %v1355, %v45
  %v1592 = vadd.f32 %v1358, %v46
  %v1593 = vadd.f32 %v1363, %v47
  %v1594 = vadd.f32 %v1366, %v48
  %v1595 = vadd.f32 %v1371, %v49
  %v1596 = vadd.f32 %v1374, %v50
  %v1597 = vadd.f32 %v1379, %v51
  %v1598 = vadd.f32 %v1382, %v52
  %v1599 = vadd.f32 %v1387, %v53
  %v1600 = vadd.f32 %v1390, %v54
  %v1601 = vadd.f32 %v1395, %v55
  %v1602 = vadd.f32 %v1398, %v56
  %v1603 = vadd.f32 %v1403, %v57
  %v1604 = vadd.f32 %v1406, %v58
  %v1605 = vadd.f32 %v1411, %v59
  %v1606 = vadd.f32 %v1414, %v60
  %v1607 = vadd.f32 %v1419, %v61
  %v1608 = vadd.f32 %v1422, %v62
  %v1609 = vadd.f32 %v1427, %v63
  %v1610 = vadd.f32 %v1430, %v64
  %v1611 = vadd.f32 %v1435, %v65
  %v1612 = vadd.f32 %v1438, %v66
  %v1613 = vadd.f32 %v1443, %v67
  %v1614 = vadd.f32 %v1446, %v68
  %v1615 = vadd.f32 %v1451, %v69
  %v1616 = vadd.f32 %v1454, %v70
  %v1617 = vadd.f32 %v1459, %v71
  %v1618 = vadd.f32 %v1462, %v72
  %v1619 = vadd.f32 %v1467, %v73
  %v1620 = vadd.f32 %v1470, %v74
  %v1621 = vadd.f32 %v1475, %v75
  %v1622 = vadd.f32 %v1478, %v76
  %v1623 = vadd.f32 %v1483, %v77
  %v1624 = vadd.f32 %v1486, %v78
  %v1625 = vadd.f32 %v1491, %v79
  %v1626 = vadd.f32 %v1494, %v80
  %v1627 = vadd.f32 %v1499, %v81
  %v1628 = vadd.f32 %v1502, %v82
  %v1629 = vadd.f32 %v1507, %v83
  %v1630 = vadd.f32 %v1510, %v84
  %v1631 = vadd.f32 %v1515, %v85
  %v1632 = vadd.f32 %v1518, %v86
  %v1633 = vadd.f32 %v1523, %v87
  %v1634 = vadd.f32 %v1526, %v88
  %v1635 = vadd.f32 %v1531, %v89
  %v1636 = vadd.f32 %v1534, %v90
  %v1637 = vadd.f32 %v1539, %v91
  %v1638 = vadd.f32 %v1542, %v92
  %v1639 = vadd.f32 %v1547, %v93
  %v1640 = vadd.f32 %v1550, %v94
  %v1641 = vadd.f32 %v1555, %v95
  %v1642 = vadd.f32 %v1558, %v96
  %v1643 = vadd.f32 %v1563, %v97
  %v1644 = vadd.f32 %v1566, %v98
  %v1645 = vadd.f32 %v1571, %v99
  %v1646 = vadd.f32 %v1574, %v100
  %v1647 = vadd.f32 %v1579, %v101
  %v1648 = vadd.f32 %v1582, %v102
  %v1649 = vpack.c.bf16 %v1586, %v1585
  %v1650 = vpack.c.bf16 %v1588, %v1587
  %v1651 = vpack.c.bf16 %v1590, %v1589
  %v1652 = vpack.c.bf16 %v1592, %v1591
  %v1653 = vpack.c.bf16 %v1594, %v1593
  %v1654 = vpack.c.bf16 %v1596, %v1595
  %v1655 = vpack.c.bf16 %v1598, %v1597
  %v1656 = vpack.c.bf16 %v1600, %v1599
  %v1657 = vpack.c.bf16 %v1602, %v1601
  %v1658 = vpack.c.bf16 %v1604, %v1603
  %v1659 = vpack.c.bf16 %v1606, %v1605
  %v1660 = vpack.c.bf16 %v1608, %v1607
  %v1661 = vpack.c.bf16 %v1610, %v1609
  %v1662 = vpack.c.bf16 %v1612, %v1611
  %v1663 = vpack.c.bf16 %v1614, %v1613
  %v1664 = vpack.c.bf16 %v1616, %v1615
  %v1665 = vpack.c.bf16 %v1618, %v1617
  %v1666 = vpack.c.bf16 %v1620, %v1619
  %v1667 = vpack.c.bf16 %v1622, %v1621
  %v1668 = vpack.c.bf16 %v1624, %v1623
  %v1669 = vpack.c.bf16 %v1626, %v1625
  %v1670 = vpack.c.bf16 %v1628, %v1627
  %v1671 = vpack.c.bf16 %v1630, %v1629
  %v1672 = vpack.c.bf16 %v1632, %v1631
  %v1673 = vpack.c.bf16 %v1634, %v1633
  %v1674 = vpack.c.bf16 %v1636, %v1635
  %v1675 = vpack.c.bf16 %v1638, %v1637
  %v1676 = vpack.c.bf16 %v1640, %v1639
  %v1677 = vpack.c.bf16 %v1642, %v1641
  %v1678 = vpack.c.bf16 %v1644, %v1643
  %v1679 = vpack.c.bf16 %v1646, %v1645
  %v1680 = vpack.c.bf16 %v1648, %v1647
  %v1681 = vld [vmem:[%s7] sm:$0xff]
  %v1682 = vld [vmem:[%s7 + $0x8] sm:$0xf]
  %v1683 = vld [vmem:[%s7 + $0xc] sm:$0xff]
  %v1684 = vld [vmem:[%s7 + $0x14] sm:$0xf]
  %v1685 = vld [vmem:[%s7 + $0x18] sm:$0xff]
  %v1686 = vld [vmem:[%s7 + $0x20] sm:$0xf]
  %v1687 = vld [vmem:[%s7 + $0x24] sm:$0xff]
  %v1688 = vld [vmem:[%s7 + $0x2c] sm:$0xf]
  %v1689 = vld [vmem:[%s8] sm:$0x7]
  %v1691 = vlaneseq
  %v1692 = vshrl.u32 %v1691, 7
  %v1693 = vsub.s32 0, %v1692
  %v1694 = vrot.slane %v1689, %v1693
  %v1695 = vlaneseq
  %v1696 = vshrl.u32 %v1695, 7
  %v1697 = vsub.s32 1, %v1696
  %v1698 = vrot.slane %v1689, %v1697
  %v1699 = vlaneseq
  %v1700 = vshrl.u32 %v1699, 7
  %v1701 = vsub.s32 2, %v1700
  %v1702 = vrot.slane %v1689, %v1701
  %v1714 = vunpack.c.l.b16 %v1681
  %v1715 = vunpack.c.h.b16 %v1681
  %v1716 = vunpack.c.l.b16 %v1682
  %v1717 = vunpack.c.l.b16 %v1683
  %v1718 = vunpack.c.h.b16 %v1683
  %v1719 = vunpack.c.l.b16 %v1684
  %v1720 = vunpack.c.l.b16 %v1685
  %v1721 = vunpack.c.h.b16 %v1685
  %v1722 = vunpack.c.l.b16 %v1686
  %v1723 = vunpack.c.l.b16 %v1687
  %v1724 = vunpack.c.h.b16 %v1687
  %v1725 = vunpack.c.l.b16 %v1688
  %v1726 = vpack.c.b16 %v1717, %v1714
  %v1727 = vpack.c.b16 %v1718, %v1715
  %v1728 = vpack.c.b16 %v1719, %v1716
  %v1729 = vpack.c.b16 %v1723, %v1720
  %v1730 = vpack.c.b16 %v1724, %v1721
  %v1731 = vpack.c.b16 %v1725, %v1722
  %v1739 = vsel %vm158, %v1649, 0
  %v1742 = vsel %vm158, %v1650, 0
  %v1745 = vsel %vm158, %v1651, 0
  %v1748 = vsel %vm158, %v1652, 0
  %v1751 = vsel %vm158, %v1653, 0
  %v1754 = vsel %vm158, %v1654, 0
  %v1757 = vsel %vm158, %v1655, 0
  %v1760 = vsel %vm158, %v1656, 0
  %v1763 = vsel %vm158, %v1657, 0
  %v1766 = vsel %vm158, %v1658, 0
  %v1769 = vsel %vm158, %v1659, 0
  %v1772 = vsel %vm158, %v1660, 0
  %v1775 = vsel %vm158, %v1661, 0
  %v1778 = vsel %vm158, %v1662, 0
  %v1781 = vsel %vm158, %v1663, 0
  %v1784 = vsel %vm158, %v1664, 0
  %v1787 = vsel %vm158, %v1665, 0
  %v1790 = vsel %vm158, %v1666, 0
  %v1793 = vsel %vm158, %v1667, 0
  %v1796 = vsel %vm158, %v1668, 0
  %v1799 = vsel %vm158, %v1669, 0
  %v1802 = vsel %vm158, %v1670, 0
  %v1805 = vsel %vm158, %v1671, 0
  %v1808 = vsel %vm158, %v1672, 0
  %v1811 = vsel %vm158, %v1673, 0
  %v1814 = vsel %vm158, %v1674, 0
  %v1817 = vsel %vm158, %v1675, 0
  %v1820 = vsel %vm158, %v1676, 0
  %v1823 = vsel %vm158, %v1677, 0
  %v1826 = vsel %vm158, %v1678, 0
  %v1829 = vsel %vm158, %v1679, 0
  %v1832 = vsel %vm158, %v1680, 0
  %1834 = vmatprep.subr.bf16.mxu0 %v1727
  %1835 = vmatpush1.bf16.msra.mxu0 %v1726
  %1836 = vmatprep.subr.bf16.mxu0 %v1730
  %1837 = vmatpush1.bf16.msra.mxu0 %v1729
  %1838 = vmatprep.subr.bf16.mxu0 0
  %1839 = vmatpush1.bf16.msra.mxu0 0
  %1840 = vmatprep.subr.bf16.mxu0 0
  %1841 = vmatpush1.bf16.msra.mxu0 0
  %1842 = vmatprep.subr.bf16.mxu0 0
  %1843 = vmatpush1.bf16.msra.mxu0 0
  %1844 = vmatprep.subr.bf16.mxu0 0
  %1845 = vmatpush1.bf16.msra.mxu0 0
  %1846 = vmatprep.subr.bf16.mxu0 0
  %1847 = vmatpush1.bf16.msra.mxu0 0
  %1848 = vmatprep.subr.bf16.mxu0 0
  %1849 = vmatpush1.bf16.msra.mxu0 0
  %1850 = vmatprep.subr.bf16.mxu0 0
  %1851 = vmatpush1.bf16.msra.mxu0 0
  %1852 = vmatprep.subr.bf16.mxu0 0
  %1853 = vmatpush1.bf16.msra.mxu0 0
  %1854 = vmatprep.subr.bf16.mxu0 0
  %1855 = vmatpush1.bf16.msra.mxu0 0
  %1856 = vmatprep.subr.bf16.mxu0 0
  %1857 = vmatpush1.bf16.msra.mxu0 0
  %1858 = vmatprep.subr.bf16.mxu0 0
  %1859 = vmatpush1.bf16.msra.mxu0 0
  %1860 = vmatprep.subr.bf16.mxu0 0
  %1861 = vmatpush1.bf16.msra.mxu0 0
  %1862 = vmatprep.subr.bf16.mxu0 0
  %1863 = vmatpush1.bf16.msra.mxu0 0
  %1864 = vmatprep.subr.bf16.mxu0 0
  %1865 = vmatpush1.bf16.msra.mxu0 0
  %1866 = vmatprep.mubr.bf16.mxu0 0
  %1867 = vmatmul.mubr.bf16.gmra.mrb[0].mxu0 %v1739
  %v1868 = vpop.f32.mrb[0].mxu0
  %v1869 = vadd.f32 %v1694, %v1868
  %v1870 = vpop.f32.mrb[0].mxu0
  %v1871 = vadd.f32 %v1698, %v1870
  %v1872 = vpop.f32.mrb[0].mxu0
  %v1873 = vadd.f32 %v1694, %v1872
  %v1874 = vpop.f32.mrb[0].mxu0
  %v1875 = vadd.f32 %v1698, %v1874
  %1876 = vmatprep.mubr.bf16.mxu0 0
  %1877 = vmatmul.mubr.bf16.gmra.mrb[0].mxu0 %v1742
  %v1878 = vpop.f32.mrb[0].mxu0
  %v1879 = vadd.f32 %v1694, %v1878
  %v1880 = vpop.f32.mrb[0].mxu0
  %v1881 = vadd.f32 %v1698, %v1880
  %v1882 = vpop.f32.mrb[0].mxu0
  %v1883 = vadd.f32 %v1694, %v1882
  %v1884 = vpop.f32.mrb[0].mxu0
  %v1885 = vadd.f32 %v1698, %v1884
  %1886 = vmatprep.mubr.bf16.mxu0 0
  %1887 = vmatmul.mubr.bf16.gmra.mrb[0].mxu0 %v1745
  %v1888 = vpop.f32.mrb[0].mxu0
  %v1889 = vadd.f32 %v1694, %v1888
  %v1890 = vpop.f32.mrb[0].mxu0
  %v1891 = vadd.f32 %v1698, %v1890
  %v1892 = vpop.f32.mrb[0].mxu0
  %v1893 = vadd.f32 %v1694, %v1892
  %v1894 = vpop.f32.mrb[0].mxu0
  %v1895 = vadd.f32 %v1698, %v1894
  %1896 = vmatprep.mubr.bf16.mxu0 0
  %1897 = vmatmul.mubr.bf16.gmra.mrb[0].mxu0 %v1748
  %v1898 = vpop.f32.mrb[0].mxu0
  %v1899 = vadd.f32 %v1694, %v1898
  %v1900 = vpop.f32.mrb[0].mxu0
  %v1901 = vadd.f32 %v1698, %v1900
  %v1902 = vpop.f32.mrb[0].mxu0
  %v1903 = vadd.f32 %v1694, %v1902
  %v1904 = vpop.f32.mrb[0].mxu0
  %v1905 = vadd.f32 %v1698, %v1904
  %1906 = vmatprep.mubr.bf16.mxu0 0
  %1907 = vmatmul.mubr.bf16.gmra.mrb[0].mxu0 %v1751
  %v1908 = vpop.f32.mrb[0].mxu0
  %v1909 = vadd.f32 %v1694, %v1908
  %v1910 = vpop.f32.mrb[0].mxu0
  %v1911 = vadd.f32 %v1698, %v1910
  %v1912 = vpop.f32.mrb[0].mxu0
  %v1913 = vadd.f32 %v1694, %v1912
  %v1914 = vpop.f32.mrb[0].mxu0
  %v1915 = vadd.f32 %v1698, %v1914
  %1916 = vmatprep.mubr.bf16.mxu0 0
  %1917 = vmatmul.mubr.bf16.gmra.mrb[0].mxu0 %v1754
  %v1918 = vpop.f32.mrb[0].mxu0
  %v1919 = vadd.f32 %v1694, %v1918
  %v1920 = vpop.f32.mrb[0].mxu0
  %v1921 = vadd.f32 %v1698, %v1920
  %v1922 = vpop.f32.mrb[0].mxu0
  %v1923 = vadd.f32 %v1694, %v1922
  %v1924 = vpop.f32.mrb[0].mxu0
  %v1925 = vadd.f32 %v1698, %v1924
  %1926 = vmatprep.mubr.bf16.mxu0 0
  %1927 = vmatmul.mubr.bf16.gmra.mrb[0].mxu0 %v1757
  %v1928 = vpop.f32.mrb[0].mxu0
  %v1929 = vadd.f32 %v1694, %v1928
  %v1930 = vpop.f32.mrb[0].mxu0
  %v1931 = vadd.f32 %v1698, %v1930
  %v1932 = vpop.f32.mrb[0].mxu0
  %v1933 = vadd.f32 %v1694, %v1932
  %v1934 = vpop.f32.mrb[0].mxu0
  %v1935 = vadd.f32 %v1698, %v1934
  %1936 = vmatprep.mubr.bf16.mxu0 0
  %1937 = vmatmul.mubr.bf16.gmra.mrb[0].mxu0 %v1760
  %v1938 = vpop.f32.mrb[0].mxu0
  %v1939 = vadd.f32 %v1694, %v1938
  %v1940 = vpop.f32.mrb[0].mxu0
  %v1941 = vadd.f32 %v1698, %v1940
  %v1942 = vpop.f32.mrb[0].mxu0
  %v1943 = vadd.f32 %v1694, %v1942
  %v1944 = vpop.f32.mrb[0].mxu0
  %v1945 = vadd.f32 %v1698, %v1944
  %1946 = vmatprep.mubr.bf16.mxu0 0
  %1947 = vmatmul.mubr.bf16.gmra.mrb[0].mxu0 %v1763
  %v1948 = vpop.f32.mrb[0].mxu0
  %v1949 = vadd.f32 %v1694, %v1948
  %v1950 = vpop.f32.mrb[0].mxu0
  %v1951 = vadd.f32 %v1698, %v1950
  %v1952 = vpop.f32.mrb[0].mxu0
  %v1953 = vadd.f32 %v1694, %v1952
  %v1954 = vpop.f32.mrb[0].mxu0
  %v1955 = vadd.f32 %v1698, %v1954
  %1956 = vmatprep.mubr.bf16.mxu0 0
  %1957 = vmatmul.mubr.bf16.gmra.mrb[0].mxu0 %v1766
  %v1958 = vpop.f32.mrb[0].mxu0
  %v1959 = vadd.f32 %v1694, %v1958
  %v1960 = vpop.f32.mrb[0].mxu0
  %v1961 = vadd.f32 %v1698, %v1960
  %v1962 = vpop.f32.mrb[0].mxu0
  %v1963 = vadd.f32 %v1694, %v1962
  %v1964 = vpop.f32.mrb[0].mxu0
  %v1965 = vadd.f32 %v1698, %v1964
  %1966 = vmatprep.mubr.bf16.mxu0 0
  %1967 = vmatmul.mubr.bf16.gmra.mrb[0].mxu0 %v1769
  %v1968 = vpop.f32.mrb[0].mxu0
  %v1969 = vadd.f32 %v1694, %v1968
  %v1970 = vpop.f32.mrb[0].mxu0
  %v1971 = vadd.f32 %v1698, %v1970
  %v1972 = vpop.f32.mrb[0].mxu0
  %v1973 = vadd.f32 %v1694, %v1972
  %v1974 = vpop.f32.mrb[0].mxu0
  %v1975 = vadd.f32 %v1698, %v1974
  %1976 = vmatprep.mubr.bf16.mxu0 0
  %1977 = vmatmul.mubr.bf16.gmra.mrb[0].mxu0 %v1772
  %v1978 = vpop.f32.mrb[0].mxu0
  %v1979 = vadd.f32 %v1694, %v1978
  %v1980 = vpop.f32.mrb[0].mxu0
  %v1981 = vadd.f32 %v1698, %v1980
  %v1982 = vpop.f32.mrb[0].mxu0
  %v1983 = vadd.f32 %v1694, %v1982
  %v1984 = vpop.f32.mrb[0].mxu0
  %v1985 = vadd.f32 %v1698, %v1984
  %1986 = vmatprep.mubr.bf16.mxu0 0
  %1987 = vmatmul.mubr.bf16.gmra.mrb[0].mxu0 %v1775
  %v1988 = vpop.f32.mrb[0].mxu0
  %v1989 = vadd.f32 %v1694, %v1988
  %v1990 = vpop.f32.mrb[0].mxu0
  %v1991 = vadd.f32 %v1698, %v1990
  %v1992 = vpop.f32.mrb[0].mxu0
  %v1993 = vadd.f32 %v1694, %v1992
  %v1994 = vpop.f32.mrb[0].mxu0
  %v1995 = vadd.f32 %v1698, %v1994
  %1996 = vmatprep.mubr.bf16.mxu0 0
  %1997 = vmatmul.mubr.bf16.gmra.mrb[0].mxu0 %v1778
  %v1998 = vpop.f32.mrb[0].mxu0
  %v1999 = vadd.f32 %v1694, %v1998
  %v2000 = vpop.f32.mrb[0].mxu0
  %v2001 = vadd.f32 %v1698, %v2000
  %v2002 = vpop.f32.mrb[0].mxu0
  %v2003 = vadd.f32 %v1694, %v2002
  %v2004 = vpop.f32.mrb[0].mxu0
  %v2005 = vadd.f32 %v1698, %v2004
  %2006 = vmatprep.mubr.bf16.mxu0 0
  %2007 = vmatmul.mubr.bf16.gmra.mrb[0].mxu0 %v1781
  %v2008 = vpop.f32.mrb[0].mxu0
  %v2009 = vadd.f32 %v1694, %v2008
  %v2010 = vpop.f32.mrb[0].mxu0
  %v2011 = vadd.f32 %v1698, %v2010
  %v2012 = vpop.f32.mrb[0].mxu0
  %v2013 = vadd.f32 %v1694, %v2012
  %v2014 = vpop.f32.mrb[0].mxu0
  %v2015 = vadd.f32 %v1698, %v2014
  %2016 = vmatprep.mubr.bf16.mxu0 0
  %2017 = vmatmul.mubr.bf16.gmra.mrb[0].mxu0 %v1784
  %v2018 = vpop.f32.mrb[0].mxu0
  %v2019 = vadd.f32 %v1694, %v2018
  %v2020 = vpop.f32.mrb[0].mxu0
  %v2021 = vadd.f32 %v1698, %v2020
  %v2022 = vpop.f32.mrb[0].mxu0
  %v2023 = vadd.f32 %v1694, %v2022
  %v2024 = vpop.f32.mrb[0].mxu0
  %v2025 = vadd.f32 %v1698, %v2024
  %2026 = vmatprep.mubr.bf16.mxu0 0
  %2027 = vmatmul.mubr.bf16.gmra.mrb[0].mxu0 %v1787
  %v2028 = vpop.f32.mrb[0].mxu0
  %v2029 = vadd.f32 %v1694, %v2028
  %v2030 = vpop.f32.mrb[0].mxu0
  %v2031 = vadd.f32 %v1698, %v2030
  %v2032 = vpop.f32.mrb[0].mxu0
  %v2033 = vadd.f32 %v1694, %v2032
  %v2034 = vpop.f32.mrb[0].mxu0
  %v2035 = vadd.f32 %v1698, %v2034
  %2036 = vmatprep.mubr.bf16.mxu0 0
  %2037 = vmatmul.mubr.bf16.gmra.mrb[0].mxu0 %v1790
  %v2038 = vpop.f32.mrb[0].mxu0
  %v2039 = vadd.f32 %v1694, %v2038
  %v2040 = vpop.f32.mrb[0].mxu0
  %v2041 = vadd.f32 %v1698, %v2040
  %v2042 = vpop.f32.mrb[0].mxu0
  %v2043 = vadd.f32 %v1694, %v2042
  %v2044 = vpop.f32.mrb[0].mxu0
  %v2045 = vadd.f32 %v1698, %v2044
  %2046 = vmatprep.mubr.bf16.mxu0 0
  %2047 = vmatmul.mubr.bf16.gmra.mrb[0].mxu0 %v1793
  %v2048 = vpop.f32.mrb[0].mxu0
  %v2049 = vadd.f32 %v1694, %v2048
  %v2050 = vpop.f32.mrb[0].mxu0
  %v2051 = vadd.f32 %v1698, %v2050
  %v2052 = vpop.f32.mrb[0].mxu0
  %v2053 = vadd.f32 %v1694, %v2052
  %v2054 = vpop.f32.mrb[0].mxu0
  %v2055 = vadd.f32 %v1698, %v2054
  %2056 = vmatprep.mubr.bf16.mxu0 0
  %2057 = vmatmul.mubr.bf16.gmra.mrb[0].mxu0 %v1796
  %v2058 = vpop.f32.mrb[0].mxu0
  %v2059 = vadd.f32 %v1694, %v2058
  %v2060 = vpop.f32.mrb[0].mxu0
  %v2061 = vadd.f32 %v1698, %v2060
  %v2062 = vpop.f32.mrb[0].mxu0
  %v2063 = vadd.f32 %v1694, %v2062
  %v2064 = vpop.f32.mrb[0].mxu0
  %v2065 = vadd.f32 %v1698, %v2064
  %2066 = vmatprep.mubr.bf16.mxu0 0
  %2067 = vmatmul.mubr.bf16.gmra.mrb[0].mxu0 %v1799
  %v2068 = vpop.f32.mrb[0].mxu0
  %v2069 = vadd.f32 %v1694, %v2068
  %v2070 = vpop.f32.mrb[0].mxu0
  %v2071 = vadd.f32 %v1698, %v2070
  %v2072 = vpop.f32.mrb[0].mxu0
  %v2073 = vadd.f32 %v1694, %v2072
  %v2074 = vpop.f32.mrb[0].mxu0
  %v2075 = vadd.f32 %v1698, %v2074
  %2076 = vmatprep.mubr.bf16.mxu0 0
  %2077 = vmatmul.mubr.bf16.gmra.mrb[0].mxu0 %v1802
  %v2078 = vpop.f32.mrb[0].mxu0
  %v2079 = vadd.f32 %v1694, %v2078
  %v2080 = vpop.f32.mrb[0].mxu0
  %v2081 = vadd.f32 %v1698, %v2080
  %v2082 = vpop.f32.mrb[0].mxu0
  %v2083 = vadd.f32 %v1694, %v2082
  %v2084 = vpop.f32.mrb[0].mxu0
  %v2085 = vadd.f32 %v1698, %v2084
  %2086 = vmatprep.mubr.bf16.mxu0 0
  %2087 = vmatmul.mubr.bf16.gmra.mrb[0].mxu0 %v1805
  %v2088 = vpop.f32.mrb[0].mxu0
  %v2089 = vadd.f32 %v1694, %v2088
  %v2090 = vpop.f32.mrb[0].mxu0
  %v2091 = vadd.f32 %v1698, %v2090
  %v2092 = vpop.f32.mrb[0].mxu0
  %v2093 = vadd.f32 %v1694, %v2092
  %v2094 = vpop.f32.mrb[0].mxu0
  %v2095 = vadd.f32 %v1698, %v2094
  %2096 = vmatprep.mubr.bf16.mxu0 0
  %2097 = vmatmul.mubr.bf16.gmra.mrb[0].mxu0 %v1808
  %v2098 = vpop.f32.mrb[0].mxu0
  %v2099 = vadd.f32 %v1694, %v2098
  %v2100 = vpop.f32.mrb[0].mxu0
  %v2101 = vadd.f32 %v1698, %v2100
  %v2102 = vpop.f32.mrb[0].mxu0
  %v2103 = vadd.f32 %v1694, %v2102
  %v2104 = vpop.f32.mrb[0].mxu0
  %v2105 = vadd.f32 %v1698, %v2104
  %2106 = vmatprep.mubr.bf16.mxu0 0
  %2107 = vmatmul.mubr.bf16.gmra.mrb[0].mxu0 %v1811
  %v2108 = vpop.f32.mrb[0].mxu0
  %v2109 = vadd.f32 %v1694, %v2108
  %v2110 = vpop.f32.mrb[0].mxu0
  %v2111 = vadd.f32 %v1698, %v2110
  %v2112 = vpop.f32.mrb[0].mxu0
  %v2113 = vadd.f32 %v1694, %v2112
  %v2114 = vpop.f32.mrb[0].mxu0
  %v2115 = vadd.f32 %v1698, %v2114
  %2116 = vmatprep.mubr.bf16.mxu0 0
  %2117 = vmatmul.mubr.bf16.gmra.mrb[0].mxu0 %v1814
  %v2118 = vpop.f32.mrb[0].mxu0
  %v2119 = vadd.f32 %v1694, %v2118
  %v2120 = vpop.f32.mrb[0].mxu0
  %v2121 = vadd.f32 %v1698, %v2120
  %v2122 = vpop.f32.mrb[0].mxu0
  %v2123 = vadd.f32 %v1694, %v2122
  %v2124 = vpop.f32.mrb[0].mxu0
  %v2125 = vadd.f32 %v1698, %v2124
  %2126 = vmatprep.mubr.bf16.mxu0 0
  %2127 = vmatmul.mubr.bf16.gmra.mrb[0].mxu0 %v1817
  %v2128 = vpop.f32.mrb[0].mxu0
  %v2129 = vadd.f32 %v1694, %v2128
  %v2130 = vpop.f32.mrb[0].mxu0
  %v2131 = vadd.f32 %v1698, %v2130
  %v2132 = vpop.f32.mrb[0].mxu0
  %v2133 = vadd.f32 %v1694, %v2132
  %v2134 = vpop.f32.mrb[0].mxu0
  %v2135 = vadd.f32 %v1698, %v2134
  %2136 = vmatprep.mubr.bf16.mxu0 0
  %2137 = vmatmul.mubr.bf16.gmra.mrb[0].mxu0 %v1820
  %v2138 = vpop.f32.mrb[0].mxu0
  %v2139 = vadd.f32 %v1694, %v2138
  %v2140 = vpop.f32.mrb[0].mxu0
  %v2141 = vadd.f32 %v1698, %v2140
  %v2142 = vpop.f32.mrb[0].mxu0
  %v2143 = vadd.f32 %v1694, %v2142
  %v2144 = vpop.f32.mrb[0].mxu0
  %v2145 = vadd.f32 %v1698, %v2144
  %2146 = vmatprep.mubr.bf16.mxu0 0
  %2147 = vmatmul.mubr.bf16.gmra.mrb[0].mxu0 %v1823
  %v2148 = vpop.f32.mrb[0].mxu0
  %v2149 = vadd.f32 %v1694, %v2148
  %v2150 = vpop.f32.mrb[0].mxu0
  %v2151 = vadd.f32 %v1698, %v2150
  %v2152 = vpop.f32.mrb[0].mxu0
  %v2153 = vadd.f32 %v1694, %v2152
  %v2154 = vpop.f32.mrb[0].mxu0
  %v2155 = vadd.f32 %v1698, %v2154
  %2156 = vmatprep.mubr.bf16.mxu0 0
  %2157 = vmatmul.mubr.bf16.gmra.mrb[0].mxu0 %v1826
  %v2158 = vpop.f32.mrb[0].mxu0
  %v2159 = vadd.f32 %v1694, %v2158
  %v2160 = vpop.f32.mrb[0].mxu0
  %v2161 = vadd.f32 %v1698, %v2160
  %v2162 = vpop.f32.mrb[0].mxu0
  %v2163 = vadd.f32 %v1694, %v2162
  %v2164 = vpop.f32.mrb[0].mxu0
  %v2165 = vadd.f32 %v1698, %v2164
  %2166 = vmatprep.mubr.bf16.mxu0 0
  %2167 = vmatmul.mubr.bf16.gmra.mrb[0].mxu0 %v1829
  %v2168 = vpop.f32.mrb[0].mxu0
  %v2169 = vadd.f32 %v1694, %v2168
  %v2170 = vpop.f32.mrb[0].mxu0
  %v2171 = vadd.f32 %v1698, %v2170
  %v2172 = vpop.f32.mrb[0].mxu0
  %v2173 = vadd.f32 %v1694, %v2172
  %v2174 = vpop.f32.mrb[0].mxu0
  %v2175 = vadd.f32 %v1698, %v2174
  %2176 = vmatprep.mubr.bf16.mxu0 0
  %2177 = vmatmul.mubr.bf16.gmra.mrb[0].mxu0 %v1832
  %v2178 = vpop.f32.mrb[0].mxu0
  %v2179 = vadd.f32 %v1694, %v2178
  %v2180 = vpop.f32.mrb[0].mxu0
  %v2181 = vadd.f32 %v1698, %v2180
  %v2182 = vpop.f32.mrb[0].mxu0
  %v2183 = vadd.f32 %v1694, %v2182
  %v2184 = vpop.f32.mrb[0].mxu0
  %v2185 = vadd.f32 %v1698, %v2184
  %2186 = vdwg.mxu0
  %2187 = vmatprep.subr.bf16.mxu0 0
  %2188 = vmatpush1.bf16.msra.mxu0 %v1728
  %2189 = vmatprep.subr.bf16.mxu0 0
  %2190 = vmatpush1.bf16.msra.mxu0 %v1731
  %2191 = vmatprep.subr.bf16.mxu0 0
  %2192 = vmatpush1.bf16.msra.mxu0 0
  %2193 = vmatprep.subr.bf16.mxu0 0
  %2194 = vmatpush1.bf16.msra.mxu0 0
  %2195 = vmatprep.subr.bf16.mxu0 0
  %2196 = vmatpush1.bf16.msra.mxu0 0
  %2197 = vmatprep.subr.bf16.mxu0 0
  %2198 = vmatpush1.bf16.msra.mxu0 0
  %2199 = vmatprep.subr.bf16.mxu0 0
  %2200 = vmatpush1.bf16.msra.mxu0 0
  %2201 = vmatprep.subr.bf16.mxu0 0
  %2202 = vmatpush1.bf16.msra.mxu0 0
  %2203 = vmatprep.subr.bf16.mxu0 0
  %2204 = vmatpush1.bf16.msra.mxu0 0
  %2205 = vmatprep.subr.bf16.mxu0 0
  %2206 = vmatpush1.bf16.msra.mxu0 0
  %2207 = vmatprep.subr.bf16.mxu0 0
  %2208 = vmatpush1.bf16.msra.mxu0 0
  %2209 = vmatprep.subr.bf16.mxu0 0
  %2210 = vmatpush1.bf16.msra.mxu0 0
  %2211 = vmatprep.subr.bf16.mxu0 0
  %2212 = vmatpush1.bf16.msra.mxu0 0
  %2213 = vmatprep.subr.bf16.mxu0 0
  %2214 = vmatpush1.bf16.msra.mxu0 0
  %2215 = vmatprep.subr.bf16.mxu0 0
  %2216 = vmatpush1.bf16.msra.mxu0 0
  %2217 = vmatprep.subr.bf16.mxu0 0
  %2218 = vmatpush1.bf16.msra.mxu0 0
  %2219 = vmatprep.mubr.bf16.mxu0 0
  %2220 = vmatmul.mubr.bf16.gmra.mrb[0].mxu0 %v1739
  %v2221 = vpop.f32.mrb[0].mxu0
  %v2222 = vadd.f32 %v1702, %v2221
  %v2223 = vpop.f32.mrb[0].mxu0
  %v2224 = vpop.f32.mrb[0].mxu0
  %v2225 = vadd.f32 %v1702, %v2224
  %v2226 = vpop.f32.mrb[0].mxu0
  %2227 = vmatprep.mubr.bf16.mxu0 0
  %2228 = vmatmul.mubr.bf16.gmra.mrb[0].mxu0 %v1742
  %v2229 = vpop.f32.mrb[0].mxu0
  %v2230 = vadd.f32 %v1702, %v2229
  %v2231 = vpop.f32.mrb[0].mxu0
  %v2232 = vpop.f32.mrb[0].mxu0
  %v2233 = vadd.f32 %v1702, %v2232
  %v2234 = vpop.f32.mrb[0].mxu0
  %2235 = vmatprep.mubr.bf16.mxu0 0
  %2236 = vmatmul.mubr.bf16.gmra.mrb[0].mxu0 %v1745
  %v2237 = vpop.f32.mrb[0].mxu0
  %v2238 = vadd.f32 %v1702, %v2237
  %v2239 = vpop.f32.mrb[0].mxu0
  %v2240 = vpop.f32.mrb[0].mxu0
  %v2241 = vadd.f32 %v1702, %v2240
  %v2242 = vpop.f32.mrb[0].mxu0
  %2243 = vmatprep.mubr.bf16.mxu0 0
  %2244 = vmatmul.mubr.bf16.gmra.mrb[0].mxu0 %v1748
  %v2245 = vpop.f32.mrb[0].mxu0
  %v2246 = vadd.f32 %v1702, %v2245
  %v2247 = vpop.f32.mrb[0].mxu0
  %v2248 = vpop.f32.mrb[0].mxu0
  %v2249 = vadd.f32 %v1702, %v2248
  %v2250 = vpop.f32.mrb[0].mxu0
  %2251 = vmatprep.mubr.bf16.mxu0 0
  %2252 = vmatmul.mubr.bf16.gmra.mrb[0].mxu0 %v1751
  %v2253 = vpop.f32.mrb[0].mxu0
  %v2254 = vadd.f32 %v1702, %v2253
  %v2255 = vpop.f32.mrb[0].mxu0
  %v2256 = vpop.f32.mrb[0].mxu0
  %v2257 = vadd.f32 %v1702, %v2256
  %v2258 = vpop.f32.mrb[0].mxu0
  %2259 = vmatprep.mubr.bf16.mxu0 0
  %2260 = vmatmul.mubr.bf16.gmra.mrb[0].mxu0 %v1754
  %v2261 = vpop.f32.mrb[0].mxu0
  %v2262 = vadd.f32 %v1702, %v2261
  %v2263 = vpop.f32.mrb[0].mxu0
  %v2264 = vpop.f32.mrb[0].mxu0
  %v2265 = vadd.f32 %v1702, %v2264
  %v2266 = vpop.f32.mrb[0].mxu0
  %2267 = vmatprep.mubr.bf16.mxu0 0
  %2268 = vmatmul.mubr.bf16.gmra.mrb[0].mxu0 %v1757
  %v2269 = vpop.f32.mrb[0].mxu0
  %v2270 = vadd.f32 %v1702, %v2269
  %v2271 = vpop.f32.mrb[0].mxu0
  %v2272 = vpop.f32.mrb[0].mxu0
  %v2273 = vadd.f32 %v1702, %v2272
  %v2274 = vpop.f32.mrb[0].mxu0
  %2275 = vmatprep.mubr.bf16.mxu0 0
  %2276 = vmatmul.mubr.bf16.gmra.mrb[0].mxu0 %v1760
  %v2277 = vpop.f32.mrb[0].mxu0
  %v2278 = vadd.f32 %v1702, %v2277
  %v2279 = vpop.f32.mrb[0].mxu0
  %v2280 = vpop.f32.mrb[0].mxu0
  %v2281 = vadd.f32 %v1702, %v2280
  %v2282 = vpop.f32.mrb[0].mxu0
  %2283 = vmatprep.mubr.bf16.mxu0 0
  %2284 = vmatmul.mubr.bf16.gmra.mrb[0].mxu0 %v1763
  %v2285 = vpop.f32.mrb[0].mxu0
  %v2286 = vadd.f32 %v1702, %v2285
  %v2287 = vpop.f32.mrb[0].mxu0
  %v2288 = vpop.f32.mrb[0].mxu0
  %v2289 = vadd.f32 %v1702, %v2288
  %v2290 = vpop.f32.mrb[0].mxu0
  %2291 = vmatprep.mubr.bf16.mxu0 0
  %2292 = vmatmul.mubr.bf16.gmra.mrb[0].mxu0 %v1766
  %v2293 = vpop.f32.mrb[0].mxu0
  %v2294 = vadd.f32 %v1702, %v2293
  %v2295 = vpop.f32.mrb[0].mxu0
  %v2296 = vpop.f32.mrb[0].mxu0
  %v2297 = vadd.f32 %v1702, %v2296
  %v2298 = vpop.f32.mrb[0].mxu0
  %2299 = vmatprep.mubr.bf16.mxu0 0
  %2300 = vmatmul.mubr.bf16.gmra.mrb[0].mxu0 %v1769
  %v2301 = vpop.f32.mrb[0].mxu0
  %v2302 = vadd.f32 %v1702, %v2301
  %v2303 = vpop.f32.mrb[0].mxu0
  %v2304 = vpop.f32.mrb[0].mxu0
  %v2305 = vadd.f32 %v1702, %v2304
  %v2306 = vpop.f32.mrb[0].mxu0
  %2307 = vmatprep.mubr.bf16.mxu0 0
  %2308 = vmatmul.mubr.bf16.gmra.mrb[0].mxu0 %v1772
  %v2309 = vpop.f32.mrb[0].mxu0
  %v2310 = vadd.f32 %v1702, %v2309
  %v2311 = vpop.f32.mrb[0].mxu0
  %v2312 = vpop.f32.mrb[0].mxu0
  %v2313 = vadd.f32 %v1702, %v2312
  %v2314 = vpop.f32.mrb[0].mxu0
  %2315 = vmatprep.mubr.bf16.mxu0 0
  %2316 = vmatmul.mubr.bf16.gmra.mrb[0].mxu0 %v1775
  %v2317 = vpop.f32.mrb[0].mxu0
  %v2318 = vadd.f32 %v1702, %v2317
  %v2319 = vpop.f32.mrb[0].mxu0
  %v2320 = vpop.f32.mrb[0].mxu0
  %v2321 = vadd.f32 %v1702, %v2320
  %v2322 = vpop.f32.mrb[0].mxu0
  %2323 = vmatprep.mubr.bf16.mxu0 0
  %2324 = vmatmul.mubr.bf16.gmra.mrb[0].mxu0 %v1778
  %v2325 = vpop.f32.mrb[0].mxu0
  %v2326 = vadd.f32 %v1702, %v2325
  %v2327 = vpop.f32.mrb[0].mxu0
  %v2328 = vpop.f32.mrb[0].mxu0
  %v2329 = vadd.f32 %v1702, %v2328
  %v2330 = vpop.f32.mrb[0].mxu0
  %2331 = vmatprep.mubr.bf16.mxu0 0
  %2332 = vmatmul.mubr.bf16.gmra.mrb[0].mxu0 %v1781
  %v2333 = vpop.f32.mrb[0].mxu0
  %v2334 = vadd.f32 %v1702, %v2333
  %v2335 = vpop.f32.mrb[0].mxu0
  %v2336 = vpop.f32.mrb[0].mxu0
  %v2337 = vadd.f32 %v1702, %v2336
  %v2338 = vpop.f32.mrb[0].mxu0
  %2339 = vmatprep.mubr.bf16.mxu0 0
  %2340 = vmatmul.mubr.bf16.gmra.mrb[0].mxu0 %v1784
  %v2341 = vpop.f32.mrb[0].mxu0
  %v2342 = vadd.f32 %v1702, %v2341
  %v2343 = vpop.f32.mrb[0].mxu0
  %v2344 = vpop.f32.mrb[0].mxu0
  %v2345 = vadd.f32 %v1702, %v2344
  %v2346 = vpop.f32.mrb[0].mxu0
  %2347 = vmatprep.mubr.bf16.mxu0 0
  %2348 = vmatmul.mubr.bf16.gmra.mrb[0].mxu0 %v1787
  %v2349 = vpop.f32.mrb[0].mxu0
  %v2350 = vadd.f32 %v1702, %v2349
  %v2351 = vpop.f32.mrb[0].mxu0
  %v2352 = vpop.f32.mrb[0].mxu0
  %v2353 = vadd.f32 %v1702, %v2352
  %v2354 = vpop.f32.mrb[0].mxu0
  %2355 = vmatprep.mubr.bf16.mxu0 0
  %2356 = vmatmul.mubr.bf16.gmra.mrb[0].mxu0 %v1790
  %v2357 = vpop.f32.mrb[0].mxu0
  %v2358 = vadd.f32 %v1702, %v2357
  %v2359 = vpop.f32.mrb[0].mxu0
  %v2360 = vpop.f32.mrb[0].mxu0
  %v2361 = vadd.f32 %v1702, %v2360
  %v2362 = vpop.f32.mrb[0].mxu0
  %2363 = vmatprep.mubr.bf16.mxu0 0
  %2364 = vmatmul.mubr.bf16.gmra.mrb[0].mxu0 %v1793
  %v2365 = vpop.f32.mrb[0].mxu0
  %v2366 = vadd.f32 %v1702, %v2365
  %v2367 = vpop.f32.mrb[0].mxu0
  %v2368 = vpop.f32.mrb[0].mxu0
  %v2369 = vadd.f32 %v1702, %v2368
  %v2370 = vpop.f32.mrb[0].mxu0
  %2371 = vmatprep.mubr.bf16.mxu0 0
  %2372 = vmatmul.mubr.bf16.gmra.mrb[0].mxu0 %v1796
  %v2373 = vpop.f32.mrb[0].mxu0
  %v2374 = vadd.f32 %v1702, %v2373
  %v2375 = vpop.f32.mrb[0].mxu0
  %v2376 = vpop.f32.mrb[0].mxu0
  %v2377 = vadd.f32 %v1702, %v2376
  %v2378 = vpop.f32.mrb[0].mxu0
  %2379 = vmatprep.mubr.bf16.mxu0 0
  %2380 = vmatmul.mubr.bf16.gmra.mrb[0].mxu0 %v1799
  %v2381 = vpop.f32.mrb[0].mxu0
  %v2382 = vadd.f32 %v1702, %v2381
  %v2383 = vpop.f32.mrb[0].mxu0
  %v2384 = vpop.f32.mrb[0].mxu0
  %v2385 = vadd.f32 %v1702, %v2384
  %v2386 = vpop.f32.mrb[0].mxu0
  %2387 = vmatprep.mubr.bf16.mxu0 0
  %2388 = vmatmul.mubr.bf16.gmra.mrb[0].mxu0 %v1802
  %v2389 = vpop.f32.mrb[0].mxu0
  %v2390 = vadd.f32 %v1702, %v2389
  %v2391 = vpop.f32.mrb[0].mxu0
  %v2392 = vpop.f32.mrb[0].mxu0
  %v2393 = vadd.f32 %v1702, %v2392
  %v2394 = vpop.f32.mrb[0].mxu0
  %2395 = vmatprep.mubr.bf16.mxu0 0
  %2396 = vmatmul.mubr.bf16.gmra.mrb[0].mxu0 %v1805
  %v2397 = vpop.f32.mrb[0].mxu0
  %v2398 = vadd.f32 %v1702, %v2397
  %v2399 = vpop.f32.mrb[0].mxu0
  %v2400 = vpop.f32.mrb[0].mxu0
  %v2401 = vadd.f32 %v1702, %v2400
  %v2402 = vpop.f32.mrb[0].mxu0
  %2403 = vmatprep.mubr.bf16.mxu0 0
  %2404 = vmatmul.mubr.bf16.gmra.mrb[0].mxu0 %v1808
  %v2405 = vpop.f32.mrb[0].mxu0
  %v2406 = vadd.f32 %v1702, %v2405
  %v2407 = vpop.f32.mrb[0].mxu0
  %v2408 = vpop.f32.mrb[0].mxu0
  %v2409 = vadd.f32 %v1702, %v2408
  %v2410 = vpop.f32.mrb[0].mxu0
  %2411 = vmatprep.mubr.bf16.mxu0 0
  %2412 = vmatmul.mubr.bf16.gmra.mrb[0].mxu0 %v1811
  %v2413 = vpop.f32.mrb[0].mxu0
  %v2414 = vadd.f32 %v1702, %v2413
  %v2415 = vpop.f32.mrb[0].mxu0
  %v2416 = vpop.f32.mrb[0].mxu0
  %v2417 = vadd.f32 %v1702, %v2416
  %v2418 = vpop.f32.mrb[0].mxu0
  %2419 = vmatprep.mubr.bf16.mxu0 0
  %2420 = vmatmul.mubr.bf16.gmra.mrb[0].mxu0 %v1814
  %v2421 = vpop.f32.mrb[0].mxu0
  %v2422 = vadd.f32 %v1702, %v2421
  %v2423 = vpop.f32.mrb[0].mxu0
  %v2424 = vpop.f32.mrb[0].mxu0
  %v2425 = vadd.f32 %v1702, %v2424
  %v2426 = vpop.f32.mrb[0].mxu0
  %2427 = vmatprep.mubr.bf16.mxu0 0
  %2428 = vmatmul.mubr.bf16.gmra.mrb[0].mxu0 %v1817
  %v2429 = vpop.f32.mrb[0].mxu0
  %v2430 = vadd.f32 %v1702, %v2429
  %v2431 = vpop.f32.mrb[0].mxu0
  %v2432 = vpop.f32.mrb[0].mxu0
  %v2433 = vadd.f32 %v1702, %v2432
  %v2434 = vpop.f32.mrb[0].mxu0
  %2435 = vmatprep.mubr.bf16.mxu0 0
  %2436 = vmatmul.mubr.bf16.gmra.mrb[0].mxu0 %v1820
  %v2437 = vpop.f32.mrb[0].mxu0
  %v2438 = vadd.f32 %v1702, %v2437
  %v2439 = vpop.f32.mrb[0].mxu0
  %v2440 = vpop.f32.mrb[0].mxu0
  %v2441 = vadd.f32 %v1702, %v2440
  %v2442 = vpop.f32.mrb[0].mxu0
  %2443 = vmatprep.mubr.bf16.mxu0 0
  %2444 = vmatmul.mubr.bf16.gmra.mrb[0].mxu0 %v1823
  %v2445 = vpop.f32.mrb[0].mxu0
  %v2446 = vadd.f32 %v1702, %v2445
  %v2447 = vpop.f32.mrb[0].mxu0
  %v2448 = vpop.f32.mrb[0].mxu0
  %v2449 = vadd.f32 %v1702, %v2448
  %v2450 = vpop.f32.mrb[0].mxu0
  %2451 = vmatprep.mubr.bf16.mxu0 0
  %2452 = vmatmul.mubr.bf16.gmra.mrb[0].mxu0 %v1826
  %v2453 = vpop.f32.mrb[0].mxu0
  %v2454 = vadd.f32 %v1702, %v2453
  %v2455 = vpop.f32.mrb[0].mxu0
  %v2456 = vpop.f32.mrb[0].mxu0
  %v2457 = vadd.f32 %v1702, %v2456
  %v2458 = vpop.f32.mrb[0].mxu0
  %2459 = vmatprep.mubr.bf16.mxu0 0
  %2460 = vmatmul.mubr.bf16.gmra.mrb[0].mxu0 %v1829
  %v2461 = vpop.f32.mrb[0].mxu0
  %v2462 = vadd.f32 %v1702, %v2461
  %v2463 = vpop.f32.mrb[0].mxu0
  %v2464 = vpop.f32.mrb[0].mxu0
  %v2465 = vadd.f32 %v1702, %v2464
  %v2466 = vpop.f32.mrb[0].mxu0
  %2467 = vmatprep.mubr.bf16.mxu0 0
  %2468 = vmatmul.mubr.bf16.gmra.mrb[0].mxu0 %v1832
  %v2469 = vpop.f32.mrb[0].mxu0
  %v2470 = vadd.f32 %v1702, %v2469
  %v2471 = vpop.f32.mrb[0].mxu0
  %v2472 = vpop.f32.mrb[0].mxu0
  %v2473 = vadd.f32 %v1702, %v2472
  %v2474 = vpop.f32.mrb[0].mxu0
  %2475 = vdwg.mxu0
  %v2476 = vmax.f32 %v1869, 0.0
  %v2477 = vmax.f32 %v1871, 0.0
  %v2478 = vmax.f32 %v2222, 0.0
  %v2479 = vmax.f32 %v1873, 0.0
  %v2480 = vmax.f32 %v1875, 0.0
  %v2481 = vmax.f32 %v2225, 0.0
  %v2482 = vmax.f32 %v1879, 0.0
  %v2483 = vmax.f32 %v1881, 0.0
  %v2484 = vmax.f32 %v2230, 0.0
  %v2485 = vmax.f32 %v1883, 0.0
  %v2486 = vmax.f32 %v1885, 0.0
  %v2487 = vmax.f32 %v2233, 0.0
  %v2488 = vmax.f32 %v1889, 0.0
  %v2489 = vmax.f32 %v1891, 0.0
  %v2490 = vmax.f32 %v2238, 0.0
  %v2491 = vmax.f32 %v1893, 0.0
  %v2492 = vmax.f32 %v1895, 0.0
  %v2493 = vmax.f32 %v2241, 0.0
  %v2494 = vmax.f32 %v1899, 0.0
  %v2495 = vmax.f32 %v1901, 0.0
  %v2496 = vmax.f32 %v2246, 0.0
  %v2497 = vmax.f32 %v1903, 0.0
  %v2498 = vmax.f32 %v1905, 0.0
  %v2499 = vmax.f32 %v2249, 0.0
  %v2500 = vmax.f32 %v1909, 0.0
  %v2501 = vmax.f32 %v1911, 0.0
  %v2502 = vmax.f32 %v2254, 0.0
  %v2503 = vmax.f32 %v1913, 0.0
  %v2504 = vmax.f32 %v1915, 0.0
  %v2505 = vmax.f32 %v2257, 0.0
  %v2506 = vmax.f32 %v1919, 0.0
  %v2507 = vmax.f32 %v1921, 0.0
  %v2508 = vmax.f32 %v2262, 0.0
  %v2509 = vmax.f32 %v1923, 0.0
  %v2510 = vmax.f32 %v1925, 0.0
  %v2511 = vmax.f32 %v2265, 0.0
  %v2512 = vmax.f32 %v1929, 0.0
  %v2513 = vmax.f32 %v1931, 0.0
  %v2514 = vmax.f32 %v2270, 0.0
  %v2515 = vmax.f32 %v1933, 0.0
  %v2516 = vmax.f32 %v1935, 0.0
  %v2517 = vmax.f32 %v2273, 0.0
  %v2518 = vmax.f32 %v1939, 0.0
  %v2519 = vmax.f32 %v1941, 0.0
  %v2520 = vmax.f32 %v2278, 0.0
  %v2521 = vmax.f32 %v1943, 0.0
  %v2522 = vmax.f32 %v1945, 0.0
  %v2523 = vmax.f32 %v2281, 0.0
  %v2524 = vmax.f32 %v1949, 0.0
  %v2525 = vmax.f32 %v1951, 0.0
  %v2526 = vmax.f32 %v2286, 0.0
  %v2527 = vmax.f32 %v1953, 0.0
  %v2528 = vmax.f32 %v1955, 0.0
  %v2529 = vmax.f32 %v2289, 0.0
  %v2530 = vmax.f32 %v1959, 0.0
  %v2531 = vmax.f32 %v1961, 0.0
  %v2532 = vmax.f32 %v2294, 0.0
  %v2533 = vmax.f32 %v1963, 0.0
  %v2534 = vmax.f32 %v1965, 0.0
  %v2535 = vmax.f32 %v2297, 0.0
  %v2536 = vmax.f32 %v1969, 0.0
  %v2537 = vmax.f32 %v1971, 0.0
  %v2538 = vmax.f32 %v2302, 0.0
  %v2539 = vmax.f32 %v1973, 0.0
  %v2540 = vmax.f32 %v1975, 0.0
  %v2541 = vmax.f32 %v2305, 0.0
  %v2542 = vmax.f32 %v1979, 0.0
  %v2543 = vmax.f32 %v1981, 0.0
  %v2544 = vmax.f32 %v2310, 0.0
  %v2545 = vmax.f32 %v1983, 0.0
  %v2546 = vmax.f32 %v1985, 0.0
  %v2547 = vmax.f32 %v2313, 0.0
  %v2548 = vmax.f32 %v1989, 0.0
  %v2549 = vmax.f32 %v1991, 0.0
  %v2550 = vmax.f32 %v2318, 0.0
  %v2551 = vmax.f32 %v1993, 0.0
  %v2552 = vmax.f32 %v1995, 0.0
  %v2553 = vmax.f32 %v2321, 0.0
  %v2554 = vmax.f32 %v1999, 0.0
  %v2555 = vmax.f32 %v2001, 0.0
  %v2556 = vmax.f32 %v2326, 0.0
  %v2557 = vmax.f32 %v2003, 0.0
  %v2558 = vmax.f32 %v2005, 0.0
  %v2559 = vmax.f32 %v2329, 0.0
  %v2560 = vmax.f32 %v2009, 0.0
  %v2561 = vmax.f32 %v2011, 0.0
  %v2562 = vmax.f32 %v2334, 0.0
  %v2563 = vmax.f32 %v2013, 0.0
  %v2564 = vmax.f32 %v2015, 0.0
  %v2565 = vmax.f32 %v2337, 0.0
  %v2566 = vmax.f32 %v2019, 0.0
  %v2567 = vmax.f32 %v2021, 0.0
  %v2568 = vmax.f32 %v2342, 0.0
  %v2569 = vmax.f32 %v2023, 0.0
  %v2570 = vmax.f32 %v2025, 0.0
  %v2571 = vmax.f32 %v2345, 0.0
  %v2572 = vmax.f32 %v2029, 0.0
  %v2573 = vmax.f32 %v2031, 0.0
  %v2574 = vmax.f32 %v2350, 0.0
  %v2575 = vmax.f32 %v2033, 0.0
  %v2576 = vmax.f32 %v2035, 0.0
  %v2577 = vmax.f32 %v2353, 0.0
  %v2578 = vmax.f32 %v2039, 0.0
  %v2579 = vmax.f32 %v2041, 0.0
  %v2580 = vmax.f32 %v2358, 0.0
  %v2581 = vmax.f32 %v2043, 0.0
  %v2582 = vmax.f32 %v2045, 0.0
  %v2583 = vmax.f32 %v2361, 0.0
  %v2584 = vmax.f32 %v2049, 0.0
  %v2585 = vmax.f32 %v2051, 0.0
  %v2586 = vmax.f32 %v2366, 0.0
  %v2587 = vmax.f32 %v2053, 0.0
  %v2588 = vmax.f32 %v2055, 0.0
  %v2589 = vmax.f32 %v2369, 0.0
  %v2590 = vmax.f32 %v2059, 0.0
  %v2591 = vmax.f32 %v2061, 0.0
  %v2592 = vmax.f32 %v2374, 0.0
  %v2593 = vmax.f32 %v2063, 0.0
  %v2594 = vmax.f32 %v2065, 0.0
  %v2595 = vmax.f32 %v2377, 0.0
  %v2596 = vmax.f32 %v2069, 0.0
  %v2597 = vmax.f32 %v2071, 0.0
  %v2598 = vmax.f32 %v2382, 0.0
  %v2599 = vmax.f32 %v2073, 0.0
  %v2600 = vmax.f32 %v2075, 0.0
  %v2601 = vmax.f32 %v2385, 0.0
  %v2602 = vmax.f32 %v2079, 0.0
  %v2603 = vmax.f32 %v2081, 0.0
  %v2604 = vmax.f32 %v2390, 0.0
  %v2605 = vmax.f32 %v2083, 0.0
  %v2606 = vmax.f32 %v2085, 0.0
  %v2607 = vmax.f32 %v2393, 0.0
  %v2608 = vmax.f32 %v2089, 0.0
  %v2609 = vmax.f32 %v2091, 0.0
  %v2610 = vmax.f32 %v2398, 0.0
  %v2611 = vmax.f32 %v2093, 0.0
  %v2612 = vmax.f32 %v2095, 0.0
  %v2613 = vmax.f32 %v2401, 0.0
  %v2614 = vmax.f32 %v2099, 0.0
  %v2615 = vmax.f32 %v2101, 0.0
  %v2616 = vmax.f32 %v2406, 0.0
  %v2617 = vmax.f32 %v2103, 0.0
  %v2618 = vmax.f32 %v2105, 0.0
  %v2619 = vmax.f32 %v2409, 0.0
  %v2620 = vmax.f32 %v2109, 0.0
  %v2621 = vmax.f32 %v2111, 0.0
  %v2622 = vmax.f32 %v2414, 0.0
  %v2623 = vmax.f32 %v2113, 0.0
  %v2624 = vmax.f32 %v2115, 0.0
  %v2625 = vmax.f32 %v2417, 0.0
  %v2626 = vmax.f32 %v2119, 0.0
  %v2627 = vmax.f32 %v2121, 0.0
  %v2628 = vmax.f32 %v2422, 0.0
  %v2629 = vmax.f32 %v2123, 0.0
  %v2630 = vmax.f32 %v2125, 0.0
  %v2631 = vmax.f32 %v2425, 0.0
  %v2632 = vmax.f32 %v2129, 0.0
  %v2633 = vmax.f32 %v2131, 0.0
  %v2634 = vmax.f32 %v2430, 0.0
  %v2635 = vmax.f32 %v2133, 0.0
  %v2636 = vmax.f32 %v2135, 0.0
  %v2637 = vmax.f32 %v2433, 0.0
  %v2638 = vmax.f32 %v2139, 0.0
  %v2639 = vmax.f32 %v2141, 0.0
  %v2640 = vmax.f32 %v2438, 0.0
  %v2641 = vmax.f32 %v2143, 0.0
  %v2642 = vmax.f32 %v2145, 0.0
  %v2643 = vmax.f32 %v2441, 0.0
  %v2644 = vmax.f32 %v2149, 0.0
  %v2645 = vmax.f32 %v2151, 0.0
  %v2646 = vmax.f32 %v2446, 0.0
  %v2647 = vmax.f32 %v2153, 0.0
  %v2648 = vmax.f32 %v2155, 0.0
  %v2649 = vmax.f32 %v2449, 0.0
  %v2650 = vmax.f32 %v2159, 0.0
  %v2651 = vmax.f32 %v2161, 0.0
  %v2652 = vmax.f32 %v2454, 0.0
  %v2653 = vmax.f32 %v2163, 0.0
  %v2654 = vmax.f32 %v2165, 0.0
  %v2655 = vmax.f32 %v2457, 0.0
  %v2656 = vmax.f32 %v2169, 0.0
  %v2657 = vmax.f32 %v2171, 0.0
  %v2658 = vmax.f32 %v2462, 0.0
  %v2659 = vmax.f32 %v2173, 0.0
  %v2660 = vmax.f32 %v2175, 0.0
  %v2661 = vmax.f32 %v2465, 0.0
  %v2662 = vmax.f32 %v2179, 0.0
  %v2663 = vmax.f32 %v2181, 0.0
  %v2664 = vmax.f32 %v2470, 0.0
  %v2665 = vmax.f32 %v2183, 0.0
  %v2666 = vmax.f32 %v2185, 0.0
  %v2667 = vmax.f32 %v2473, 0.0
  %v2668 = vpack.c.bf16 %v2479, %v2476
  %v2669 = vpack.c.bf16 %v2480, %v2477
  %v2670 = vpack.c.bf16 %v2481, %v2478
  %v2671 = vpack.c.bf16 %v2485, %v2482
  %v2672 = vpack.c.bf16 %v2486, %v2483
  %v2673 = vpack.c.bf16 %v2487, %v2484
  %v2674 = vpack.c.bf16 %v2491, %v2488
  %v2675 = vpack.c.bf16 %v2492, %v2489
  %v2676 = vpack.c.bf16 %v2493, %v2490
  %v2677 = vpack.c.bf16 %v2497, %v2494
  %v2678 = vpack.c.bf16 %v2498, %v2495
  %v2679 = vpack.c.bf16 %v2499, %v2496
  %v2680 = vpack.c.bf16 %v2503, %v2500
  %v2681 = vpack.c.bf16 %v2504, %v2501
  %v2682 = vpack.c.bf16 %v2505, %v2502
  %v2683 = vpack.c.bf16 %v2509, %v2506
  %v2684 = vpack.c.bf16 %v2510, %v2507
  %v2685 = vpack.c.bf16 %v2511, %v2508
  %v2686 = vpack.c.bf16 %v2515, %v2512
  %v2687 = vpack.c.bf16 %v2516, %v2513
  %v2688 = vpack.c.bf16 %v2517, %v2514
  %v2689 = vpack.c.bf16 %v2521, %v2518
  %v2690 = vpack.c.bf16 %v2522, %v2519
  %v2691 = vpack.c.bf16 %v2523, %v2520
  %v2692 = vpack.c.bf16 %v2527, %v2524
  %v2693 = vpack.c.bf16 %v2528, %v2525
  %v2694 = vpack.c.bf16 %v2529, %v2526
  %v2695 = vpack.c.bf16 %v2533, %v2530
  %v2696 = vpack.c.bf16 %v2534, %v2531
  %v2697 = vpack.c.bf16 %v2535, %v2532
  %v2698 = vpack.c.bf16 %v2539, %v2536
  %v2699 = vpack.c.bf16 %v2540, %v2537
  %v2700 = vpack.c.bf16 %v2541, %v2538
  %v2701 = vpack.c.bf16 %v2545, %v2542
  %v2702 = vpack.c.bf16 %v2546, %v2543
  %v2703 = vpack.c.bf16 %v2547, %v2544
  %v2704 = vpack.c.bf16 %v2551, %v2548
  %v2705 = vpack.c.bf16 %v2552, %v2549
  %v2706 = vpack.c.bf16 %v2553, %v2550
  %v2707 = vpack.c.bf16 %v2557, %v2554
  %v2708 = vpack.c.bf16 %v2558, %v2555
  %v2709 = vpack.c.bf16 %v2559, %v2556
  %v2710 = vpack.c.bf16 %v2563, %v2560
  %v2711 = vpack.c.bf16 %v2564, %v2561
  %v2712 = vpack.c.bf16 %v2565, %v2562
  %v2713 = vpack.c.bf16 %v2569, %v2566
  %v2714 = vpack.c.bf16 %v2570, %v2567
  %v2715 = vpack.c.bf16 %v2571, %v2568
  %v2716 = vpack.c.bf16 %v2575, %v2572
  %v2717 = vpack.c.bf16 %v2576, %v2573
  %v2718 = vpack.c.bf16 %v2577, %v2574
  %v2719 = vpack.c.bf16 %v2581, %v2578
  %v2720 = vpack.c.bf16 %v2582, %v2579
  %v2721 = vpack.c.bf16 %v2583, %v2580
  %v2722 = vpack.c.bf16 %v2587, %v2584
  %v2723 = vpack.c.bf16 %v2588, %v2585
  %v2724 = vpack.c.bf16 %v2589, %v2586
  %v2725 = vpack.c.bf16 %v2593, %v2590
  %v2726 = vpack.c.bf16 %v2594, %v2591
  %v2727 = vpack.c.bf16 %v2595, %v2592
  %v2728 = vpack.c.bf16 %v2599, %v2596
  %v2729 = vpack.c.bf16 %v2600, %v2597
  %v2730 = vpack.c.bf16 %v2601, %v2598
  %v2731 = vpack.c.bf16 %v2605, %v2602
  %v2732 = vpack.c.bf16 %v2606, %v2603
  %v2733 = vpack.c.bf16 %v2607, %v2604
  %v2734 = vpack.c.bf16 %v2611, %v2608
  %v2735 = vpack.c.bf16 %v2612, %v2609
  %v2736 = vpack.c.bf16 %v2613, %v2610
  %v2737 = vpack.c.bf16 %v2617, %v2614
  %v2738 = vpack.c.bf16 %v2618, %v2615
  %v2739 = vpack.c.bf16 %v2619, %v2616
  %v2740 = vpack.c.bf16 %v2623, %v2620
  %v2741 = vpack.c.bf16 %v2624, %v2621
  %v2742 = vpack.c.bf16 %v2625, %v2622
  %v2743 = vpack.c.bf16 %v2629, %v2626
  %v2744 = vpack.c.bf16 %v2630, %v2627
  %v2745 = vpack.c.bf16 %v2631, %v2628
  %v2746 = vpack.c.bf16 %v2635, %v2632
  %v2747 = vpack.c.bf16 %v2636, %v2633
  %v2748 = vpack.c.bf16 %v2637, %v2634
  %v2749 = vpack.c.bf16 %v2641, %v2638
  %v2750 = vpack.c.bf16 %v2642, %v2639
  %v2751 = vpack.c.bf16 %v2643, %v2640
  %v2752 = vpack.c.bf16 %v2647, %v2644
  %v2753 = vpack.c.bf16 %v2648, %v2645
  %v2754 = vpack.c.bf16 %v2649, %v2646
  %v2755 = vpack.c.bf16 %v2653, %v2650
  %v2756 = vpack.c.bf16 %v2654, %v2651
  %v2757 = vpack.c.bf16 %v2655, %v2652
  %v2758 = vpack.c.bf16 %v2659, %v2656
  %v2759 = vpack.c.bf16 %v2660, %v2657
  %v2760 = vpack.c.bf16 %v2661, %v2658
  %v2761 = vpack.c.bf16 %v2665, %v2662
  %v2762 = vpack.c.bf16 %v2666, %v2663
  %v2763 = vpack.c.bf16 %v2667, %v2664
  %v2764 = vld [vmem:[%s9] sm:$0xf]
  %v2765 = vld [vmem:[%s9 + $0x4] sm:$0xf]
  %v2766 = vld [vmem:[%s9 + $0x8] sm:$0xf]
  %v2767 = vld [vmem:[%s9 + $0xc] sm:$0xf]
  %v2768 = vld [vmem:[%s9 + $0x10] sm:$0xf]
  %v2769 = vld [vmem:[%s9 + $0x14] sm:$0xf]
  %v2770 = vld [vmem:[%s9 + $0x18] sm:$0xf]
  %v2771 = vld [vmem:[%s9 + $0x1c] sm:$0xf]
  %v2772 = vld [vmem:[%s9 + $0x20] sm:$0xf]
  %v2773 = vld [vmem:[%s9 + $0x24] sm:$0xf]
  %v2774 = vld [vmem:[%s9 + $0x28] sm:$0xf]
  %v2775 = vld [vmem:[%s9 + $0x2c] sm:$0xf]
  %v2776 = vld [vmem:[%s9 + $0x30] sm:$0xf]
  %v2777 = vld [vmem:[%s9 + $0x34] sm:$0xf]
  %v2778 = vld [vmem:[%s9 + $0x38] sm:$0xf]
  %v2779 = vld [vmem:[%s9 + $0x3c] sm:$0xf]
  %v2780 = vld [vmem:[%s10] sm:$0x1]
  %v2782 = vlaneseq
  %v2783 = vshrl.u32 %v2782, 7
  %v2784 = vsub.s32 0, %v2783
  %v2785 = vrot.slane %v2780, %v2784
  %v2803 = vunpack.c.l.b16 %v2764
  %v2804 = vunpack.c.l.b16 %v2765
  %v2805 = vunpack.c.l.b16 %v2766
  %v2806 = vunpack.c.l.b16 %v2767
  %v2807 = vunpack.c.l.b16 %v2768
  %v2808 = vunpack.c.l.b16 %v2769
  %v2809 = vunpack.c.l.b16 %v2770
  %v2810 = vunpack.c.l.b16 %v2771
  %v2811 = vunpack.c.l.b16 %v2772
  %v2812 = vunpack.c.l.b16 %v2773
  %v2813 = vunpack.c.l.b16 %v2774
  %v2814 = vunpack.c.l.b16 %v2775
  %v2815 = vunpack.c.l.b16 %v2776
  %v2816 = vunpack.c.l.b16 %v2777
  %v2817 = vunpack.c.l.b16 %v2778
  %v2818 = vunpack.c.l.b16 %v2779
  %v2819 = vpack.c.b16 %v2804, %v2803
  %v2820 = vpack.c.b16 %v2806, %v2805
  %v2821 = vpack.c.b16 %v2808, %v2807
  %v2822 = vpack.c.b16 %v2810, %v2809
  %v2823 = vpack.c.b16 %v2812, %v2811
  %v2824 = vpack.c.b16 %v2814, %v2813
  %v2825 = vpack.c.b16 %v2816, %v2815
  %v2826 = vpack.c.b16 %v2818, %v2817
  %2835 = vmatprep.subr.bf16.mxu0 0
  %2836 = vmatpush1.bf16.msra.mxu0 %v2819
  %2837 = vmatprep.subr.bf16.mxu0 0
  %2838 = vmatpush1.bf16.msra.mxu0 %v2820
  %2839 = vmatprep.subr.bf16.mxu0 0
  %2840 = vmatpush1.bf16.msra.mxu0 %v2821
  %2841 = vmatprep.subr.bf16.mxu0 0
  %2842 = vmatpush1.bf16.msra.mxu0 %v2822
  %2843 = vmatprep.subr.bf16.mxu0 0
  %2844 = vmatpush1.bf16.msra.mxu0 %v2823
  %2845 = vmatprep.subr.bf16.mxu0 0
  %2846 = vmatpush1.bf16.msra.mxu0 %v2824
  %2847 = vmatprep.subr.bf16.mxu0 0
  %2848 = vmatpush1.bf16.msra.mxu0 %v2825
  %2849 = vmatprep.subr.bf16.mxu0 0
  %2850 = vmatpush1.bf16.msra.mxu0 %v2826
  %2851 = vmatprep.subr.bf16.mxu0 0
  %2852 = vmatpush1.bf16.msra.mxu0 0
  %2853 = vmatprep.subr.bf16.mxu0 0
  %2854 = vmatpush1.bf16.msra.mxu0 0
  %2855 = vmatprep.subr.bf16.mxu0 0
  %2856 = vmatpush1.bf16.msra.mxu0 0
  %2857 = vmatprep.subr.bf16.mxu0 0
  %2858 = vmatpush1.bf16.msra.mxu0 0
  %2859 = vmatprep.subr.bf16.mxu0 0
  %2860 = vmatpush1.bf16.msra.mxu0 0
  %2861 = vmatprep.subr.bf16.mxu0 0
  %2862 = vmatpush1.bf16.msra.mxu0 0
  %2863 = vmatprep.subr.bf16.mxu0 0
  %2864 = vmatpush1.bf16.msra.mxu0 0
  %2865 = vmatprep.subr.bf16.mxu0 0
  %2866 = vmatpush1.bf16.msra.mxu0 0
  %2867 = vmatprep.mubr.bf16.mxu0 0
  %2868 = vmatmul.mubr.bf16.gmra.mrb[0].mxu0 %v2668
  %v2869 = vpop.f32.mrb[0].mxu0
  %v2870 = vadd.f32 %v2785, %v2869
  %v2871 = vpop.f32.mrb[0].mxu0
  %v2872 = vpop.f32.mrb[0].mxu0
  %v2873 = vadd.f32 %v2785, %v2872
  %v2874 = vpop.f32.mrb[0].mxu0
  %2875 = vmatprep.mubr.bf16.mxu0 0
  %2876 = vmatmul.mubr.bf16.gmra.mrb[0].mxu0 %v2671
  %v2877 = vpop.f32.mrb[0].mxu0
  %v2878 = vadd.f32 %v2785, %v2877
  %v2879 = vpop.f32.mrb[0].mxu0
  %v2880 = vpop.f32.mrb[0].mxu0
  %v2881 = vadd.f32 %v2785, %v2880
  %v2882 = vpop.f32.mrb[0].mxu0
  %2883 = vmatprep.mubr.bf16.mxu0 0
  %2884 = vmatmul.mubr.bf16.gmra.mrb[0].mxu0 %v2674
  %v2885 = vpop.f32.mrb[0].mxu0
  %v2886 = vadd.f32 %v2785, %v2885
  %v2887 = vpop.f32.mrb[0].mxu0
  %v2888 = vpop.f32.mrb[0].mxu0
  %v2889 = vadd.f32 %v2785, %v2888
  %v2890 = vpop.f32.mrb[0].mxu0
  %2891 = vmatprep.mubr.bf16.mxu0 0
  %2892 = vmatmul.mubr.bf16.gmra.mrb[0].mxu0 %v2677
  %v2893 = vpop.f32.mrb[0].mxu0
  %v2894 = vadd.f32 %v2785, %v2893
  %v2895 = vpop.f32.mrb[0].mxu0
  %v2896 = vpop.f32.mrb[0].mxu0
  %v2897 = vadd.f32 %v2785, %v2896
  %v2898 = vpop.f32.mrb[0].mxu0
  %2899 = vmatprep.mubr.bf16.mxu0 0
  %2900 = vmatmul.mubr.bf16.gmra.mrb[0].mxu0 %v2680
  %v2901 = vpop.f32.mrb[0].mxu0
  %v2902 = vadd.f32 %v2785, %v2901
  %v2903 = vpop.f32.mrb[0].mxu0
  %v2904 = vpop.f32.mrb[0].mxu0
  %v2905 = vadd.f32 %v2785, %v2904
  %v2906 = vpop.f32.mrb[0].mxu0
  %2907 = vmatprep.mubr.bf16.mxu0 0
  %2908 = vmatmul.mubr.bf16.gmra.mrb[0].mxu0 %v2683
  %v2909 = vpop.f32.mrb[0].mxu0
  %v2910 = vadd.f32 %v2785, %v2909
  %v2911 = vpop.f32.mrb[0].mxu0
  %v2912 = vpop.f32.mrb[0].mxu0
  %v2913 = vadd.f32 %v2785, %v2912
  %v2914 = vpop.f32.mrb[0].mxu0
  %2915 = vmatprep.mubr.bf16.mxu0 0
  %2916 = vmatmul.mubr.bf16.gmra.mrb[0].mxu0 %v2686
  %v2917 = vpop.f32.mrb[0].mxu0
  %v2918 = vadd.f32 %v2785, %v2917
  %v2919 = vpop.f32.mrb[0].mxu0
  %v2920 = vpop.f32.mrb[0].mxu0
  %v2921 = vadd.f32 %v2785, %v2920
  %v2922 = vpop.f32.mrb[0].mxu0
  %2923 = vmatprep.mubr.bf16.mxu0 0
  %2924 = vmatmul.mubr.bf16.gmra.mrb[0].mxu0 %v2689
  %v2925 = vpop.f32.mrb[0].mxu0
  %v2926 = vadd.f32 %v2785, %v2925
  %v2927 = vpop.f32.mrb[0].mxu0
  %v2928 = vpop.f32.mrb[0].mxu0
  %v2929 = vadd.f32 %v2785, %v2928
  %v2930 = vpop.f32.mrb[0].mxu0
  %2931 = vmatprep.mubr.bf16.mxu0 0
  %2932 = vmatmul.mubr.bf16.gmra.mrb[0].mxu0 %v2692
  %v2933 = vpop.f32.mrb[0].mxu0
  %v2934 = vadd.f32 %v2785, %v2933
  %v2935 = vpop.f32.mrb[0].mxu0
  %v2936 = vpop.f32.mrb[0].mxu0
  %v2937 = vadd.f32 %v2785, %v2936
  %v2938 = vpop.f32.mrb[0].mxu0
  %2939 = vmatprep.mubr.bf16.mxu0 0
  %2940 = vmatmul.mubr.bf16.gmra.mrb[0].mxu0 %v2695
  %v2941 = vpop.f32.mrb[0].mxu0
  %v2942 = vadd.f32 %v2785, %v2941
  %v2943 = vpop.f32.mrb[0].mxu0
  %v2944 = vpop.f32.mrb[0].mxu0
  %v2945 = vadd.f32 %v2785, %v2944
  %v2946 = vpop.f32.mrb[0].mxu0
  %2947 = vmatprep.mubr.bf16.mxu0 0
  %2948 = vmatmul.mubr.bf16.gmra.mrb[0].mxu0 %v2698
  %v2949 = vpop.f32.mrb[0].mxu0
  %v2950 = vadd.f32 %v2785, %v2949
  %v2951 = vpop.f32.mrb[0].mxu0
  %v2952 = vpop.f32.mrb[0].mxu0
  %v2953 = vadd.f32 %v2785, %v2952
  %v2954 = vpop.f32.mrb[0].mxu0
  %2955 = vmatprep.mubr.bf16.mxu0 0
  %2956 = vmatmul.mubr.bf16.gmra.mrb[0].mxu0 %v2701
  %v2957 = vpop.f32.mrb[0].mxu0
  %v2958 = vadd.f32 %v2785, %v2957
  %v2959 = vpop.f32.mrb[0].mxu0
  %v2960 = vpop.f32.mrb[0].mxu0
  %v2961 = vadd.f32 %v2785, %v2960
  %v2962 = vpop.f32.mrb[0].mxu0
  %2963 = vmatprep.mubr.bf16.mxu0 0
  %2964 = vmatmul.mubr.bf16.gmra.mrb[0].mxu0 %v2704
  %v2965 = vpop.f32.mrb[0].mxu0
  %v2966 = vadd.f32 %v2785, %v2965
  %v2967 = vpop.f32.mrb[0].mxu0
  %v2968 = vpop.f32.mrb[0].mxu0
  %v2969 = vadd.f32 %v2785, %v2968
  %v2970 = vpop.f32.mrb[0].mxu0
  %2971 = vmatprep.mubr.bf16.mxu0 0
  %2972 = vmatmul.mubr.bf16.gmra.mrb[0].mxu0 %v2707
  %v2973 = vpop.f32.mrb[0].mxu0
  %v2974 = vadd.f32 %v2785, %v2973
  %v2975 = vpop.f32.mrb[0].mxu0
  %v2976 = vpop.f32.mrb[0].mxu0
  %v2977 = vadd.f32 %v2785, %v2976
  %v2978 = vpop.f32.mrb[0].mxu0
  %2979 = vmatprep.mubr.bf16.mxu0 0
  %2980 = vmatmul.mubr.bf16.gmra.mrb[0].mxu0 %v2710
  %v2981 = vpop.f32.mrb[0].mxu0
  %v2982 = vadd.f32 %v2785, %v2981
  %v2983 = vpop.f32.mrb[0].mxu0
  %v2984 = vpop.f32.mrb[0].mxu0
  %v2985 = vadd.f32 %v2785, %v2984
  %v2986 = vpop.f32.mrb[0].mxu0
  %2987 = vmatprep.mubr.bf16.mxu0 0
  %2988 = vmatmul.mubr.bf16.gmra.mrb[0].mxu0 %v2713
  %v2989 = vpop.f32.mrb[0].mxu0
  %v2990 = vadd.f32 %v2785, %v2989
  %v2991 = vpop.f32.mrb[0].mxu0
  %v2992 = vpop.f32.mrb[0].mxu0
  %v2993 = vadd.f32 %v2785, %v2992
  %v2994 = vpop.f32.mrb[0].mxu0
  %2995 = vmatprep.mubr.bf16.mxu0 0
  %2996 = vmatmul.mubr.bf16.gmra.mrb[0].mxu0 %v2716
  %v2997 = vpop.f32.mrb[0].mxu0
  %v2998 = vadd.f32 %v2785, %v2997
  %v2999 = vpop.f32.mrb[0].mxu0
  %v3000 = vpop.f32.mrb[0].mxu0
  %v3001 = vadd.f32 %v2785, %v3000
  %v3002 = vpop.f32.mrb[0].mxu0
  %3003 = vmatprep.mubr.bf16.mxu0 0
  %3004 = vmatmul.mubr.bf16.gmra.mrb[0].mxu0 %v2719
  %v3005 = vpop.f32.mrb[0].mxu0
  %v3006 = vadd.f32 %v2785, %v3005
  %v3007 = vpop.f32.mrb[0].mxu0
  %v3008 = vpop.f32.mrb[0].mxu0
  %v3009 = vadd.f32 %v2785, %v3008
  %v3010 = vpop.f32.mrb[0].mxu0
  %3011 = vmatprep.mubr.bf16.mxu0 0
  %3012 = vmatmul.mubr.bf16.gmra.mrb[0].mxu0 %v2722
  %v3013 = vpop.f32.mrb[0].mxu0
  %v3014 = vadd.f32 %v2785, %v3013
  %v3015 = vpop.f32.mrb[0].mxu0
  %v3016 = vpop.f32.mrb[0].mxu0
  %v3017 = vadd.f32 %v2785, %v3016
  %v3018 = vpop.f32.mrb[0].mxu0
  %3019 = vmatprep.mubr.bf16.mxu0 0
  %3020 = vmatmul.mubr.bf16.gmra.mrb[0].mxu0 %v2725
  %v3021 = vpop.f32.mrb[0].mxu0
  %v3022 = vadd.f32 %v2785, %v3021
  %v3023 = vpop.f32.mrb[0].mxu0
  %v3024 = vpop.f32.mrb[0].mxu0
  %v3025 = vadd.f32 %v2785, %v3024
  %v3026 = vpop.f32.mrb[0].mxu0
  %3027 = vmatprep.mubr.bf16.mxu0 0
  %3028 = vmatmul.mubr.bf16.gmra.mrb[0].mxu0 %v2728
  %v3029 = vpop.f32.mrb[0].mxu0
  %v3030 = vadd.f32 %v2785, %v3029
  %v3031 = vpop.f32.mrb[0].mxu0
  %v3032 = vpop.f32.mrb[0].mxu0
  %v3033 = vadd.f32 %v2785, %v3032
  %v3034 = vpop.f32.mrb[0].mxu0
  %3035 = vmatprep.mubr.bf16.mxu0 0
  %3036 = vmatmul.mubr.bf16.gmra.mrb[0].mxu0 %v2731
  %v3037 = vpop.f32.mrb[0].mxu0
  %v3038 = vadd.f32 %v2785, %v3037
  %v3039 = vpop.f32.mrb[0].mxu0
  %v3040 = vpop.f32.mrb[0].mxu0
  %v3041 = vadd.f32 %v2785, %v3040
  %v3042 = vpop.f32.mrb[0].mxu0
  %3043 = vmatprep.mubr.bf16.mxu0 0
  %3044 = vmatmul.mubr.bf16.gmra.mrb[0].mxu0 %v2734
  %v3045 = vpop.f32.mrb[0].mxu0
  %v3046 = vadd.f32 %v2785, %v3045
  %v3047 = vpop.f32.mrb[0].mxu0
  %v3048 = vpop.f32.mrb[0].mxu0
  %v3049 = vadd.f32 %v2785, %v3048
  %v3050 = vpop.f32.mrb[0].mxu0
  %3051 = vmatprep.mubr.bf16.mxu0 0
  %3052 = vmatmul.mubr.bf16.gmra.mrb[0].mxu0 %v2737
  %v3053 = vpop.f32.mrb[0].mxu0
  %v3054 = vadd.f32 %v2785, %v3053
  %v3055 = vpop.f32.mrb[0].mxu0
  %v3056 = vpop.f32.mrb[0].mxu0
  %v3057 = vadd.f32 %v2785, %v3056
  %v3058 = vpop.f32.mrb[0].mxu0
  %3059 = vmatprep.mubr.bf16.mxu0 0
  %3060 = vmatmul.mubr.bf16.gmra.mrb[0].mxu0 %v2740
  %v3061 = vpop.f32.mrb[0].mxu0
  %v3062 = vadd.f32 %v2785, %v3061
  %v3063 = vpop.f32.mrb[0].mxu0
  %v3064 = vpop.f32.mrb[0].mxu0
  %v3065 = vadd.f32 %v2785, %v3064
  %v3066 = vpop.f32.mrb[0].mxu0
  %3067 = vmatprep.mubr.bf16.mxu0 0
  %3068 = vmatmul.mubr.bf16.gmra.mrb[0].mxu0 %v2743
  %v3069 = vpop.f32.mrb[0].mxu0
  %v3070 = vadd.f32 %v2785, %v3069
  %v3071 = vpop.f32.mrb[0].mxu0
  %v3072 = vpop.f32.mrb[0].mxu0
  %v3073 = vadd.f32 %v2785, %v3072
  %v3074 = vpop.f32.mrb[0].mxu0
  %3075 = vmatprep.mubr.bf16.mxu0 0
  %3076 = vmatmul.mubr.bf16.gmra.mrb[0].mxu0 %v2746
  %v3077 = vpop.f32.mrb[0].mxu0
  %v3078 = vadd.f32 %v2785, %v3077
  %v3079 = vpop.f32.mrb[0].mxu0
  %v3080 = vpop.f32.mrb[0].mxu0
  %v3081 = vadd.f32 %v2785, %v3080
  %v3082 = vpop.f32.mrb[0].mxu0
  %3083 = vmatprep.mubr.bf16.mxu0 0
  %3084 = vmatmul.mubr.bf16.gmra.mrb[0].mxu0 %v2749
  %v3085 = vpop.f32.mrb[0].mxu0
  %v3086 = vadd.f32 %v2785, %v3085
  %v3087 = vpop.f32.mrb[0].mxu0
  %v3088 = vpop.f32.mrb[0].mxu0
  %v3089 = vadd.f32 %v2785, %v3088
  %v3090 = vpop.f32.mrb[0].mxu0
  %3091 = vmatprep.mubr.bf16.mxu0 0
  %3092 = vmatmul.mubr.bf16.gmra.mrb[0].mxu0 %v2752
  %v3093 = vpop.f32.mrb[0].mxu0
  %v3094 = vadd.f32 %v2785, %v3093
  %v3095 = vpop.f32.mrb[0].mxu0
  %v3096 = vpop.f32.mrb[0].mxu0
  %v3097 = vadd.f32 %v2785, %v3096
  %v3098 = vpop.f32.mrb[0].mxu0
  %3099 = vmatprep.mubr.bf16.mxu0 0
  %3100 = vmatmul.mubr.bf16.gmra.mrb[0].mxu0 %v2755
  %v3101 = vpop.f32.mrb[0].mxu0
  %v3102 = vadd.f32 %v2785, %v3101
  %v3103 = vpop.f32.mrb[0].mxu0
  %v3104 = vpop.f32.mrb[0].mxu0
  %v3105 = vadd.f32 %v2785, %v3104
  %v3106 = vpop.f32.mrb[0].mxu0
  %3107 = vmatprep.mubr.bf16.mxu0 0
  %3108 = vmatmul.mubr.bf16.gmra.mrb[0].mxu0 %v2758
  %v3109 = vpop.f32.mrb[0].mxu0
  %v3110 = vadd.f32 %v2785, %v3109
  %v3111 = vpop.f32.mrb[0].mxu0
  %v3112 = vpop.f32.mrb[0].mxu0
  %v3113 = vadd.f32 %v2785, %v3112
  %v3114 = vpop.f32.mrb[0].mxu0
  %3115 = vmatprep.mubr.bf16.mxu0 0
  %3116 = vmatmul.mubr.bf16.gmra.mrb[0].mxu0 %v2761
  %v3117 = vpop.f32.mrb[0].mxu0
  %v3118 = vadd.f32 %v2785, %v3117
  %v3119 = vpop.f32.mrb[0].mxu0
  %v3120 = vpop.f32.mrb[0].mxu0
  %v3121 = vadd.f32 %v2785, %v3120
  %v3122 = vpop.f32.mrb[0].mxu0
  %3123 = vdwg.mxu0
  %3124 = vst [vmem:[%s11] sm:$0xff] %v2870
  %3125 = vst [vmem:[%s11 + $0x18] sm:$0xff] %v2873
  %3126 = vst [vmem:[%s11 + $0x30] sm:$0xff] %v2878
  %3127 = vst [vmem:[%s11 + $0x48] sm:$0xff] %v2881
  %3128 = vst [vmem:[%s11 + $0x60] sm:$0xff] %v2886
  %3129 = vst [vmem:[%s11 + $0x78] sm:$0xff] %v2889
  %3130 = vst [vmem:[%s11 + $0x90] sm:$0xff] %v2894
  %3131 = vst [vmem:[%s11 + $0xa8] sm:$0xff] %v2897
  %3132 = vst [vmem:[%s11 + $0xc0] sm:$0xff] %v2902
  %3133 = vst [vmem:[%s11 + $0xd8] sm:$0xff] %v2905
  %3134 = vst [vmem:[%s11 + $0xf0] sm:$0xff] %v2910
  %3135 = vst [vmem:[%s11 + $0x108] sm:$0xff] %v2913
  %3136 = vst [vmem:[%s11 + $0x120] sm:$0xff] %v2918
  %3137 = vst [vmem:[%s11 + $0x138] sm:$0xff] %v2921
  %3138 = vst [vmem:[%s11 + $0x150] sm:$0xff] %v2926
  %3139 = vst [vmem:[%s11 + $0x168] sm:$0xff] %v2929
  %3140 = vst [vmem:[%s11 + $0x180] sm:$0xff] %v2934
  %3141 = vst [vmem:[%s11 + $0x198] sm:$0xff] %v2937
  %3142 = vst [vmem:[%s11 + $0x1b0] sm:$0xff] %v2942
  %3143 = vst [vmem:[%s11 + $0x1c8] sm:$0xff] %v2945
  %3144 = vst [vmem:[%s11 + $0x1e0] sm:$0xff] %v2950
  %3145 = vst [vmem:[%s11 + $0x1f8] sm:$0xff] %v2953
  %3146 = vst [vmem:[%s11 + $0x210] sm:$0xff] %v2958
  %3147 = vst [vmem:[%s11 + $0x228] sm:$0xff] %v2961
  %3148 = vst [vmem:[%s11 + $0x240] sm:$0xff] %v2966
  %3149 = vst [vmem:[%s11 + $0x258] sm:$0xff] %v2969
  %3150 = vst [vmem:[%s11 + $0x270] sm:$0xff] %v2974
  %3151 = vst [vmem:[%s11 + $0x288] sm:$0xff] %v2977
  %3152 = vst [vmem:[%s11 + $0x2a0] sm:$0xff] %v2982
  %3153 = vst [vmem:[%s11 + $0x2b8] sm:$0xff] %v2985
  %3154 = vst [vmem:[%s11 + $0x2d0] sm:$0xff] %v2990
  %3155 = vst [vmem:[%s11 + $0x2e8] sm:$0xff] %v2993
  %3156 = vst [vmem:[%s11 + $0x300] sm:$0xff] %v2998
  %3157 = vst [vmem:[%s11 + $0x318] sm:$0xff] %v3001
  %3158 = vst [vmem:[%s11 + $0x330] sm:$0xff] %v3006
  %3159 = vst [vmem:[%s11 + $0x348] sm:$0xff] %v3009
  %3160 = vst [vmem:[%s11 + $0x360] sm:$0xff] %v3014
  %3161 = vst [vmem:[%s11 + $0x378] sm:$0xff] %v3017
  %3162 = vst [vmem:[%s11 + $0x390] sm:$0xff] %v3022
  %3163 = vst [vmem:[%s11 + $0x3a8] sm:$0xff] %v3025
  %3164 = vst [vmem:[%s11 + $0x3c0] sm:$0xff] %v3030
  %3165 = vst [vmem:[%s11 + $0x3d8] sm:$0xff] %v3033
  %3166 = vst [vmem:[%s11 + $0x3f0] sm:$0xff] %v3038
  %3167 = vst [vmem:[%s11 + $0x408] sm:$0xff] %v3041
  %3168 = vst [vmem:[%s11 + $0x420] sm:$0xff] %v3046
  %3169 = vst [vmem:[%s11 + $0x438] sm:$0xff] %v3049
  %3170 = vst [vmem:[%s11 + $0x450] sm:$0xff] %v3054
  %3171 = vst [vmem:[%s11 + $0x468] sm:$0xff] %v3057
  %3172 = vst [vmem:[%s11 + $0x480] sm:$0xff] %v3062
  %3173 = vst [vmem:[%s11 + $0x498] sm:$0xff] %v3065
  %3174 = vst [vmem:[%s11 + $0x4b0] sm:$0xff] %v3070
  %3175 = vst [vmem:[%s11 + $0x4c8] sm:$0xff] %v3073
  %3176 = vst [vmem:[%s11 + $0x4e0] sm:$0xff] %v3078
  %3177 = vst [vmem:[%s11 + $0x4f8] sm:$0xff] %v3081
  %3178 = vst [vmem:[%s11 + $0x510] sm:$0xff] %v3086
  %3179 = vst [vmem:[%s11 + $0x528] sm:$0xff] %v3089
  %3180 = vst [vmem:[%s11 + $0x540] sm:$0xff] %v3094
  %3181 = vst [vmem:[%s11 + $0x558] sm:$0xff] %v3097
  %3182 = vst [vmem:[%s11 + $0x570] sm:$0xff] %v3102
  %3183 = vst [vmem:[%s11 + $0x588] sm:$0xff] %v3105
  %3184 = vst [vmem:[%s11 + $0x5a0] sm:$0xff] %v3110
  %3185 = vst [vmem:[%s11 + $0x5b8] sm:$0xff] %v3113
  %3186 = vst [vmem:[%s11 + $0x5d0] sm:$0xff] %v3118
  %3187 = vst [vmem:[%s11 + $0x5e8] sm:$0xff] %v3121
  %s3188 = scalar_lea.vmem %s9, 64
  %v3189 = vld [vmem:[%s3188] sm:$0xf]
  %v3190 = vld [vmem:[%s3188 + $0x4] sm:$0xf]
  %v3191 = vld [vmem:[%s3188 + $0x8] sm:$0xf]
  %v3192 = vld [vmem:[%s3188 + $0xc] sm:$0xf]
  %v3193 = vld [vmem:[%s3188 + $0x10] sm:$0xf]
  %v3194 = vld [vmem:[%s3188 + $0x14] sm:$0xf]
  %v3195 = vld [vmem:[%s3188 + $0x18] sm:$0xf]
  %v3196 = vld [vmem:[%s3188 + $0x1c] sm:$0xf]
  %v3197 = vld [vmem:[%s3188 + $0x20] sm:$0xf]
  %v3198 = vld [vmem:[%s3188 + $0x24] sm:$0xf]
  %v3199 = vld [vmem:[%s3188 + $0x28] sm:$0xf]
  %v3200 = vld [vmem:[%s3188 + $0x2c] sm:$0xf]
  %v3201 = vld [vmem:[%s3188 + $0x30] sm:$0xf]
  %v3202 = vld [vmem:[%s3188 + $0x34] sm:$0xf]
  %v3203 = vld [vmem:[%s3188 + $0x38] sm:$0xf]
  %v3204 = vld [vmem:[%s3188 + $0x3c] sm:$0xf]
  %v3205 = vld [vmem:[%s10 + $0x1] sm:$0x1]
  %v3207 = vlaneseq
  %v3208 = vshrl.u32 %v3207, 7
  %v3209 = vsub.s32 0, %v3208
  %v3210 = vrot.slane %v3205, %v3209
  %v3228 = vunpack.c.l.b16 %v3189
  %v3229 = vunpack.c.l.b16 %v3190
  %v3230 = vunpack.c.l.b16 %v3191
  %v3231 = vunpack.c.l.b16 %v3192
  %v3232 = vunpack.c.l.b16 %v3193
  %v3233 = vunpack.c.l.b16 %v3194
  %v3234 = vunpack.c.l.b16 %v3195
  %v3235 = vunpack.c.l.b16 %v3196
  %v3236 = vunpack.c.l.b16 %v3197
  %v3237 = vunpack.c.l.b16 %v3198
  %v3238 = vunpack.c.l.b16 %v3199
  %v3239 = vunpack.c.l.b16 %v3200
  %v3240 = vunpack.c.l.b16 %v3201
  %v3241 = vunpack.c.l.b16 %v3202
  %v3242 = vunpack.c.l.b16 %v3203
  %v3243 = vunpack.c.l.b16 %v3204
  %v3244 = vpack.c.b16 %v3229, %v3228
  %v3245 = vpack.c.b16 %v3231, %v3230
  %v3246 = vpack.c.b16 %v3233, %v3232
  %v3247 = vpack.c.b16 %v3235, %v3234
  %v3248 = vpack.c.b16 %v3237, %v3236
  %v3249 = vpack.c.b16 %v3239, %v3238
  %v3250 = vpack.c.b16 %v3241, %v3240
  %v3251 = vpack.c.b16 %v3243, %v3242
  %3260 = vmatprep.subr.bf16.mxu0 0
  %3261 = vmatpush1.bf16.msra.mxu0 %v3244
  %3262 = vmatprep.subr.bf16.mxu0 0
  %3263 = vmatpush1.bf16.msra.mxu0 %v3245
  %3264 = vmatprep.subr.bf16.mxu0 0
  %3265 = vmatpush1.bf16.msra.mxu0 %v3246
  %3266 = vmatprep.subr.bf16.mxu0 0
  %3267 = vmatpush1.bf16.msra.mxu0 %v3247
  %3268 = vmatprep.subr.bf16.mxu0 0
  %3269 = vmatpush1.bf16.msra.mxu0 %v3248
  %3270 = vmatprep.subr.bf16.mxu0 0
  %3271 = vmatpush1.bf16.msra.mxu0 %v3249
  %3272 = vmatprep.subr.bf16.mxu0 0
  %3273 = vmatpush1.bf16.msra.mxu0 %v3250
  %3274 = vmatprep.subr.bf16.mxu0 0
  %3275 = vmatpush1.bf16.msra.mxu0 %v3251
  %3276 = vmatprep.subr.bf16.mxu0 0
  %3277 = vmatpush1.bf16.msra.mxu0 0
  %3278 = vmatprep.subr.bf16.mxu0 0
  %3279 = vmatpush1.bf16.msra.mxu0 0
  %3280 = vmatprep.subr.bf16.mxu0 0
  %3281 = vmatpush1.bf16.msra.mxu0 0
  %3282 = vmatprep.subr.bf16.mxu0 0
  %3283 = vmatpush1.bf16.msra.mxu0 0
  %3284 = vmatprep.subr.bf16.mxu0 0
  %3285 = vmatpush1.bf16.msra.mxu0 0
  %3286 = vmatprep.subr.bf16.mxu0 0
  %3287 = vmatpush1.bf16.msra.mxu0 0
  %3288 = vmatprep.subr.bf16.mxu0 0
  %3289 = vmatpush1.bf16.msra.mxu0 0
  %3290 = vmatprep.subr.bf16.mxu0 0
  %3291 = vmatpush1.bf16.msra.mxu0 0
  %3292 = vmatprep.mubr.bf16.mxu0 0
  %3293 = vmatmul.mubr.bf16.gmra.mrb[0].mxu0 %v2669
  %v3294 = vpop.f32.mrb[0].mxu0
  %v3295 = vadd.f32 %v3210, %v3294
  %v3296 = vpop.f32.mrb[0].mxu0
  %v3297 = vpop.f32.mrb[0].mxu0
  %v3298 = vadd.f32 %v3210, %v3297
  %v3299 = vpop.f32.mrb[0].mxu0
  %3300 = vmatprep.mubr.bf16.mxu0 0
  %3301 = vmatmul.mubr.bf16.gmra.mrb[0].mxu0 %v2672
  %v3302 = vpop.f32.mrb[0].mxu0
  %v3303 = vadd.f32 %v3210, %v3302
  %v3304 = vpop.f32.mrb[0].mxu0
  %v3305 = vpop.f32.mrb[0].mxu0
  %v3306 = vadd.f32 %v3210, %v3305
  %v3307 = vpop.f32.mrb[0].mxu0
  %3308 = vmatprep.mubr.bf16.mxu0 0
  %3309 = vmatmul.mubr.bf16.gmra.mrb[0].mxu0 %v2675
  %v3310 = vpop.f32.mrb[0].mxu0
  %v3311 = vadd.f32 %v3210, %v3310
  %v3312 = vpop.f32.mrb[0].mxu0
  %v3313 = vpop.f32.mrb[0].mxu0
  %v3314 = vadd.f32 %v3210, %v3313
  %v3315 = vpop.f32.mrb[0].mxu0
  %3316 = vmatprep.mubr.bf16.mxu0 0
  %3317 = vmatmul.mubr.bf16.gmra.mrb[0].mxu0 %v2678
  %v3318 = vpop.f32.mrb[0].mxu0
  %v3319 = vadd.f32 %v3210, %v3318
  %v3320 = vpop.f32.mrb[0].mxu0
  %v3321 = vpop.f32.mrb[0].mxu0
  %v3322 = vadd.f32 %v3210, %v3321
  %v3323 = vpop.f32.mrb[0].mxu0
  %3324 = vmatprep.mubr.bf16.mxu0 0
  %3325 = vmatmul.mubr.bf16.gmra.mrb[0].mxu0 %v2681
  %v3326 = vpop.f32.mrb[0].mxu0
  %v3327 = vadd.f32 %v3210, %v3326
  %v3328 = vpop.f32.mrb[0].mxu0
  %v3329 = vpop.f32.mrb[0].mxu0
  %v3330 = vadd.f32 %v3210, %v3329
  %v3331 = vpop.f32.mrb[0].mxu0
  %3332 = vmatprep.mubr.bf16.mxu0 0
  %3333 = vmatmul.mubr.bf16.gmra.mrb[0].mxu0 %v2684
  %v3334 = vpop.f32.mrb[0].mxu0
  %v3335 = vadd.f32 %v3210, %v3334
  %v3336 = vpop.f32.mrb[0].mxu0
  %v3337 = vpop.f32.mrb[0].mxu0
  %v3338 = vadd.f32 %v3210, %v3337
  %v3339 = vpop.f32.mrb[0].mxu0
  %3340 = vmatprep.mubr.bf16.mxu0 0
  %3341 = vmatmul.mubr.bf16.gmra.mrb[0].mxu0 %v2687
  %v3342 = vpop.f32.mrb[0].mxu0
  %v3343 = vadd.f32 %v3210, %v3342
  %v3344 = vpop.f32.mrb[0].mxu0
  %v3345 = vpop.f32.mrb[0].mxu0
  %v3346 = vadd.f32 %v3210, %v3345
  %v3347 = vpop.f32.mrb[0].mxu0
  %3348 = vmatprep.mubr.bf16.mxu0 0
  %3349 = vmatmul.mubr.bf16.gmra.mrb[0].mxu0 %v2690
  %v3350 = vpop.f32.mrb[0].mxu0
  %v3351 = vadd.f32 %v3210, %v3350
  %v3352 = vpop.f32.mrb[0].mxu0
  %v3353 = vpop.f32.mrb[0].mxu0
  %v3354 = vadd.f32 %v3210, %v3353
  %v3355 = vpop.f32.mrb[0].mxu0
  %3356 = vmatprep.mubr.bf16.mxu0 0
  %3357 = vmatmul.mubr.bf16.gmra.mrb[0].mxu0 %v2693
  %v3358 = vpop.f32.mrb[0].mxu0
  %v3359 = vadd.f32 %v3210, %v3358
  %v3360 = vpop.f32.mrb[0].mxu0
  %v3361 = vpop.f32.mrb[0].mxu0
  %v3362 = vadd.f32 %v3210, %v3361
  %v3363 = vpop.f32.mrb[0].mxu0
  %3364 = vmatprep.mubr.bf16.mxu0 0
  %3365 = vmatmul.mubr.bf16.gmra.mrb[0].mxu0 %v2696
  %v3366 = vpop.f32.mrb[0].mxu0
  %v3367 = vadd.f32 %v3210, %v3366
  %v3368 = vpop.f32.mrb[0].mxu0
  %v3369 = vpop.f32.mrb[0].mxu0
  %v3370 = vadd.f32 %v3210, %v3369
  %v3371 = vpop.f32.mrb[0].mxu0
  %3372 = vmatprep.mubr.bf16.mxu0 0
  %3373 = vmatmul.mubr.bf16.gmra.mrb[0].mxu0 %v2699
  %v3374 = vpop.f32.mrb[0].mxu0
  %v3375 = vadd.f32 %v3210, %v3374
  %v3376 = vpop.f32.mrb[0].mxu0
  %v3377 = vpop.f32.mrb[0].mxu0
  %v3378 = vadd.f32 %v3210, %v3377
  %v3379 = vpop.f32.mrb[0].mxu0
  %3380 = vmatprep.mubr.bf16.mxu0 0
  %3381 = vmatmul.mubr.bf16.gmra.mrb[0].mxu0 %v2702
  %v3382 = vpop.f32.mrb[0].mxu0
  %v3383 = vadd.f32 %v3210, %v3382
  %v3384 = vpop.f32.mrb[0].mxu0
  %v3385 = vpop.f32.mrb[0].mxu0
  %v3386 = vadd.f32 %v3210, %v3385
  %v3387 = vpop.f32.mrb[0].mxu0
  %3388 = vmatprep.mubr.bf16.mxu0 0
  %3389 = vmatmul.mubr.bf16.gmra.mrb[0].mxu0 %v2705
  %v3390 = vpop.f32.mrb[0].mxu0
  %v3391 = vadd.f32 %v3210, %v3390
  %v3392 = vpop.f32.mrb[0].mxu0
  %v3393 = vpop.f32.mrb[0].mxu0
  %v3394 = vadd.f32 %v3210, %v3393
  %v3395 = vpop.f32.mrb[0].mxu0
  %3396 = vmatprep.mubr.bf16.mxu0 0
  %3397 = vmatmul.mubr.bf16.gmra.mrb[0].mxu0 %v2708
  %v3398 = vpop.f32.mrb[0].mxu0
  %v3399 = vadd.f32 %v3210, %v3398
  %v3400 = vpop.f32.mrb[0].mxu0
  %v3401 = vpop.f32.mrb[0].mxu0
  %v3402 = vadd.f32 %v3210, %v3401
  %v3403 = vpop.f32.mrb[0].mxu0
  %3404 = vmatprep.mubr.bf16.mxu0 0
  %3405 = vmatmul.mubr.bf16.gmra.mrb[0].mxu0 %v2711
  %v3406 = vpop.f32.mrb[0].mxu0
  %v3407 = vadd.f32 %v3210, %v3406
  %v3408 = vpop.f32.mrb[0].mxu0
  %v3409 = vpop.f32.mrb[0].mxu0
  %v3410 = vadd.f32 %v3210, %v3409
  %v3411 = vpop.f32.mrb[0].mxu0
  %3412 = vmatprep.mubr.bf16.mxu0 0
  %3413 = vmatmul.mubr.bf16.gmra.mrb[0].mxu0 %v2714
  %v3414 = vpop.f32.mrb[0].mxu0
  %v3415 = vadd.f32 %v3210, %v3414
  %v3416 = vpop.f32.mrb[0].mxu0
  %v3417 = vpop.f32.mrb[0].mxu0
  %v3418 = vadd.f32 %v3210, %v3417
  %v3419 = vpop.f32.mrb[0].mxu0
  %3420 = vmatprep.mubr.bf16.mxu0 0
  %3421 = vmatmul.mubr.bf16.gmra.mrb[0].mxu0 %v2717
  %v3422 = vpop.f32.mrb[0].mxu0
  %v3423 = vadd.f32 %v3210, %v3422
  %v3424 = vpop.f32.mrb[0].mxu0
  %v3425 = vpop.f32.mrb[0].mxu0
  %v3426 = vadd.f32 %v3210, %v3425
  %v3427 = vpop.f32.mrb[0].mxu0
  %3428 = vmatprep.mubr.bf16.mxu0 0
  %3429 = vmatmul.mubr.bf16.gmra.mrb[0].mxu0 %v2720
  %v3430 = vpop.f32.mrb[0].mxu0
  %v3431 = vadd.f32 %v3210, %v3430
  %v3432 = vpop.f32.mrb[0].mxu0
  %v3433 = vpop.f32.mrb[0].mxu0
  %v3434 = vadd.f32 %v3210, %v3433
  %v3435 = vpop.f32.mrb[0].mxu0
  %3436 = vmatprep.mubr.bf16.mxu0 0
  %3437 = vmatmul.mubr.bf16.gmra.mrb[0].mxu0 %v2723
  %v3438 = vpop.f32.mrb[0].mxu0
  %v3439 = vadd.f32 %v3210, %v3438
  %v3440 = vpop.f32.mrb[0].mxu0
  %v3441 = vpop.f32.mrb[0].mxu0
  %v3442 = vadd.f32 %v3210, %v3441
  %v3443 = vpop.f32.mrb[0].mxu0
  %3444 = vmatprep.mubr.bf16.mxu0 0
  %3445 = vmatmul.mubr.bf16.gmra.mrb[0].mxu0 %v2726
  %v3446 = vpop.f32.mrb[0].mxu0
  %v3447 = vadd.f32 %v3210, %v3446
  %v3448 = vpop.f32.mrb[0].mxu0
  %v3449 = vpop.f32.mrb[0].mxu0
  %v3450 = vadd.f32 %v3210, %v3449
  %v3451 = vpop.f32.mrb[0].mxu0
  %3452 = vmatprep.mubr.bf16.mxu0 0
  %3453 = vmatmul.mubr.bf16.gmra.mrb[0].mxu0 %v2729
  %v3454 = vpop.f32.mrb[0].mxu0
  %v3455 = vadd.f32 %v3210, %v3454
  %v3456 = vpop.f32.mrb[0].mxu0
  %v3457 = vpop.f32.mrb[0].mxu0
  %v3458 = vadd.f32 %v3210, %v3457
  %v3459 = vpop.f32.mrb[0].mxu0
  %3460 = vmatprep.mubr.bf16.mxu0 0
  %3461 = vmatmul.mubr.bf16.gmra.mrb[0].mxu0 %v2732
  %v3462 = vpop.f32.mrb[0].mxu0
  %v3463 = vadd.f32 %v3210, %v3462
  %v3464 = vpop.f32.mrb[0].mxu0
  %v3465 = vpop.f32.mrb[0].mxu0
  %v3466 = vadd.f32 %v3210, %v3465
  %v3467 = vpop.f32.mrb[0].mxu0
  %3468 = vmatprep.mubr.bf16.mxu0 0
  %3469 = vmatmul.mubr.bf16.gmra.mrb[0].mxu0 %v2735
  %v3470 = vpop.f32.mrb[0].mxu0
  %v3471 = vadd.f32 %v3210, %v3470
  %v3472 = vpop.f32.mrb[0].mxu0
  %v3473 = vpop.f32.mrb[0].mxu0
  %v3474 = vadd.f32 %v3210, %v3473
  %v3475 = vpop.f32.mrb[0].mxu0
  %3476 = vmatprep.mubr.bf16.mxu0 0
  %3477 = vmatmul.mubr.bf16.gmra.mrb[0].mxu0 %v2738
  %v3478 = vpop.f32.mrb[0].mxu0
  %v3479 = vadd.f32 %v3210, %v3478
  %v3480 = vpop.f32.mrb[0].mxu0
  %v3481 = vpop.f32.mrb[0].mxu0
  %v3482 = vadd.f32 %v3210, %v3481
  %v3483 = vpop.f32.mrb[0].mxu0
  %3484 = vmatprep.mubr.bf16.mxu0 0
  %3485 = vmatmul.mubr.bf16.gmra.mrb[0].mxu0 %v2741
  %v3486 = vpop.f32.mrb[0].mxu0
  %v3487 = vadd.f32 %v3210, %v3486
  %v3488 = vpop.f32.mrb[0].mxu0
  %v3489 = vpop.f32.mrb[0].mxu0
  %v3490 = vadd.f32 %v3210, %v3489
  %v3491 = vpop.f32.mrb[0].mxu0
  %3492 = vmatprep.mubr.bf16.mxu0 0
  %3493 = vmatmul.mubr.bf16.gmra.mrb[0].mxu0 %v2744
  %v3494 = vpop.f32.mrb[0].mxu0
  %v3495 = vadd.f32 %v3210, %v3494
  %v3496 = vpop.f32.mrb[0].mxu0
  %v3497 = vpop.f32.mrb[0].mxu0
  %v3498 = vadd.f32 %v3210, %v3497
  %v3499 = vpop.f32.mrb[0].mxu0
  %3500 = vmatprep.mubr.bf16.mxu0 0
  %3501 = vmatmul.mubr.bf16.gmra.mrb[0].mxu0 %v2747
  %v3502 = vpop.f32.mrb[0].mxu0
  %v3503 = vadd.f32 %v3210, %v3502
  %v3504 = vpop.f32.mrb[0].mxu0
  %v3505 = vpop.f32.mrb[0].mxu0
  %v3506 = vadd.f32 %v3210, %v3505
  %v3507 = vpop.f32.mrb[0].mxu0
  %3508 = vmatprep.mubr.bf16.mxu0 0
  %3509 = vmatmul.mubr.bf16.gmra.mrb[0].mxu0 %v2750
  %v3510 = vpop.f32.mrb[0].mxu0
  %v3511 = vadd.f32 %v3210, %v3510
  %v3512 = vpop.f32.mrb[0].mxu0
  %v3513 = vpop.f32.mrb[0].mxu0
  %v3514 = vadd.f32 %v3210, %v3513
  %v3515 = vpop.f32.mrb[0].mxu0
  %3516 = vmatprep.mubr.bf16.mxu0 0
  %3517 = vmatmul.mubr.bf16.gmra.mrb[0].mxu0 %v2753
  %v3518 = vpop.f32.mrb[0].mxu0
  %v3519 = vadd.f32 %v3210, %v3518
  %v3520 = vpop.f32.mrb[0].mxu0
  %v3521 = vpop.f32.mrb[0].mxu0
  %v3522 = vadd.f32 %v3210, %v3521
  %v3523 = vpop.f32.mrb[0].mxu0
  %3524 = vmatprep.mubr.bf16.mxu0 0
  %3525 = vmatmul.mubr.bf16.gmra.mrb[0].mxu0 %v2756
  %v3526 = vpop.f32.mrb[0].mxu0
  %v3527 = vadd.f32 %v3210, %v3526
  %v3528 = vpop.f32.mrb[0].mxu0
  %v3529 = vpop.f32.mrb[0].mxu0
  %v3530 = vadd.f32 %v3210, %v3529
  %v3531 = vpop.f32.mrb[0].mxu0
  %3532 = vmatprep.mubr.bf16.mxu0 0
  %3533 = vmatmul.mubr.bf16.gmra.mrb[0].mxu0 %v2759
  %v3534 = vpop.f32.mrb[0].mxu0
  %v3535 = vadd.f32 %v3210, %v3534
  %v3536 = vpop.f32.mrb[0].mxu0
  %v3537 = vpop.f32.mrb[0].mxu0
  %v3538 = vadd.f32 %v3210, %v3537
  %v3539 = vpop.f32.mrb[0].mxu0
  %3540 = vmatprep.mubr.bf16.mxu0 0
  %3541 = vmatmul.mubr.bf16.gmra.mrb[0].mxu0 %v2762
  %v3542 = vpop.f32.mrb[0].mxu0
  %v3543 = vadd.f32 %v3210, %v3542
  %v3544 = vpop.f32.mrb[0].mxu0
  %v3545 = vpop.f32.mrb[0].mxu0
  %v3546 = vadd.f32 %v3210, %v3545
  %v3547 = vpop.f32.mrb[0].mxu0
  %3548 = vdwg.mxu0
  %v3549 = vmax.f32 %v3295, 0.0
  %v3550 = vmax.f32 %v3298, 0.0
  %v3551 = vmax.f32 %v3303, 0.0
  %v3552 = vmax.f32 %v3306, 0.0
  %v3553 = vmax.f32 %v3311, 0.0
  %v3554 = vmax.f32 %v3314, 0.0
  %v3555 = vmax.f32 %v3319, 0.0
  %v3556 = vmax.f32 %v3322, 0.0
  %v3557 = vmax.f32 %v3327, 0.0
  %v3558 = vmax.f32 %v3330, 0.0
  %v3559 = vmax.f32 %v3335, 0.0
  %v3560 = vmax.f32 %v3338, 0.0
  %v3561 = vmax.f32 %v3343, 0.0
  %v3562 = vmax.f32 %v3346, 0.0
  %v3563 = vmax.f32 %v3351, 0.0
  %v3564 = vmax.f32 %v3354, 0.0
  %v3565 = vmax.f32 %v3359, 0.0
  %v3566 = vmax.f32 %v3362, 0.0
  %v3567 = vmax.f32 %v3367, 0.0
  %v3568 = vmax.f32 %v3370, 0.0
  %v3569 = vmax.f32 %v3375, 0.0
  %v3570 = vmax.f32 %v3378, 0.0
  %v3571 = vmax.f32 %v3383, 0.0
  %v3572 = vmax.f32 %v3386, 0.0
  %v3573 = vmax.f32 %v3391, 0.0
  %v3574 = vmax.f32 %v3394, 0.0
  %v3575 = vmax.f32 %v3399, 0.0
  %v3576 = vmax.f32 %v3402, 0.0
  %v3577 = vmax.f32 %v3407, 0.0
  %v3578 = vmax.f32 %v3410, 0.0
  %v3579 = vmax.f32 %v3415, 0.0
  %v3580 = vmax.f32 %v3418, 0.0
  %v3581 = vmax.f32 %v3423, 0.0
  %v3582 = vmax.f32 %v3426, 0.0
  %v3583 = vmax.f32 %v3431, 0.0
  %v3584 = vmax.f32 %v3434, 0.0
  %v3585 = vmax.f32 %v3439, 0.0
  %v3586 = vmax.f32 %v3442, 0.0
  %v3587 = vmax.f32 %v3447, 0.0
  %v3588 = vmax.f32 %v3450, 0.0
  %v3589 = vmax.f32 %v3455, 0.0
  %v3590 = vmax.f32 %v3458, 0.0
  %v3591 = vmax.f32 %v3463, 0.0
  %v3592 = vmax.f32 %v3466, 0.0
  %v3593 = vmax.f32 %v3471, 0.0
  %v3594 = vmax.f32 %v3474, 0.0
  %v3595 = vmax.f32 %v3479, 0.0
  %v3596 = vmax.f32 %v3482, 0.0
  %v3597 = vmax.f32 %v3487, 0.0
  %v3598 = vmax.f32 %v3490, 0.0
  %v3599 = vmax.f32 %v3495, 0.0
  %v3600 = vmax.f32 %v3498, 0.0
  %v3601 = vmax.f32 %v3503, 0.0
  %v3602 = vmax.f32 %v3506, 0.0
  %v3603 = vmax.f32 %v3511, 0.0
  %v3604 = vmax.f32 %v3514, 0.0
  %v3605 = vmax.f32 %v3519, 0.0
  %v3606 = vmax.f32 %v3522, 0.0
  %v3607 = vmax.f32 %v3527, 0.0
  %v3608 = vmax.f32 %v3530, 0.0
  %v3609 = vmax.f32 %v3535, 0.0
  %v3610 = vmax.f32 %v3538, 0.0
  %v3611 = vmax.f32 %v3543, 0.0
  %v3612 = vmax.f32 %v3546, 0.0
  %3613 = vst [vmem:[%s11 + $0x8] sm:$0xff] %v3549
  %3614 = vst [vmem:[%s11 + $0x20] sm:$0xff] %v3550
  %3615 = vst [vmem:[%s11 + $0x38] sm:$0xff] %v3551
  %3616 = vst [vmem:[%s11 + $0x50] sm:$0xff] %v3552
  %3617 = vst [vmem:[%s11 + $0x68] sm:$0xff] %v3553
  %3618 = vst [vmem:[%s11 + $0x80] sm:$0xff] %v3554
  %3619 = vst [vmem:[%s11 + $0x98] sm:$0xff] %v3555
  %3620 = vst [vmem:[%s11 + $0xb0] sm:$0xff] %v3556
  %3621 = vst [vmem:[%s11 + $0xc8] sm:$0xff] %v3557
  %3622 = vst [vmem:[%s11 + $0xe0] sm:$0xff] %v3558
  %3623 = vst [vmem:[%s11 + $0xf8] sm:$0xff] %v3559
  %3624 = vst [vmem:[%s11 + $0x110] sm:$0xff] %v3560
  %3625 = vst [vmem:[%s11 + $0x128] sm:$0xff] %v3561
  %3626 = vst [vmem:[%s11 + $0x140] sm:$0xff] %v3562
  %3627 = vst [vmem:[%s11 + $0x158] sm:$0xff] %v3563
  %3628 = vst [vmem:[%s11 + $0x170] sm:$0xff] %v3564
  %3629 = vst [vmem:[%s11 + $0x188] sm:$0xff] %v3565
  %3630 = vst [vmem:[%s11 + $0x1a0] sm:$0xff] %v3566
  %3631 = vst [vmem:[%s11 + $0x1b8] sm:$0xff] %v3567
  %3632 = vst [vmem:[%s11 + $0x1d0] sm:$0xff] %v3568
  %3633 = vst [vmem:[%s11 + $0x1e8] sm:$0xff] %v3569
  %3634 = vst [vmem:[%s11 + $0x200] sm:$0xff] %v3570
  %3635 = vst [vmem:[%s11 + $0x218] sm:$0xff] %v3571
  %3636 = vst [vmem:[%s11 + $0x230] sm:$0xff] %v3572
  %3637 = vst [vmem:[%s11 + $0x248] sm:$0xff] %v3573
  %3638 = vst [vmem:[%s11 + $0x260] sm:$0xff] %v3574
  %3639 = vst [vmem:[%s11 + $0x278] sm:$0xff] %v3575
  %3640 = vst [vmem:[%s11 + $0x290] sm:$0xff] %v3576
  %3641 = vst [vmem:[%s11 + $0x2a8] sm:$0xff] %v3577
  %3642 = vst [vmem:[%s11 + $0x2c0] sm:$0xff] %v3578
  %3643 = vst [vmem:[%s11 + $0x2d8] sm:$0xff] %v3579
  %3644 = vst [vmem:[%s11 + $0x2f0] sm:$0xff] %v3580
  %3645 = vst [vmem:[%s11 + $0x308] sm:$0xff] %v3581
  %3646 = vst [vmem:[%s11 + $0x320] sm:$0xff] %v3582
  %3647 = vst [vmem:[%s11 + $0x338] sm:$0xff] %v3583
  %3648 = vst [vmem:[%s11 + $0x350] sm:$0xff] %v3584
  %3649 = vst [vmem:[%s11 + $0x368] sm:$0xff] %v3585
  %3650 = vst [vmem:[%s11 + $0x380] sm:$0xff] %v3586
  %3651 = vst [vmem:[%s11 + $0x398] sm:$0xff] %v3587
  %3652 = vst [vmem:[%s11 + $0x3b0] sm:$0xff] %v3588
  %3653 = vst [vmem:[%s11 + $0x3c8] sm:$0xff] %v3589
  %3654 = vst [vmem:[%s11 + $0x3e0] sm:$0xff] %v3590
  %3655 = vst [vmem:[%s11 + $0x3f8] sm:$0xff] %v3591
  %3656 = vst [vmem:[%s11 + $0x410] sm:$0xff] %v3592
  %3657 = vst [vmem:[%s11 + $0x428] sm:$0xff] %v3593
  %3658 = vst [vmem:[%s11 + $0x440] sm:$0xff] %v3594
  %3659 = vst [vmem:[%s11 + $0x458] sm:$0xff] %v3595
  %3660 = vst [vmem:[%s11 + $0x470] sm:$0xff] %v3596
  %3661 = vst [vmem:[%s11 + $0x488] sm:$0xff] %v3597
  %3662 = vst [vmem:[%s11 + $0x4a0] sm:$0xff] %v3598
  %3663 = vst [vmem:[%s11 + $0x4b8] sm:$0xff] %v3599
  %3664 = vst [vmem:[%s11 + $0x4d0] sm:$0xff] %v3600
  %3665 = vst [vmem:[%s11 + $0x4e8] sm:$0xff] %v3601
  %3666 = vst [vmem:[%s11 + $0x500] sm:$0xff] %v3602
  %3667 = vst [vmem:[%s11 + $0x518] sm:$0xff] %v3603
  %3668 = vst [vmem:[%s11 + $0x530] sm:$0xff] %v3604
  %3669 = vst [vmem:[%s11 + $0x548] sm:$0xff] %v3605
  %3670 = vst [vmem:[%s11 + $0x560] sm:$0xff] %v3606
  %3671 = vst [vmem:[%s11 + $0x578] sm:$0xff] %v3607
  %3672 = vst [vmem:[%s11 + $0x590] sm:$0xff] %v3608
  %3673 = vst [vmem:[%s11 + $0x5a8] sm:$0xff] %v3609
  %3674 = vst [vmem:[%s11 + $0x5c0] sm:$0xff] %v3610
  %3675 = vst [vmem:[%s11 + $0x5d8] sm:$0xff] %v3611
  %3676 = vst [vmem:[%s11 + $0x5f0] sm:$0xff] %v3612
  %s3677 = scalar_lea.vmem %s9, 128
  %v3678 = vld [vmem:[%s3677] sm:$0xf]
  %v3679 = vld [vmem:[%s3677 + $0x4] sm:$0xf]
  %v3680 = vld [vmem:[%s3677 + $0x8] sm:$0xf]
  %v3681 = vld [vmem:[%s3677 + $0xc] sm:$0xf]
  %v3682 = vld [vmem:[%s3677 + $0x10] sm:$0xf]
  %v3683 = vld [vmem:[%s3677 + $0x14] sm:$0xf]
  %v3684 = vld [vmem:[%s3677 + $0x18] sm:$0xf]
  %v3685 = vld [vmem:[%s3677 + $0x1c] sm:$0xf]
  %v3686 = vld [vmem:[%s3677 + $0x20] sm:$0xf]
  %v3687 = vld [vmem:[%s3677 + $0x24] sm:$0xf]
  %v3688 = vld [vmem:[%s3677 + $0x28] sm:$0xf]
  %v3689 = vld [vmem:[%s3677 + $0x2c] sm:$0xf]
  %v3690 = vld [vmem:[%s3677 + $0x30] sm:$0xf]
  %v3691 = vld [vmem:[%s3677 + $0x34] sm:$0xf]
  %v3692 = vld [vmem:[%s3677 + $0x38] sm:$0xf]
  %v3693 = vld [vmem:[%s3677 + $0x3c] sm:$0xf]
  %v3694 = vld [vmem:[%s10 + $0x2] sm:$0x1]
  %v3696 = vlaneseq
  %v3697 = vshrl.u32 %v3696, 7
  %v3698 = vsub.s32 0, %v3697
  %v3699 = vrot.slane %v3694, %v3698
  %v3717 = vunpack.c.l.b16 %v3678
  %v3718 = vunpack.c.l.b16 %v3679
  %v3719 = vunpack.c.l.b16 %v3680
  %v3720 = vunpack.c.l.b16 %v3681
  %v3721 = vunpack.c.l.b16 %v3682
  %v3722 = vunpack.c.l.b16 %v3683
  %v3723 = vunpack.c.l.b16 %v3684
  %v3724 = vunpack.c.l.b16 %v3685
  %v3725 = vunpack.c.l.b16 %v3686
  %v3726 = vunpack.c.l.b16 %v3687
  %v3727 = vunpack.c.l.b16 %v3688
  %v3728 = vunpack.c.l.b16 %v3689
  %v3729 = vunpack.c.l.b16 %v3690
  %v3730 = vunpack.c.l.b16 %v3691
  %v3731 = vunpack.c.l.b16 %v3692
  %v3732 = vunpack.c.l.b16 %v3693
  %v3733 = vpack.c.b16 %v3718, %v3717
  %v3734 = vpack.c.b16 %v3720, %v3719
  %v3735 = vpack.c.b16 %v3722, %v3721
  %v3736 = vpack.c.b16 %v3724, %v3723
  %v3737 = vpack.c.b16 %v3726, %v3725
  %v3738 = vpack.c.b16 %v3728, %v3727
  %v3739 = vpack.c.b16 %v3730, %v3729
  %v3740 = vpack.c.b16 %v3732, %v3731
  %3749 = vmatprep.subr.bf16.mxu0 0
  %3750 = vmatpush1.bf16.msra.mxu0 %v3733
  %3751 = vmatprep.subr.bf16.mxu0 0
  %3752 = vmatpush1.bf16.msra.mxu0 %v3734
  %3753 = vmatprep.subr.bf16.mxu0 0
  %3754 = vmatpush1.bf16.msra.mxu0 %v3735
  %3755 = vmatprep.subr.bf16.mxu0 0
  %3756 = vmatpush1.bf16.msra.mxu0 %v3736
  %3757 = vmatprep.subr.bf16.mxu0 0
  %3758 = vmatpush1.bf16.msra.mxu0 %v3737
  %3759 = vmatprep.subr.bf16.mxu0 0
  %3760 = vmatpush1.bf16.msra.mxu0 %v3738
  %3761 = vmatprep.subr.bf16.mxu0 0
  %3762 = vmatpush1.bf16.msra.mxu0 %v3739
  %3763 = vmatprep.subr.bf16.mxu0 0
  %3764 = vmatpush1.bf16.msra.mxu0 %v3740
  %3765 = vmatprep.subr.bf16.mxu0 0
  %3766 = vmatpush1.bf16.msra.mxu0 0
  %3767 = vmatprep.subr.bf16.mxu0 0
  %3768 = vmatpush1.bf16.msra.mxu0 0
  %3769 = vmatprep.subr.bf16.mxu0 0
  %3770 = vmatpush1.bf16.msra.mxu0 0
  %3771 = vmatprep.subr.bf16.mxu0 0
  %3772 = vmatpush1.bf16.msra.mxu0 0
  %3773 = vmatprep.subr.bf16.mxu0 0
  %3774 = vmatpush1.bf16.msra.mxu0 0
  %3775 = vmatprep.subr.bf16.mxu0 0
  %3776 = vmatpush1.bf16.msra.mxu0 0
  %3777 = vmatprep.subr.bf16.mxu0 0
  %3778 = vmatpush1.bf16.msra.mxu0 0
  %3779 = vmatprep.subr.bf16.mxu0 0
  %3780 = vmatpush1.bf16.msra.mxu0 0
  %3781 = vmatprep.mubr.bf16.mxu0 0
  %3782 = vmatmul.mubr.bf16.gmra.mrb[0].mxu0 %v2670
  %v3783 = vpop.f32.mrb[0].mxu0
  %v3784 = vadd.f32 %v3699, %v3783
  %v3785 = vpop.f32.mrb[0].mxu0
  %v3786 = vpop.f32.mrb[0].mxu0
  %v3787 = vadd.f32 %v3699, %v3786
  %v3788 = vpop.f32.mrb[0].mxu0
  %3789 = vmatprep.mubr.bf16.mxu0 0
  %3790 = vmatmul.mubr.bf16.gmra.mrb[0].mxu0 %v2673
  %v3791 = vpop.f32.mrb[0].mxu0
  %v3792 = vadd.f32 %v3699, %v3791
  %v3793 = vpop.f32.mrb[0].mxu0
  %v3794 = vpop.f32.mrb[0].mxu0
  %v3795 = vadd.f32 %v3699, %v3794
  %v3796 = vpop.f32.mrb[0].mxu0
  %3797 = vmatprep.mubr.bf16.mxu0 0
  %3798 = vmatmul.mubr.bf16.gmra.mrb[0].mxu0 %v2676
  %v3799 = vpop.f32.mrb[0].mxu0
  %v3800 = vadd.f32 %v3699, %v3799
  %v3801 = vpop.f32.mrb[0].mxu0
  %v3802 = vpop.f32.mrb[0].mxu0
  %v3803 = vadd.f32 %v3699, %v3802
  %v3804 = vpop.f32.mrb[0].mxu0
  %3805 = vmatprep.mubr.bf16.mxu0 0
  %3806 = vmatmul.mubr.bf16.gmra.mrb[0].mxu0 %v2679
  %v3807 = vpop.f32.mrb[0].mxu0
  %v3808 = vadd.f32 %v3699, %v3807
  %v3809 = vpop.f32.mrb[0].mxu0
  %v3810 = vpop.f32.mrb[0].mxu0
  %v3811 = vadd.f32 %v3699, %v3810
  %v3812 = vpop.f32.mrb[0].mxu0
  %3813 = vmatprep.mubr.bf16.mxu0 0
  %3814 = vmatmul.mubr.bf16.gmra.mrb[0].mxu0 %v2682
  %v3815 = vpop.f32.mrb[0].mxu0
  %v3816 = vadd.f32 %v3699, %v3815
  %v3817 = vpop.f32.mrb[0].mxu0
  %v3818 = vpop.f32.mrb[0].mxu0
  %v3819 = vadd.f32 %v3699, %v3818
  %v3820 = vpop.f32.mrb[0].mxu0
  %3821 = vmatprep.mubr.bf16.mxu0 0
  %3822 = vmatmul.mubr.bf16.gmra.mrb[0].mxu0 %v2685
  %v3823 = vpop.f32.mrb[0].mxu0
  %v3824 = vadd.f32 %v3699, %v3823
  %v3825 = vpop.f32.mrb[0].mxu0
  %v3826 = vpop.f32.mrb[0].mxu0
  %v3827 = vadd.f32 %v3699, %v3826
  %v3828 = vpop.f32.mrb[0].mxu0
  %3829 = vmatprep.mubr.bf16.mxu0 0
  %3830 = vmatmul.mubr.bf16.gmra.mrb[0].mxu0 %v2688
  %v3831 = vpop.f32.mrb[0].mxu0
  %v3832 = vadd.f32 %v3699, %v3831
  %v3833 = vpop.f32.mrb[0].mxu0
  %v3834 = vpop.f32.mrb[0].mxu0
  %v3835 = vadd.f32 %v3699, %v3834
  %v3836 = vpop.f32.mrb[0].mxu0
  %3837 = vmatprep.mubr.bf16.mxu0 0
  %3838 = vmatmul.mubr.bf16.gmra.mrb[0].mxu0 %v2691
  %v3839 = vpop.f32.mrb[0].mxu0
  %v3840 = vadd.f32 %v3699, %v3839
  %v3841 = vpop.f32.mrb[0].mxu0
  %v3842 = vpop.f32.mrb[0].mxu0
  %v3843 = vadd.f32 %v3699, %v3842
  %v3844 = vpop.f32.mrb[0].mxu0
  %3845 = vmatprep.mubr.bf16.mxu0 0
  %3846 = vmatmul.mubr.bf16.gmra.mrb[0].mxu0 %v2694
  %v3847 = vpop.f32.mrb[0].mxu0
  %v3848 = vadd.f32 %v3699, %v3847
  %v3849 = vpop.f32.mrb[0].mxu0
  %v3850 = vpop.f32.mrb[0].mxu0
  %v3851 = vadd.f32 %v3699, %v3850
  %v3852 = vpop.f32.mrb[0].mxu0
  %3853 = vmatprep.mubr.bf16.mxu0 0
  %3854 = vmatmul.mubr.bf16.gmra.mrb[0].mxu0 %v2697
  %v3855 = vpop.f32.mrb[0].mxu0
  %v3856 = vadd.f32 %v3699, %v3855
  %v3857 = vpop.f32.mrb[0].mxu0
  %v3858 = vpop.f32.mrb[0].mxu0
  %v3859 = vadd.f32 %v3699, %v3858
  %v3860 = vpop.f32.mrb[0].mxu0
  %3861 = vmatprep.mubr.bf16.mxu0 0
  %3862 = vmatmul.mubr.bf16.gmra.mrb[0].mxu0 %v2700
  %v3863 = vpop.f32.mrb[0].mxu0
  %v3864 = vadd.f32 %v3699, %v3863
  %v3865 = vpop.f32.mrb[0].mxu0
  %v3866 = vpop.f32.mrb[0].mxu0
  %v3867 = vadd.f32 %v3699, %v3866
  %v3868 = vpop.f32.mrb[0].mxu0
  %3869 = vmatprep.mubr.bf16.mxu0 0
  %3870 = vmatmul.mubr.bf16.gmra.mrb[0].mxu0 %v2703
  %v3871 = vpop.f32.mrb[0].mxu0
  %v3872 = vadd.f32 %v3699, %v3871
  %v3873 = vpop.f32.mrb[0].mxu0
  %v3874 = vpop.f32.mrb[0].mxu0
  %v3875 = vadd.f32 %v3699, %v3874
  %v3876 = vpop.f32.mrb[0].mxu0
  %3877 = vmatprep.mubr.bf16.mxu0 0
  %3878 = vmatmul.mubr.bf16.gmra.mrb[0].mxu0 %v2706
  %v3879 = vpop.f32.mrb[0].mxu0
  %v3880 = vadd.f32 %v3699, %v3879
  %v3881 = vpop.f32.mrb[0].mxu0
  %v3882 = vpop.f32.mrb[0].mxu0
  %v3883 = vadd.f32 %v3699, %v3882
  %v3884 = vpop.f32.mrb[0].mxu0
  %3885 = vmatprep.mubr.bf16.mxu0 0
  %3886 = vmatmul.mubr.bf16.gmra.mrb[0].mxu0 %v2709
  %v3887 = vpop.f32.mrb[0].mxu0
  %v3888 = vadd.f32 %v3699, %v3887
  %v3889 = vpop.f32.mrb[0].mxu0
  %v3890 = vpop.f32.mrb[0].mxu0
  %v3891 = vadd.f32 %v3699, %v3890
  %v3892 = vpop.f32.mrb[0].mxu0
  %3893 = vmatprep.mubr.bf16.mxu0 0
  %3894 = vmatmul.mubr.bf16.gmra.mrb[0].mxu0 %v2712
  %v3895 = vpop.f32.mrb[0].mxu0
  %v3896 = vadd.f32 %v3699, %v3895
  %v3897 = vpop.f32.mrb[0].mxu0
  %v3898 = vpop.f32.mrb[0].mxu0
  %v3899 = vadd.f32 %v3699, %v3898
  %v3900 = vpop.f32.mrb[0].mxu0
  %3901 = vmatprep.mubr.bf16.mxu0 0
  %3902 = vmatmul.mubr.bf16.gmra.mrb[0].mxu0 %v2715
  %v3903 = vpop.f32.mrb[0].mxu0
  %v3904 = vadd.f32 %v3699, %v3903
  %v3905 = vpop.f32.mrb[0].mxu0
  %v3906 = vpop.f32.mrb[0].mxu0
  %v3907 = vadd.f32 %v3699, %v3906
  %v3908 = vpop.f32.mrb[0].mxu0
  %3909 = vmatprep.mubr.bf16.mxu0 0
  %3910 = vmatmul.mubr.bf16.gmra.mrb[0].mxu0 %v2718
  %v3911 = vpop.f32.mrb[0].mxu0
  %v3912 = vadd.f32 %v3699, %v3911
  %v3913 = vpop.f32.mrb[0].mxu0
  %v3914 = vpop.f32.mrb[0].mxu0
  %v3915 = vadd.f32 %v3699, %v3914
  %v3916 = vpop.f32.mrb[0].mxu0
  %3917 = vmatprep.mubr.bf16.mxu0 0
  %3918 = vmatmul.mubr.bf16.gmra.mrb[0].mxu0 %v2721
  %v3919 = vpop.f32.mrb[0].mxu0
  %v3920 = vadd.f32 %v3699, %v3919
  %v3921 = vpop.f32.mrb[0].mxu0
  %v3922 = vpop.f32.mrb[0].mxu0
  %v3923 = vadd.f32 %v3699, %v3922
  %v3924 = vpop.f32.mrb[0].mxu0
  %3925 = vmatprep.mubr.bf16.mxu0 0
  %3926 = vmatmul.mubr.bf16.gmra.mrb[0].mxu0 %v2724
  %v3927 = vpop.f32.mrb[0].mxu0
  %v3928 = vadd.f32 %v3699, %v3927
  %v3929 = vpop.f32.mrb[0].mxu0
  %v3930 = vpop.f32.mrb[0].mxu0
  %v3931 = vadd.f32 %v3699, %v3930
  %v3932 = vpop.f32.mrb[0].mxu0
  %3933 = vmatprep.mubr.bf16.mxu0 0
  %3934 = vmatmul.mubr.bf16.gmra.mrb[0].mxu0 %v2727
  %v3935 = vpop.f32.mrb[0].mxu0
  %v3936 = vadd.f32 %v3699, %v3935
  %v3937 = vpop.f32.mrb[0].mxu0
  %v3938 = vpop.f32.mrb[0].mxu0
  %v3939 = vadd.f32 %v3699, %v3938
  %v3940 = vpop.f32.mrb[0].mxu0
  %3941 = vmatprep.mubr.bf16.mxu0 0
  %3942 = vmatmul.mubr.bf16.gmra.mrb[0].mxu0 %v2730
  %v3943 = vpop.f32.mrb[0].mxu0
  %v3944 = vadd.f32 %v3699, %v3943
  %v3945 = vpop.f32.mrb[0].mxu0
  %v3946 = vpop.f32.mrb[0].mxu0
  %v3947 = vadd.f32 %v3699, %v3946
  %v3948 = vpop.f32.mrb[0].mxu0
  %3949 = vmatprep.mubr.bf16.mxu0 0
  %3950 = vmatmul.mubr.bf16.gmra.mrb[0].mxu0 %v2733
  %v3951 = vpop.f32.mrb[0].mxu0
  %v3952 = vadd.f32 %v3699, %v3951
  %v3953 = vpop.f32.mrb[0].mxu0
  %v3954 = vpop.f32.mrb[0].mxu0
  %v3955 = vadd.f32 %v3699, %v3954
  %v3956 = vpop.f32.mrb[0].mxu0
  %3957 = vmatprep.mubr.bf16.mxu0 0
  %3958 = vmatmul.mubr.bf16.gmra.mrb[0].mxu0 %v2736
  %v3959 = vpop.f32.mrb[0].mxu0
  %v3960 = vadd.f32 %v3699, %v3959
  %v3961 = vpop.f32.mrb[0].mxu0
  %v3962 = vpop.f32.mrb[0].mxu0
  %v3963 = vadd.f32 %v3699, %v3962
  %v3964 = vpop.f32.mrb[0].mxu0
  %3965 = vmatprep.mubr.bf16.mxu0 0
  %3966 = vmatmul.mubr.bf16.gmra.mrb[0].mxu0 %v2739
  %v3967 = vpop.f32.mrb[0].mxu0
  %v3968 = vadd.f32 %v3699, %v3967
  %v3969 = vpop.f32.mrb[0].mxu0
  %v3970 = vpop.f32.mrb[0].mxu0
  %v3971 = vadd.f32 %v3699, %v3970
  %v3972 = vpop.f32.mrb[0].mxu0
  %3973 = vmatprep.mubr.bf16.mxu0 0
  %3974 = vmatmul.mubr.bf16.gmra.mrb[0].mxu0 %v2742
  %v3975 = vpop.f32.mrb[0].mxu0
  %v3976 = vadd.f32 %v3699, %v3975
  %v3977 = vpop.f32.mrb[0].mxu0
  %v3978 = vpop.f32.mrb[0].mxu0
  %v3979 = vadd.f32 %v3699, %v3978
  %v3980 = vpop.f32.mrb[0].mxu0
  %3981 = vmatprep.mubr.bf16.mxu0 0
  %3982 = vmatmul.mubr.bf16.gmra.mrb[0].mxu0 %v2745
  %v3983 = vpop.f32.mrb[0].mxu0
  %v3984 = vadd.f32 %v3699, %v3983
  %v3985 = vpop.f32.mrb[0].mxu0
  %v3986 = vpop.f32.mrb[0].mxu0
  %v3987 = vadd.f32 %v3699, %v3986
  %v3988 = vpop.f32.mrb[0].mxu0
  %3989 = vmatprep.mubr.bf16.mxu0 0
  %3990 = vmatmul.mubr.bf16.gmra.mrb[0].mxu0 %v2748
  %v3991 = vpop.f32.mrb[0].mxu0
  %v3992 = vadd.f32 %v3699, %v3991
  %v3993 = vpop.f32.mrb[0].mxu0
  %v3994 = vpop.f32.mrb[0].mxu0
  %v3995 = vadd.f32 %v3699, %v3994
  %v3996 = vpop.f32.mrb[0].mxu0
  %3997 = vmatprep.mubr.bf16.mxu0 0
  %3998 = vmatmul.mubr.bf16.gmra.mrb[0].mxu0 %v2751
  %v3999 = vpop.f32.mrb[0].mxu0
  %v4000 = vadd.f32 %v3699, %v3999
  %v4001 = vpop.f32.mrb[0].mxu0
  %v4002 = vpop.f32.mrb[0].mxu0
  %v4003 = vadd.f32 %v3699, %v4002
  %v4004 = vpop.f32.mrb[0].mxu0
  %4005 = vmatprep.mubr.bf16.mxu0 0
  %4006 = vmatmul.mubr.bf16.gmra.mrb[0].mxu0 %v2754
  %v4007 = vpop.f32.mrb[0].mxu0
  %v4008 = vadd.f32 %v3699, %v4007
  %v4009 = vpop.f32.mrb[0].mxu0
  %v4010 = vpop.f32.mrb[0].mxu0
  %v4011 = vadd.f32 %v3699, %v4010
  %v4012 = vpop.f32.mrb[0].mxu0
  %4013 = vmatprep.mubr.bf16.mxu0 0
  %4014 = vmatmul.mubr.bf16.gmra.mrb[0].mxu0 %v2757
  %v4015 = vpop.f32.mrb[0].mxu0
  %v4016 = vadd.f32 %v3699, %v4015
  %v4017 = vpop.f32.mrb[0].mxu0
  %v4018 = vpop.f32.mrb[0].mxu0
  %v4019 = vadd.f32 %v3699, %v4018
  %v4020 = vpop.f32.mrb[0].mxu0
  %4021 = vmatprep.mubr.bf16.mxu0 0
  %4022 = vmatmul.mubr.bf16.gmra.mrb[0].mxu0 %v2760
  %v4023 = vpop.f32.mrb[0].mxu0
  %v4024 = vadd.f32 %v3699, %v4023
  %v4025 = vpop.f32.mrb[0].mxu0
  %v4026 = vpop.f32.mrb[0].mxu0
  %v4027 = vadd.f32 %v3699, %v4026
  %v4028 = vpop.f32.mrb[0].mxu0
  %4029 = vmatprep.mubr.bf16.mxu0 0
  %4030 = vmatmul.mubr.bf16.gmra.mrb[0].mxu0 %v2763
  %v4031 = vpop.f32.mrb[0].mxu0
  %v4032 = vadd.f32 %v3699, %v4031
  %v4033 = vpop.f32.mrb[0].mxu0
  %v4034 = vpop.f32.mrb[0].mxu0
  %v4035 = vadd.f32 %v3699, %v4034
  %v4036 = vpop.f32.mrb[0].mxu0
  %4037 = vdwg.mxu0
  %v4038 = vmax.f32 %v3784, 0.0
  %v4039 = vmax.f32 %v3787, 0.0
  %v4040 = vmax.f32 %v3792, 0.0
  %v4041 = vmax.f32 %v3795, 0.0
  %v4042 = vmax.f32 %v3800, 0.0
  %v4043 = vmax.f32 %v3803, 0.0
  %v4044 = vmax.f32 %v3808, 0.0
  %v4045 = vmax.f32 %v3811, 0.0
  %v4046 = vmax.f32 %v3816, 0.0
  %v4047 = vmax.f32 %v3819, 0.0
  %v4048 = vmax.f32 %v3824, 0.0
  %v4049 = vmax.f32 %v3827, 0.0
  %v4050 = vmax.f32 %v3832, 0.0
  %v4051 = vmax.f32 %v3835, 0.0
  %v4052 = vmax.f32 %v3840, 0.0
  %v4053 = vmax.f32 %v3843, 0.0
  %v4054 = vmax.f32 %v3848, 0.0
  %v4055 = vmax.f32 %v3851, 0.0
  %v4056 = vmax.f32 %v3856, 0.0
  %v4057 = vmax.f32 %v3859, 0.0
  %v4058 = vmax.f32 %v3864, 0.0
  %v4059 = vmax.f32 %v3867, 0.0
  %v4060 = vmax.f32 %v3872, 0.0
  %v4061 = vmax.f32 %v3875, 0.0
  %v4062 = vmax.f32 %v3880, 0.0
  %v4063 = vmax.f32 %v3883, 0.0
  %v4064 = vmax.f32 %v3888, 0.0
  %v4065 = vmax.f32 %v3891, 0.0
  %v4066 = vmax.f32 %v3896, 0.0
  %v4067 = vmax.f32 %v3899, 0.0
  %v4068 = vmax.f32 %v3904, 0.0
  %v4069 = vmax.f32 %v3907, 0.0
  %v4070 = vmax.f32 %v3912, 0.0
  %v4071 = vmax.f32 %v3915, 0.0
  %v4072 = vmax.f32 %v3920, 0.0
  %v4073 = vmax.f32 %v3923, 0.0
  %v4074 = vmax.f32 %v3928, 0.0
  %v4075 = vmax.f32 %v3931, 0.0
  %v4076 = vmax.f32 %v3936, 0.0
  %v4077 = vmax.f32 %v3939, 0.0
  %v4078 = vmax.f32 %v3944, 0.0
  %v4079 = vmax.f32 %v3947, 0.0
  %v4080 = vmax.f32 %v3952, 0.0
  %v4081 = vmax.f32 %v3955, 0.0
  %v4082 = vmax.f32 %v3960, 0.0
  %v4083 = vmax.f32 %v3963, 0.0
  %v4084 = vmax.f32 %v3968, 0.0
  %v4085 = vmax.f32 %v3971, 0.0
  %v4086 = vmax.f32 %v3976, 0.0
  %v4087 = vmax.f32 %v3979, 0.0
  %v4088 = vmax.f32 %v3984, 0.0
  %v4089 = vmax.f32 %v3987, 0.0
  %v4090 = vmax.f32 %v3992, 0.0
  %v4091 = vmax.f32 %v3995, 0.0
  %v4092 = vmax.f32 %v4000, 0.0
  %v4093 = vmax.f32 %v4003, 0.0
  %v4094 = vmax.f32 %v4008, 0.0
  %v4095 = vmax.f32 %v4011, 0.0
  %v4096 = vmax.f32 %v4016, 0.0
  %v4097 = vmax.f32 %v4019, 0.0
  %v4098 = vmax.f32 %v4024, 0.0
  %v4099 = vmax.f32 %v4027, 0.0
  %v4100 = vmax.f32 %v4032, 0.0
  %v4101 = vmax.f32 %v4035, 0.0
  %4102 = vst [vmem:[%s11 + $0x10] sm:$0xff] %v4038
  %4103 = vst [vmem:[%s11 + $0x28] sm:$0xff] %v4039
  %4104 = vst [vmem:[%s11 + $0x40] sm:$0xff] %v4040
  %4105 = vst [vmem:[%s11 + $0x58] sm:$0xff] %v4041
  %4106 = vst [vmem:[%s11 + $0x70] sm:$0xff] %v4042
  %4107 = vst [vmem:[%s11 + $0x88] sm:$0xff] %v4043
  %4108 = vst [vmem:[%s11 + $0xa0] sm:$0xff] %v4044
  %4109 = vst [vmem:[%s11 + $0xb8] sm:$0xff] %v4045
  %4110 = vst [vmem:[%s11 + $0xd0] sm:$0xff] %v4046
  %4111 = vst [vmem:[%s11 + $0xe8] sm:$0xff] %v4047
  %4112 = vst [vmem:[%s11 + $0x100] sm:$0xff] %v4048
  %4113 = vst [vmem:[%s11 + $0x118] sm:$0xff] %v4049
  %4114 = vst [vmem:[%s11 + $0x130] sm:$0xff] %v4050
  %4115 = vst [vmem:[%s11 + $0x148] sm:$0xff] %v4051
  %4116 = vst [vmem:[%s11 + $0x160] sm:$0xff] %v4052
  %4117 = vst [vmem:[%s11 + $0x178] sm:$0xff] %v4053
  %4118 = vst [vmem:[%s11 + $0x190] sm:$0xff] %v4054
  %4119 = vst [vmem:[%s11 + $0x1a8] sm:$0xff] %v4055
  %4120 = vst [vmem:[%s11 + $0x1c0] sm:$0xff] %v4056
  %4121 = vst [vmem:[%s11 + $0x1d8] sm:$0xff] %v4057
  %4122 = vst [vmem:[%s11 + $0x1f0] sm:$0xff] %v4058
  %4123 = vst [vmem:[%s11 + $0x208] sm:$0xff] %v4059
  %4124 = vst [vmem:[%s11 + $0x220] sm:$0xff] %v4060
  %4125 = vst [vmem:[%s11 + $0x238] sm:$0xff] %v4061
  %4126 = vst [vmem:[%s11 + $0x250] sm:$0xff] %v4062
  %4127 = vst [vmem:[%s11 + $0x268] sm:$0xff] %v4063
  %4128 = vst [vmem:[%s11 + $0x280] sm:$0xff] %v4064
  %4129 = vst [vmem:[%s11 + $0x298] sm:$0xff] %v4065
  %4130 = vst [vmem:[%s11 + $0x2b0] sm:$0xff] %v4066
  %4131 = vst [vmem:[%s11 + $0x2c8] sm:$0xff] %v4067
  %4132 = vst [vmem:[%s11 + $0x2e0] sm:$0xff] %v4068
  %4133 = vst [vmem:[%s11 + $0x2f8] sm:$0xff] %v4069
  %4134 = vst [vmem:[%s11 + $0x310] sm:$0xff] %v4070
  %4135 = vst [vmem:[%s11 + $0x328] sm:$0xff] %v4071
  %4136 = vst [vmem:[%s11 + $0x340] sm:$0xff] %v4072
  %4137 = vst [vmem:[%s11 + $0x358] sm:$0xff] %v4073
  %4138 = vst [vmem:[%s11 + $0x370] sm:$0xff] %v4074
  %4139 = vst [vmem:[%s11 + $0x388] sm:$0xff] %v4075
  %4140 = vst [vmem:[%s11 + $0x3a0] sm:$0xff] %v4076
  %4141 = vst [vmem:[%s11 + $0x3b8] sm:$0xff] %v4077
  %4142 = vst [vmem:[%s11 + $0x3d0] sm:$0xff] %v4078
  %4143 = vst [vmem:[%s11 + $0x3e8] sm:$0xff] %v4079
  %4144 = vst [vmem:[%s11 + $0x400] sm:$0xff] %v4080
  %4145 = vst [vmem:[%s11 + $0x418] sm:$0xff] %v4081
  %4146 = vst [vmem:[%s11 + $0x430] sm:$0xff] %v4082
  %4147 = vst [vmem:[%s11 + $0x448] sm:$0xff] %v4083
  %4148 = vst [vmem:[%s11 + $0x460] sm:$0xff] %v4084
  %4149 = vst [vmem:[%s11 + $0x478] sm:$0xff] %v4085
  %4150 = vst [vmem:[%s11 + $0x490] sm:$0xff] %v4086
  %4151 = vst [vmem:[%s11 + $0x4a8] sm:$0xff] %v4087
  %4152 = vst [vmem:[%s11 + $0x4c0] sm:$0xff] %v4088
  %4153 = vst [vmem:[%s11 + $0x4d8] sm:$0xff] %v4089
  %4154 = vst [vmem:[%s11 + $0x4f0] sm:$0xff] %v4090
  %4155 = vst [vmem:[%s11 + $0x508] sm:$0xff] %v4091
  %4156 = vst [vmem:[%s11 + $0x520] sm:$0xff] %v4092
  %4157 = vst [vmem:[%s11 + $0x538] sm:$0xff] %v4093
  %4158 = vst [vmem:[%s11 + $0x550] sm:$0xff] %v4094
  %4159 = vst [vmem:[%s11 + $0x568] sm:$0xff] %v4095
  %4160 = vst [vmem:[%s11 + $0x580] sm:$0xff] %v4096
  %4161 = vst [vmem:[%s11 + $0x598] sm:$0xff] %v4097
  %4162 = vst [vmem:[%s11 + $0x5b0] sm:$0xff] %v4098
  %4163 = vst [vmem:[%s11 + $0x5c8] sm:$0xff] %v4099
  %4164 = vst [vmem:[%s11 + $0x5e0] sm:$0xff] %v4100
  %4165 = vst [vmem:[%s11 + $0x5f8] sm:$0xff] %v4101
  // Predicated region
  $region46: #{_apply.1} parent=0 // pred_check
    _
  $region47: #{_apply.1} parent=0 // pred_check_branch
    %4167 = sbr.rel (0) target = $region49
  $region48: #{_apply.1} parent=0 // pred_region
    _
  $region49: #{_apply.1} parent=0 // pred_fallthru
    _
  // Predicated region
  $region50: #{_apply.1} parent=0 // pred_check
    _
  $region51: #{_apply.1} parent=0 // pred_check_branch
    %4169 = sbr.rel (0) target = $region53
  $region52: #{_apply.1} parent=0 // pred_region
    _
  $region53: #{_apply.1} parent=0 // pred_fallthru
    _

</llo_original>
